<compile_context>
chip_gen: v5e
topology: v5e:2x2
jax: 0.10.0
libtpu: 0.0.40
codegen_flags: <defaults>
</compile_context>

<pallas_src>
import functools
import numpy as np
import jax
import jax.numpy as jnp
from jax import lax
from jax.experimental import pallas as pl
from jax.experimental.pallas import tpu as pltpu  # noqa: F401  (TPU backend)

# ----------------------------- configuration ------------------------------
EMBED_SIZE = 16
PADDING_IDX = 0
MODEL_DIM = 32
HEADS = 4
HEAD_DIM = MODEL_DIM // HEADS
PWFF_MID = 64
N_BLOCKS = 2
EPS = 1e-6
B = 2
S = 8        # target (decoder) sequence length
S_ENC = 8    # encoder sequence length


# --------------------------- in-kernel helpers -----------------------------
def _layernorm(x, g, b, eps):
    # torch: mean over -1, std = torch.std (unbiased, /(d-1)); eps added to std.
    d = x.shape[-1]
    mean = jnp.mean(x, axis=-1, keepdims=True)
    xc = x - mean
    var = jnp.sum(xc * xc, axis=-1, keepdims=True) * (1.0 / (d - 1))
    inv_std = pl.reciprocal(jnp.sqrt(var) + eps, approx=True)
    return g * (xc * inv_std) + b


def _attend(q, k, v, mask_big, num_heads, head_dim):
    """Multi-head scaled-dot-product attention with heads stacked along rows.

    q: (Rq, D), k/v: (Rk, D).  mask_big: (H*Rq, H*Rk) block-diagonal over
    (head, batch) so a single score matmul + single softmax covers all heads
    and all batch elements (masked entries get -1e9 -> exp underflows to 0,
    exactly like torch's masked_fill + softmax).
    """
    rq = q.shape[0]
    q2 = jnp.concatenate(
        [q[:, h * head_dim:(h + 1) * head_dim] for h in range(num_heads)], axis=0)
    k2 = jnp.concatenate(
        [k[:, h * head_dim:(h + 1) * head_dim] for h in range(num_heads)], axis=0)
    v2 = jnp.concatenate(
        [v[:, h * head_dim:(h + 1) * head_dim] for h in range(num_heads)], axis=0)

    # scores = Q K^T / head_dim   (PyTorch divides by query.shape[-1], not sqrt)
    s = lax.dot_general(q2, k2, (((1,), (1,)), ((), ())),
                        preferred_element_type=jnp.float32) * (1.0 / head_dim)
    s = jnp.where(mask_big == 0.0, -1.0e9, s)
    m = jnp.max(s, axis=-1, keepdims=True)
    e = jnp.exp(s - m)
    p = e * pl.reciprocal(jnp.sum(e, axis=-1, keepdims=True), approx=True)
    o2 = jnp.dot(p, v2, preferred_element_type=jnp.float32)      # (H*Rq, hd)
    # back to (Rq, D) with heads concatenated along lanes (torch concat order)
    return jnp.concatenate(
        [o2[h * rq:(h + 1) * rq, :] for h in range(num_heads)], axis=-1)


# ------------------------------- fused kernel ------------------------------
def _decoder_kernel(x_ref, enc_ref, tgtm_ref, srcm_ref,
                    lng_ref, lnb_ref,
                    wqkv_s_ref, wo_s_ref,
                    wq_c_ref, wkv_c_ref, wo_c_ref,
                    ln1g_ref, ln1b_ref, ln2g_ref, ln2b_ref, ln3g_ref, ln3b_ref,
                    w1_ref, b1_ref, w2_ref, b2_ref,
                    ow_ref, ob_ref,
                    o_ref,
                    *, num_heads, head_dim, model_dim, n_blocks, eps):
    d = model_dim
    x = x_ref[...]          # (B*S, D)
    enc = enc_ref[...]      # (B*S_enc, D)
    tgtm = tgtm_ref[...]    # (H*B*S, H*B*S)
    srcm = srcm_ref[...]    # (H*B*S, H*B*S_enc)

    # top-level LayerNormalization after (embedding + positional encodings)
    x = _layernorm(x, lng_ref[...], lnb_ref[...], eps)
    # dropout_layer -> identity (eval)

    for i in range(n_blocks):                     # static unroll over blocks
        # ---------- masked self-attention (fused QKV projection) ----------
        skip = x
        qkv = jnp.dot(x, wqkv_s_ref[i], preferred_element_type=jnp.float32)
        a = _attend(qkv[:, 0:d], qkv[:, d:2 * d], qkv[:, 2 * d:3 * d],
                    tgtm, num_heads, head_dim)
        a = jnp.dot(a, wo_s_ref[i], preferred_element_type=jnp.float32)
        x = _layernorm(skip + a, ln1g_ref[i], ln1b_ref[i], eps)

        # ---------- cross-attention (fused KV projection of enc_x) --------
        skip = x
        q = jnp.dot(x, wq_c_ref[i], preferred_element_type=jnp.float32)
        kv = jnp.dot(enc, wkv_c_ref[i], preferred_element_type=jnp.float32)
        a = _attend(q, kv[:, 0:d], kv[:, d:2 * d], srcm, num_heads, head_dim)
        a = jnp.dot(a, wo_c_ref[i], preferred_element_type=jnp.float32)
        x = _layernorm(skip + a, ln2g_ref[i], ln2b_ref[i], eps)

        # ---------- position-wise feed-forward -----------------------------
        skip = x
        h = jnp.dot(x, w1_ref[i], preferred_element_type=jnp.float32) + b1_ref[i]
        h = jnp.maximum(h, 0.0)
        f = jnp.dot(h, w2_ref[i], preferred_element_type=jnp.float32) + b2_ref[i]
        x = _layernorm(skip + f, ln3g_ref[i], ln3b_ref[i], eps)

    # out_linear (model_dim -> embed_size), only HBM store of the whole stack
    o_ref[...] = jnp.dot(x, ow_ref[...], preferred_element_type=jnp.float32) + ob_ref[...]


def decoder_pallas(x_flat, enc_flat, tgt_big, src_big, p):
    r, _ = x_flat.shape
    kernel = functools.partial(
        _decoder_kernel, num_heads=HEADS, head_dim=HEAD_DIM,
        model_dim=MODEL_DIM, n_blocks=N_BLOCKS, eps=EPS)
    return pl.pallas_call(
        kernel,
        out_shape=jax.ShapeDtypeStruct((r, EMBED_SIZE), jnp.float32),
    )(x_flat, enc_flat, tgt_big, src_big,
      p["ln_g"], p["ln_b"],
      p["wqkv_self"], p["wo_self"],
      p["wq_cross"], p["wkv_cross"], p["wo_cross"],
      p["ln1_g"], p["ln1_b"], p["ln2_g"], p["ln2_b"], p["ln3_g"], p["ln3_b"],
      p["w1"], p["b1"], p["w2"], p["b2"],
      p["out_w"], p["out_b"])


# ---------------------------- parameter init -------------------------------
def _glorot_uniform(key, fan_in, fan_out):
    fan_avg = (fan_in + fan_out) / 2.0
    r = float(np.sqrt(3.0 / fan_avg))
    return jax.random.uniform(key, (fan_in, fan_out), jnp.float32, -r, r)


def _xavier_uniform(key, fan_in, fan_out):
    r = float(np.sqrt(6.0 / (fan_in + fan_out)))
    return jax.random.uniform(key, (fan_in, fan_out), jnp.float32, -r, r)


def init_params(key):
    keys = iter(jax.random.split(key, 2 + N_BLOCKS * 10))
    p = {}
    embed = _xavier_uniform(next(keys), EMBED_SIZE, MODEL_DIM)
    embed = embed.at[PADDING_IDX].set(0.0)     # nn.Embedding padding_idx row
    p["embed"] = embed
    p["ln_g"] = jnp.ones((1, MODEL_DIM), jnp.float32)
    p["ln_b"] = jnp.zeros((1, MODEL_DIM), jnp.float32)

    wqkv_s, wo_s, wq_c, wkv_c, wo_c = [], [], [], [], []
    w1s, b1s, w2s, b2s = [], [], [], []
    for _ in range(N_BLOCKS):
        wq = _glorot_uniform(next(keys), MODEL_DIM, MODEL_DIM)
        wk = _glorot_uniform(next(keys), MODEL_DIM, MODEL_DIM)
        wv = _glorot_uniform(next(keys), MODEL_DIM, MODEL_DIM)
        wo = _glorot_uniform(next(keys), MODEL_DIM, MODEL_DIM)
        wqkv_s.append(jnp.concatenate([wq, wk, wv], axis=1))     # (D, 3D)
        wo_s.append(wo)

        wq2 = _glorot_uniform(next(keys), MODEL_DIM, MODEL_DIM)
        wk2 = _glorot_uniform(next(keys), MODEL_DIM, MODEL_DIM)
        wv2 = _glorot_uniform(next(keys), MODEL_DIM, MODEL_DIM)
        wo2 = _glorot_uniform(next(keys), MODEL_DIM, MODEL_DIM)
        wq_c.append(wq2)
        wkv_c.append(jnp.concatenate([wk2, wv2], axis=1))        # (D, 2D)
        wo_c.append(wo2)

        w1s.append(_glorot_uniform(next(keys), MODEL_DIM, PWFF_MID))
        b1s.append(jnp.zeros((1, PWFF_MID), jnp.float32))
        w2s.append(_glorot_uniform(next(keys), PWFF_MID, MODEL_DIM))
        b2s.append(jnp.zeros((1, MODEL_DIM), jnp.float32))

    p["wqkv_self"] = jnp.stack(wqkv_s)     # (N, D, 3D)
    p["wo_self"] = jnp.stack(wo_s)         # (N, D, D)
    p["wq_cross"] = jnp.stack(wq_c)        # (N, D, D)
    p["wkv_cross"] = jnp.stack(wkv_c)      # (N, D, 2D)
    p["wo_cross"] = jnp.stack(wo_c)        # (N, D, D)
    ones = jnp.ones((N_BLOCKS, 1, MODEL_DIM), jnp.float32)
    zeros = jnp.zeros((N_BLOCKS, 1, MODEL_DIM), jnp.float32)
    p["ln1_g"], p["ln1_b"] = ones, zeros
    p["ln2_g"], p["ln2_b"] = ones, zeros
    p["ln3_g"], p["ln3_b"] = ones, zeros
    p["w1"] = jnp.stack(w1s)               # (N, D, M)
    p["b1"] = jnp.stack(b1s)               # (N, 1, M)
    p["w2"] = jnp.stack(w2s)               # (N, M, D)
    p["b2"] = jnp.stack(b2s)               # (N, 1, D)
    p["out_w"] = _glorot_uniform(next(keys), MODEL_DIM, EMBED_SIZE)
    p["out_b"] = jnp.zeros((1, EMBED_SIZE), jnp.float32)
    return p


# ------------------------- host-side glue (pure JAX) ------------------------
def build_positional_encodings(tgt_lens, model_dim):
    # Mirrors PositionalEncodings: table is (model_dim, model_dim); valid while
    # max(tgt_lens) <= model_dim (true here: 8 <= 32).
    pos = np.arange(0, model_dim, 1)
    emb = np.zeros((model_dim, model_dim), dtype=np.float32)
    for i in range(model_dim // 2):
        denom = 10000 ** (2 * i / model_dim)
        emb[:, 2 * i] = np.sin(pos / denom)
        emb[:, 2 * i + 1] = np.cos(pos / denom)
    max_len = max(tgt_lens)
    out = np.zeros((len(tgt_lens), max_len, model_dim), dtype=np.float32)
    for b, length in enumerate(tgt_lens):
        out[b, :length, :] = emb[:length, :]
    return jnp.asarray(out)


def _expand_mask(mask, num_heads):
    # (B, Sq, Sk) 0/1 mask -> block-diagonal (H*B*Sq, H*B*Sk) over (head, batch)
    b, sq, sk = mask.shape
    big = jnp.einsum('hg,bc,bqk->hbqgck',
                     jnp.eye(num_heads, dtype=jnp.float32),
                     jnp.eye(b, dtype=jnp.float32),
                     mask.astype(jnp.float32))
    return big.reshape(num_heads * b * sq, num_heads * b * sk)


def decoder_forward(params, tokens, tgt_lens, enc_x, src_mask, tgt_mask):
    # ScaledEmbedding (gather is glue; scale = sqrt(model_dim))
    x = jnp.take(params["embed"], tokens, axis=0) * jnp.sqrt(jnp.float32(MODEL_DIM))
    x = x + build_positional_encodings(tgt_lens, MODEL_DIM)     # (B, S, D)
    b_, sq, d = x.shape
    sk = enc_x.shape[1]

    tgt_m = jnp.broadcast_to(tgt_mask.astype(jnp.float32), (b_, sq, sq))
    src_m = jnp.broadcast_to(src_mask.astype(jnp.float32), (b_, sq, sk))
    tgt_big = _expand_mask(tgt_m, HEADS)
    src_big = _expand_mask(src_m, HEADS)

    out = decoder_pallas(x.reshape(b_ * sq, d), enc_x.reshape(b_ * sk, d),
                         tgt_big, src_big, params)
    return out.reshape(b_, sq, EMBED_SIZE)


# -------------------------------- main --------------------------------------
if __name__ == "__main__":
    key = jax.random.PRNGKey(0)
    k_param, k_tok, k_enc = jax.random.split(key, 3)

    params = init_params(k_param)

    tokens = jax.random.randint(k_tok, (B, S), 0, EMBED_SIZE, dtype=jnp.int32)
    tgt_lens = [S, S - 2]
    enc_x = jax.random.normal(k_enc, (B, S_ENC, MODEL_DIM), jnp.float32)

    # causal target mask (B, S, S)
    tgt_mask = jnp.broadcast_to(
        jnp.tril(jnp.ones((S, S), jnp.float32))[None, :, :], (B, S, S))
    # source padding mask (B, 1, S_ENC); second batch element has 2 padded keys
    src_mask = np.ones((B, 1, S_ENC), dtype=np.float32)
    src_mask[1, 0, S_ENC - 2:] = 0.0
    src_mask = jnp.asarray(src_mask)

    out = decoder_forward(params, tokens, tgt_lens, enc_x, src_mask, tgt_mask)
    out = jax.block_until_ready(out)
    assert out.shape == (B, S, EMBED_SIZE), out.shape
    assert bool(jnp.all(jnp.isfinite(out)))
    print("KERNEL_OK")
</pallas_src>

<mosaic_0001>
module attributes {stable_mosaic.version = 11 : i64} {
  func.func @_decoder_kernel(%arg0: memref<16x32xf32, #tpu.memory_space<vmem>>, %arg1: memref<16x32xf32, #tpu.memory_space<vmem>>, %arg2: memref<64x64xf32, #tpu.memory_space<vmem>>, %arg3: memref<64x64xf32, #tpu.memory_space<vmem>>, %arg4: memref<1x32xf32, #tpu.memory_space<vmem>>, %arg5: memref<1x32xf32, #tpu.memory_space<vmem>>, %arg6: memref<2x32x96xf32, #tpu.memory_space<vmem>>, %arg7: memref<2x32x32xf32, #tpu.memory_space<vmem>>, %arg8: memref<2x32x32xf32, #tpu.memory_space<vmem>>, %arg9: memref<2x32x64xf32, #tpu.memory_space<vmem>>, %arg10: memref<2x32x32xf32, #tpu.memory_space<vmem>>, %arg11: memref<2x1x32xf32, #tpu.memory_space<vmem>>, %arg12: memref<2x1x32xf32, #tpu.memory_space<vmem>>, %arg13: memref<2x1x32xf32, #tpu.memory_space<vmem>>, %arg14: memref<2x1x32xf32, #tpu.memory_space<vmem>>, %arg15: memref<2x1x32xf32, #tpu.memory_space<vmem>>, %arg16: memref<2x1x32xf32, #tpu.memory_space<vmem>>, %arg17: memref<2x32x64xf32, #tpu.memory_space<vmem>>, %arg18: memref<2x1x64xf32, #tpu.memory_space<vmem>>, %arg19: memref<2x64x32xf32, #tpu.memory_space<vmem>>, %arg20: memref<2x1x32xf32, #tpu.memory_space<vmem>>, %arg21: memref<32x16xf32, #tpu.memory_space<vmem>>, %arg22: memref<1x16xf32, #tpu.memory_space<vmem>>, %arg23: memref<16x16xf32, #tpu.memory_space<vmem>>) attributes {dimension_semantics = [], scalar_prefetch = 0 : i64, scratch_operands = 0 : i64, tpu.core_type = #tpu.core_type<tc>} {
    %c0 = arith.constant 0 : index
    %c0_0 = arith.constant 0 : index
    %0 = vector.load %arg0[%c0, %c0_0] : memref<16x32xf32, #tpu.memory_space<vmem>>, vector<16x32xf32>
    %c0_1 = arith.constant 0 : index
    %c0_2 = arith.constant 0 : index
    %1 = vector.load %arg1[%c0_1, %c0_2] : memref<16x32xf32, #tpu.memory_space<vmem>>, vector<16x32xf32>
    %c0_3 = arith.constant 0 : index
    %c0_4 = arith.constant 0 : index
    %2 = vector.load %arg2[%c0_3, %c0_4] : memref<64x64xf32, #tpu.memory_space<vmem>>, vector<64x64xf32>
    %c0_5 = arith.constant 0 : index
    %c0_6 = arith.constant 0 : index
    %3 = vector.load %arg3[%c0_5, %c0_6] : memref<64x64xf32, #tpu.memory_space<vmem>>, vector<64x64xf32>
    %c0_7 = arith.constant 0 : index
    %c0_8 = arith.constant 0 : index
    %4 = vector.load %arg4[%c0_7, %c0_8] : memref<1x32xf32, #tpu.memory_space<vmem>>, vector<1x32xf32>
    %c0_9 = arith.constant 0 : index
    %c0_10 = arith.constant 0 : index
    %5 = vector.load %arg5[%c0_9, %c0_10] : memref<1x32xf32, #tpu.memory_space<vmem>>, vector<1x32xf32>
    %cst = arith.constant dense<0.000000e+00> : vector<16xf32>
    %6 = vector.multi_reduction <add>, %0, %cst [1] : vector<16x32xf32> to vector<16xf32>
    %7 = vector.shape_cast %6 : vector<16xf32> to vector<16x1xf32>
    %cst_11 = arith.constant 3.200000e+01 : f32
    %8 = vector.broadcast %cst_11 : f32 to vector<16x1xf32>
    %9 = arith.divf %7, %8 : vector<16x1xf32>
    %10 = vector.broadcast %9 : vector<16x1xf32> to vector<16x32xf32>
    %11 = arith.subf %0, %10 : vector<16x32xf32>
    %12 = arith.mulf %11, %11 : vector<16x32xf32>
    %cst_12 = arith.constant dense<0.000000e+00> : vector<16xf32>
    %13 = vector.multi_reduction <add>, %12, %cst_12 [1] : vector<16x32xf32> to vector<16xf32>
    %14 = vector.shape_cast %13 : vector<16xf32> to vector<16x1xf32>
    %cst_13 = arith.constant 0.0322580636 : f32
    %15 = vector.broadcast %cst_13 : f32 to vector<16x1xf32>
    %16 = arith.mulf %14, %15 : vector<16x1xf32>
    %17 = math.sqrt %16 : vector<16x1xf32>
    %cst_14 = arith.constant 9.99999997E-7 : f32
    %18 = vector.broadcast %cst_14 : f32 to vector<16x1xf32>
    %19 = arith.addf %17, %18 : vector<16x1xf32>
    %20 = tpu.reciprocal %19 {approx = true} : vector<16x1xf32> -> vector<16x1xf32>
    %21 = vector.broadcast %20 : vector<16x1xf32> to vector<16x32xf32>
    %22 = arith.mulf %11, %21 : vector<16x32xf32>
    %23 = vector.broadcast %4 : vector<1x32xf32> to vector<16x32xf32>
    %24 = arith.mulf %23, %22 : vector<16x32xf32>
    %25 = vector.broadcast %5 : vector<1x32xf32> to vector<16x32xf32>
    %26 = arith.addf %24, %25 : vector<16x32xf32>
    %c0_15 = arith.constant 0 : index
    %c0_16 = arith.constant 0 : index
    %c0_17 = arith.constant 0 : index
    %27 = vector.load %arg6[%c0_15, %c0_16, %c0_17] : memref<2x32x96xf32, #tpu.memory_space<vmem>>, vector<1x32x96xf32>
    %28 = vector.shape_cast %27 : vector<1x32x96xf32> to vector<32x96xf32>
    %cst_18 = arith.constant dense<0.000000e+00> : vector<16x96xf32>
    %29 = tpu.matmul %26, %28, %cst_18 {dimension_numbers = #tpu.dot_dimension_numbers<[1], [0], [0], [1], [0, 0, 1, 1], [], []>} : vector<16x32xf32>, vector<32x96xf32>, vector<16x96xf32> -> vector<16x96xf32>
    %30 = vector.extract_strided_slice %29 {offsets = [0, 0], sizes = [16, 32], strides = [1, 1]} : vector<16x96xf32> to vector<16x32xf32>
    %31 = vector.extract_strided_slice %29 {offsets = [0, 32], sizes = [16, 32], strides = [1, 1]} : vector<16x96xf32> to vector<16x32xf32>
    %32 = vector.extract_strided_slice %29 {offsets = [0, 64], sizes = [16, 32], strides = [1, 1]} : vector<16x96xf32> to vector<16x32xf32>
    %33 = vector.extract_strided_slice %30 {offsets = [0, 0], sizes = [16, 8], strides = [1, 1]} : vector<16x32xf32> to vector<16x8xf32>
    %34 = vector.extract_strided_slice %30 {offsets = [0, 8], sizes = [16, 8], strides = [1, 1]} : vector<16x32xf32> to vector<16x8xf32>
    %35 = vector.extract_strided_slice %30 {offsets = [0, 16], sizes = [16, 8], strides = [1, 1]} : vector<16x32xf32> to vector<16x8xf32>
    %36 = vector.extract_strided_slice %30 {offsets = [0, 24], sizes = [16, 8], strides = [1, 1]} : vector<16x32xf32> to vector<16x8xf32>
    %37 = tpu.concatenate %33, %34, %35, %36 in 0 : vector<16x8xf32>, vector<16x8xf32>, vector<16x8xf32>, vector<16x8xf32> -> vector<64x8xf32>
    %38 = vector.extract_strided_slice %31 {offsets = [0, 0], sizes = [16, 8], strides = [1, 1]} : vector<16x32xf32> to vector<16x8xf32>
    %39 = vector.extract_strided_slice %31 {offsets = [0, 8], sizes = [16, 8], strides = [1, 1]} : vector<16x32xf32> to vector<16x8xf32>
    %40 = vector.extract_strided_slice %31 {offsets = [0, 16], sizes = [16, 8], strides = [1, 1]} : vector<16x32xf32> to vector<16x8xf32>
    %41 = vector.extract_strided_slice %31 {offsets = [0, 24], sizes = [16, 8], strides = [1, 1]} : vector<16x32xf32> to vector<16x8xf32>
    %42 = tpu.concatenate %38, %39, %40, %41 in 0 : vector<16x8xf32>, vector<16x8xf32>, vector<16x8xf32>, vector<16x8xf32> -> vector<64x8xf32>
    %43 = vector.extract_strided_slice %32 {offsets = [0, 0], sizes = [16, 8], strides = [1, 1]} : vector<16x32xf32> to vector<16x8xf32>
    %44 = vector.extract_strided_slice %32 {offsets = [0, 8], sizes = [16, 8], strides = [1, 1]} : vector<16x32xf32> to vector<16x8xf32>
    %45 = vector.extract_strided_slice %32 {offsets = [0, 16], sizes = [16, 8], strides = [1, 1]} : vector<16x32xf32> to vector<16x8xf32>
    %46 = vector.extract_strided_slice %32 {offsets = [0, 24], sizes = [16, 8], strides = [1, 1]} : vector<16x32xf32> to vector<16x8xf32>
    %47 = tpu.concatenate %43, %44, %45, %46 in 0 : vector<16x8xf32>, vector<16x8xf32>, vector<16x8xf32>, vector<16x8xf32> -> vector<64x8xf32>
    %cst_19 = arith.constant dense<0.000000e+00> : vector<64x64xf32>
    %48 = tpu.matmul %37, %42, %cst_19 {dimension_numbers = #tpu.dot_dimension_numbers<[1], [1], [0], [0], [0, 0, 1, 0], [], []>} : vector<64x8xf32>, vector<64x8xf32>, vector<64x64xf32> -> vector<64x64xf32>
    %cst_20 = arith.constant 1.250000e-01 : f32
    %49 = vector.broadcast %cst_20 : f32 to vector<64x64xf32>
    %50 = arith.mulf %48, %49 : vector<64x64xf32>
    %cst_21 = arith.constant 0.000000e+00 : f32
    %51 = vector.broadcast %cst_21 : f32 to vector<64x64xf32>
    %52 = arith.cmpf oeq, %2, %51 : vector<64x64xf32>
    %cst_22 = arith.constant -1.000000e+09 : f32
    %53 = vector.broadcast %cst_22 : f32 to vector<64x64xf32>
    %54 = arith.select %52, %53, %50 : vector<64x64xi1>, vector<64x64xf32>
    %cst_23 = arith.constant dense<0xFF800000> : vector<64xf32>
    %55 = vector.multi_reduction <maximumf>, %54, %cst_23 [1] : vector<64x64xf32> to vector<64xf32>
    %56 = vector.shape_cast %55 : vector<64xf32> to vector<64x1xf32>
    %57 = vector.broadcast %56 : vector<64x1xf32> to vector<64x64xf32>
    %58 = arith.subf %54, %57 : vector<64x64xf32>
    %59 = math.exp %58 : vector<64x64xf32>
    %cst_24 = arith.constant dense<0.000000e+00> : vector<64xf32>
    %60 = vector.multi_reduction <add>, %59, %cst_24 [1] : vector<64x64xf32> to vector<64xf32>
    %61 = vector.shape_cast %60 : vector<64xf32> to vector<64x1xf32>
    %62 = tpu.reciprocal %61 {approx = true} : vector<64x1xf32> -> vector<64x1xf32>
    %63 = vector.broadcast %62 : vector<64x1xf32> to vector<64x64xf32>
    %64 = arith.mulf %59, %63 : vector<64x64xf32>
    %cst_25 = arith.constant dense<0.000000e+00> : vector<64x8xf32>
    %65 = tpu.matmul %64, %47, %cst_25 {dimension_numbers = #tpu.dot_dimension_numbers<[1], [0], [0], [1], [0, 0, 1, 1], [], []>} : vector<64x64xf32>, vector<64x8xf32>, vector<64x8xf32> -> vector<64x8xf32>
    %66 = vector.extract_strided_slice %65 {offsets = [0, 0], sizes = [16, 8], strides = [1, 1]} : vector<64x8xf32> to vector<16x8xf32>
    %67 = vector.extract_strided_slice %65 {offsets = [16, 0], sizes = [16, 8], strides = [1, 1]} : vector<64x8xf32> to vector<16x8xf32>
    %68 = vector.extract_strided_slice %65 {offsets = [32, 0], sizes = [16, 8], strides = [1, 1]} : vector<64x8xf32> to vector<16x8xf32>
    %69 = vector.extract_strided_slice %65 {offsets = [48, 0], sizes = [16, 8], strides = [1, 1]} : vector<64x8xf32> to vector<16x8xf32>
    %70 = tpu.concatenate %66, %67, %68, %69 in 1 : vector<16x8xf32>, vector<16x8xf32>, vector<16x8xf32>, vector<16x8xf32> -> vector<16x32xf32>
    %c0_26 = arith.constant 0 : index
    %c0_27 = arith.constant 0 : index
    %c0_28 = arith.constant 0 : index
    %71 = vector.load %arg7[%c0_26, %c0_27, %c0_28] : memref<2x32x32xf32, #tpu.memory_space<vmem>>, vector<1x32x32xf32>
    %72 = vector.shape_cast %71 : vector<1x32x32xf32> to vector<32x32xf32>
    %cst_29 = arith.constant dense<0.000000e+00> : vector<16x32xf32>
    %73 = tpu.matmul %70, %72, %cst_29 {dimension_numbers = #tpu.dot_dimension_numbers<[1], [0], [0], [1], [0, 0, 1, 1], [], []>} : vector<16x32xf32>, vector<32x32xf32>, vector<16x32xf32> -> vector<16x32xf32>
    %74 = arith.addf %26, %73 : vector<16x32xf32>
    %c0_30 = arith.constant 0 : index
    %c0_31 = arith.constant 0 : index
    %c0_32 = arith.constant 0 : index
    %75 = vector.load %arg11[%c0_30, %c0_31, %c0_32] : memref<2x1x32xf32, #tpu.memory_space<vmem>>, vector<1x1x32xf32>
    %76 = vector.shape_cast %75 : vector<1x1x32xf32> to vector<1x32xf32>
    %c0_33 = arith.constant 0 : index
    %c0_34 = arith.constant 0 : index
    %c0_35 = arith.constant 0 : index
    %77 = vector.load %arg12[%c0_33, %c0_34, %c0_35] : memref<2x1x32xf32, #tpu.memory_space<vmem>>, vector<1x1x32xf32>
    %78 = vector.shape_cast %77 : vector<1x1x32xf32> to vector<1x32xf32>
    %cst_36 = arith.constant dense<0.000000e+00> : vector<16xf32>
    %79 = vector.multi_reduction <add>, %74, %cst_36 [1] : vector<16x32xf32> to vector<16xf32>
    %80 = vector.shape_cast %79 : vector<16xf32> to vector<16x1xf32>
    %cst_37 = arith.constant 3.200000e+01 : f32
    %81 = vector.broadcast %cst_37 : f32 to vector<16x1xf32>
    %82 = arith.divf %80, %81 : vector<16x1xf32>
    %83 = vector.broadcast %82 : vector<16x1xf32> to vector<16x32xf32>
    %84 = arith.subf %74, %83 : vector<16x32xf32>
    %85 = arith.mulf %84, %84 : vector<16x32xf32>
    %cst_38 = arith.constant dense<0.000000e+00> : vector<16xf32>
    %86 = vector.multi_reduction <add>, %85, %cst_38 [1] : vector<16x32xf32> to vector<16xf32>
    %87 = vector.shape_cast %86 : vector<16xf32> to vector<16x1xf32>
    %cst_39 = arith.constant 0.0322580636 : f32
    %88 = vector.broadcast %cst_39 : f32 to vector<16x1xf32>
    %89 = arith.mulf %87, %88 : vector<16x1xf32>
    %90 = math.sqrt %89 : vector<16x1xf32>
    %cst_40 = arith.constant 9.99999997E-7 : f32
    %91 = vector.broadcast %cst_40 : f32 to vector<16x1xf32>
    %92 = arith.addf %90, %91 : vector<16x1xf32>
    %93 = tpu.reciprocal %92 {approx = true} : vector<16x1xf32> -> vector<16x1xf32>
    %94 = vector.broadcast %93 : vector<16x1xf32> to vector<16x32xf32>
    %95 = arith.mulf %84, %94 : vector<16x32xf32>
    %96 = vector.broadcast %76 : vector<1x32xf32> to vector<16x32xf32>
    %97 = arith.mulf %96, %95 : vector<16x32xf32>
    %98 = vector.broadcast %78 : vector<1x32xf32> to vector<16x32xf32>
    %99 = arith.addf %97, %98 : vector<16x32xf32>
    %c0_41 = arith.constant 0 : index
    %c0_42 = arith.constant 0 : index
    %c0_43 = arith.constant 0 : index
    %100 = vector.load %arg8[%c0_41, %c0_42, %c0_43] : memref<2x32x32xf32, #tpu.memory_space<vmem>>, vector<1x32x32xf32>
    %101 = vector.shape_cast %100 : vector<1x32x32xf32> to vector<32x32xf32>
    %cst_44 = arith.constant dense<0.000000e+00> : vector<16x32xf32>
    %102 = tpu.matmul %99, %101, %cst_44 {dimension_numbers = #tpu.dot_dimension_numbers<[1], [0], [0], [1], [0, 0, 1, 1], [], []>} : vector<16x32xf32>, vector<32x32xf32>, vector<16x32xf32> -> vector<16x32xf32>
    %c0_45 = arith.constant 0 : index
    %c0_46 = arith.constant 0 : index
    %c0_47 = arith.constant 0 : index
    %103 = vector.load %arg9[%c0_45, %c0_46, %c0_47] : memref<2x32x64xf32, #tpu.memory_space<vmem>>, vector<1x32x64xf32>
    %104 = vector.shape_cast %103 : vector<1x32x64xf32> to vector<32x64xf32>
    %cst_48 = arith.constant dense<0.000000e+00> : vector<16x64xf32>
    %105 = tpu.matmul %1, %104, %cst_48 {dimension_numbers = #tpu.dot_dimension_numbers<[1], [0], [0], [1], [0, 0, 1, 1], [], []>} : vector<16x32xf32>, vector<32x64xf32>, vector<16x64xf32> -> vector<16x64xf32>
    %106 = vector.extract_strided_slice %105 {offsets = [0, 0], sizes = [16, 32], strides = [1, 1]} : vector<16x64xf32> to vector<16x32xf32>
    %107 = vector.extract_strided_slice %105 {offsets = [0, 32], sizes = [16, 32], strides = [1, 1]} : vector<16x64xf32> to vector<16x32xf32>
    %108 = vector.extract_strided_slice %102 {offsets = [0, 0], sizes = [16, 8], strides = [1, 1]} : vector<16x32xf32> to vector<16x8xf32>
    %109 = vector.extract_strided_slice %102 {offsets = [0, 8], sizes = [16, 8], strides = [1, 1]} : vector<16x32xf32> to vector<16x8xf32>
    %110 = vector.extract_strided_slice %102 {offsets = [0, 16], sizes = [16, 8], strides = [1, 1]} : vector<16x32xf32> to vector<16x8xf32>
    %111 = vector.extract_strided_slice %102 {offsets = [0, 24], sizes = [16, 8], strides = [1, 1]} : vector<16x32xf32> to vector<16x8xf32>
    %112 = tpu.concatenate %108, %109, %110, %111 in 0 : vector<16x8xf32>, vector<16x8xf32>, vector<16x8xf32>, vector<16x8xf32> -> vector<64x8xf32>
    %113 = vector.extract_strided_slice %106 {offsets = [0, 0], sizes = [16, 8], strides = [1, 1]} : vector<16x32xf32> to vector<16x8xf32>
    %114 = vector.extract_strided_slice %106 {offsets = [0, 8], sizes = [16, 8], strides = [1, 1]} : vector<16x32xf32> to vector<16x8xf32>
    %115 = vector.extract_strided_slice %106 {offsets = [0, 16], sizes = [16, 8], strides = [1, 1]} : vector<16x32xf32> to vector<16x8xf32>
    %116 = vector.extract_strided_slice %106 {offsets = [0, 24], sizes = [16, 8], strides = [1, 1]} : vector<16x32xf32> to vector<16x8xf32>
    %117 = tpu.concatenate %113, %114, %115, %116 in 0 : vector<16x8xf32>, vector<16x8xf32>, vector<16x8xf32>, vector<16x8xf32> -> vector<64x8xf32>
    %118 = vector.extract_strided_slice %107 {offsets = [0, 0], sizes = [16, 8], strides = [1, 1]} : vector<16x32xf32> to vector<16x8xf32>
    %119 = vector.extract_strided_slice %107 {offsets = [0, 8], sizes = [16, 8], strides = [1, 1]} : vector<16x32xf32> to vector<16x8xf32>
    %120 = vector.extract_strided_slice %107 {offsets = [0, 16], sizes = [16, 8], strides = [1, 1]} : vector<16x32xf32> to vector<16x8xf32>
    %121 = vector.extract_strided_slice %107 {offsets = [0, 24], sizes = [16, 8], strides = [1, 1]} : vector<16x32xf32> to vector<16x8xf32>
    %122 = tpu.concatenate %118, %119, %120, %121 in 0 : vector<16x8xf32>, vector<16x8xf32>, vector<16x8xf32>, vector<16x8xf32> -> vector<64x8xf32>
    %cst_49 = arith.constant dense<0.000000e+00> : vector<64x64xf32>
    %123 = tpu.matmul %112, %117, %cst_49 {dimension_numbers = #tpu.dot_dimension_numbers<[1], [1], [0], [0], [0, 0, 1, 0], [], []>} : vector<64x8xf32>, vector<64x8xf32>, vector<64x64xf32> -> vector<64x64xf32>
    %cst_50 = arith.constant 1.250000e-01 : f32
    %124 = vector.broadcast %cst_50 : f32 to vector<64x64xf32>
    %125 = arith.mulf %123, %124 : vector<64x64xf32>
    %cst_51 = arith.constant 0.000000e+00 : f32
    %126 = vector.broadcast %cst_51 : f32 to vector<64x64xf32>
    %127 = arith.cmpf oeq, %3, %126 : vector<64x64xf32>
    %cst_52 = arith.constant -1.000000e+09 : f32
    %128 = vector.broadcast %cst_52 : f32 to vector<64x64xf32>
    %129 = arith.select %127, %128, %125 : vector<64x64xi1>, vector<64x64xf32>
    %cst_53 = arith.constant dense<0xFF800000> : vector<64xf32>
    %130 = vector.multi_reduction <maximumf>, %129, %cst_53 [1] : vector<64x64xf32> to vector<64xf32>
    %131 = vector.shape_cast %130 : vector<64xf32> to vector<64x1xf32>
    %132 = vector.broadcast %131 : vector<64x1xf32> to vector<64x64xf32>
    %133 = arith.subf %129, %132 : vector<64x64xf32>
    %134 = math.exp %133 : vector<64x64xf32>
    %cst_54 = arith.constant dense<0.000000e+00> : vector<64xf32>
    %135 = vector.multi_reduction <add>, %134, %cst_54 [1] : vector<64x64xf32> to vector<64xf32>
    %136 = vector.shape_cast %135 : vector<64xf32> to vector<64x1xf32>
    %137 = tpu.reciprocal %136 {approx = true} : vector<64x1xf32> -> vector<64x1xf32>
    %138 = vector.broadcast %137 : vector<64x1xf32> to vector<64x64xf32>
    %139 = arith.mulf %134, %138 : vector<64x64xf32>
    %cst_55 = arith.constant dense<0.000000e+00> : vector<64x8xf32>
    %140 = tpu.matmul %139, %122, %cst_55 {dimension_numbers = #tpu.dot_dimension_numbers<[1], [0], [0], [1], [0, 0, 1, 1], [], []>} : vector<64x64xf32>, vector<64x8xf32>, vector<64x8xf32> -> vector<64x8xf32>
    %141 = vector.extract_strided_slice %140 {offsets = [0, 0], sizes = [16, 8], strides = [1, 1]} : vector<64x8xf32> to vector<16x8xf32>
    %142 = vector.extract_strided_slice %140 {offsets = [16, 0], sizes = [16, 8], strides = [1, 1]} : vector<64x8xf32> to vector<16x8xf32>
    %143 = vector.extract_strided_slice %140 {offsets = [32, 0], sizes = [16, 8], strides = [1, 1]} : vector<64x8xf32> to vector<16x8xf32>
    %144 = vector.extract_strided_slice %140 {offsets = [48, 0], sizes = [16, 8], strides = [1, 1]} : vector<64x8xf32> to vector<16x8xf32>
    %145 = tpu.concatenate %141, %142, %143, %144 in 1 : vector<16x8xf32>, vector<16x8xf32>, vector<16x8xf32>, vector<16x8xf32> -> vector<16x32xf32>
    %c0_56 = arith.constant 0 : index
    %c0_57 = arith.constant 0 : index
    %c0_58 = arith.constant 0 : index
    %146 = vector.load %arg10[%c0_56, %c0_57, %c0_58] : memref<2x32x32xf32, #tpu.memory_space<vmem>>, vector<1x32x32xf32>
    %147 = vector.shape_cast %146 : vector<1x32x32xf32> to vector<32x32xf32>
    %cst_59 = arith.constant dense<0.000000e+00> : vector<16x32xf32>
    %148 = tpu.matmul %145, %147, %cst_59 {dimension_numbers = #tpu.dot_dimension_numbers<[1], [0], [0], [1], [0, 0, 1, 1], [], []>} : vector<16x32xf32>, vector<32x32xf32>, vector<16x32xf32> -> vector<16x32xf32>
    %149 = arith.addf %99, %148 : vector<16x32xf32>
    %c0_60 = arith.constant 0 : index
    %c0_61 = arith.constant 0 : index
    %c0_62 = arith.constant 0 : index
    %150 = vector.load %arg13[%c0_60, %c0_61, %c0_62] : memref<2x1x32xf32, #tpu.memory_space<vmem>>, vector<1x1x32xf32>
    %151 = vector.shape_cast %150 : vector<1x1x32xf32> to vector<1x32xf32>
    %c0_63 = arith.constant 0 : index
    %c0_64 = arith.constant 0 : index
    %c0_65 = arith.constant 0 : index
    %152 = vector.load %arg14[%c0_63, %c0_64, %c0_65] : memref<2x1x32xf32, #tpu.memory_space<vmem>>, vector<1x1x32xf32>
    %153 = vector.shape_cast %152 : vector<1x1x32xf32> to vector<1x32xf32>
    %cst_66 = arith.constant dense<0.000000e+00> : vector<16xf32>
    %154 = vector.multi_reduction <add>, %149, %cst_66 [1] : vector<16x32xf32> to vector<16xf32>
    %155 = vector.shape_cast %154 : vector<16xf32> to vector<16x1xf32>
    %cst_67 = arith.constant 3.200000e+01 : f32
    %156 = vector.broadcast %cst_67 : f32 to vector<16x1xf32>
    %157 = arith.divf %155, %156 : vector<16x1xf32>
    %158 = vector.broadcast %157 : vector<16x1xf32> to vector<16x32xf32>
    %159 = arith.subf %149, %158 : vector<16x32xf32>
    %160 = arith.mulf %159, %159 : vector<16x32xf32>
    %cst_68 = arith.constant dense<0.000000e+00> : vector<16xf32>
    %161 = vector.multi_reduction <add>, %160, %cst_68 [1] : vector<16x32xf32> to vector<16xf32>
    %162 = vector.shape_cast %161 : vector<16xf32> to vector<16x1xf32>
    %cst_69 = arith.constant 0.0322580636 : f32
    %163 = vector.broadcast %cst_69 : f32 to vector<16x1xf32>
    %164 = arith.mulf %162, %163 : vector<16x1xf32>
    %165 = math.sqrt %164 : vector<16x1xf32>
    %cst_70 = arith.constant 9.99999997E-7 : f32
    %166 = vector.broadcast %cst_70 : f32 to vector<16x1xf32>
    %167 = arith.addf %165, %166 : vector<16x1xf32>
    %168 = tpu.reciprocal %167 {approx = true} : vector<16x1xf32> -> vector<16x1xf32>
    %169 = vector.broadcast %168 : vector<16x1xf32> to vector<16x32xf32>
    %170 = arith.mulf %159, %169 : vector<16x32xf32>
    %171 = vector.broadcast %151 : vector<1x32xf32> to vector<16x32xf32>
    %172 = arith.mulf %171, %170 : vector<16x32xf32>
    %173 = vector.broadcast %153 : vector<1x32xf32> to vector<16x32xf32>
    %174 = arith.addf %172, %173 : vector<16x32xf32>
    %c0_71 = arith.constant 0 : index
    %c0_72 = arith.constant 0 : index
    %c0_73 = arith.constant 0 : index
    %175 = vector.load %arg17[%c0_71, %c0_72, %c0_73] : memref<2x32x64xf32, #tpu.memory_space<vmem>>, vector<1x32x64xf32>
    %176 = vector.shape_cast %175 : vector<1x32x64xf32> to vector<32x64xf32>
    %cst_74 = arith.constant dense<0.000000e+00> : vector<16x64xf32>
    %177 = tpu.matmul %174, %176, %cst_74 {dimension_numbers = #tpu.dot_dimension_numbers<[1], [0], [0], [1], [0, 0, 1, 1], [], []>} : vector<16x32xf32>, vector<32x64xf32>, vector<16x64xf32> -> vector<16x64xf32>
    %c0_75 = arith.constant 0 : index
    %c0_76 = arith.constant 0 : index
    %c0_77 = arith.constant 0 : index
    %178 = vector.load %arg18[%c0_75, %c0_76, %c0_77] : memref<2x1x64xf32, #tpu.memory_space<vmem>>, vector<1x1x64xf32>
    %179 = vector.shape_cast %178 : vector<1x1x64xf32> to vector<1x64xf32>
    %180 = vector.broadcast %179 : vector<1x64xf32> to vector<16x64xf32>
    %181 = arith.addf %177, %180 : vector<16x64xf32>
    %cst_78 = arith.constant 0.000000e+00 : f32
    %182 = vector.broadcast %cst_78 : f32 to vector<16x64xf32>
    %183 = arith.maximumf %181, %182 : vector<16x64xf32>
    %c0_79 = arith.constant 0 : index
    %c0_80 = arith.constant 0 : index
    %c0_81 = arith.constant 0 : index
    %184 = vector.load %arg19[%c0_79, %c0_80, %c0_81] : memref<2x64x32xf32, #tpu.memory_space<vmem>>, vector<1x64x32xf32>
    %185 = vector.shape_cast %184 : vector<1x64x32xf32> to vector<64x32xf32>
    %cst_82 = arith.constant dense<0.000000e+00> : vector<16x32xf32>
    %186 = tpu.matmul %183, %185, %cst_82 {dimension_numbers = #tpu.dot_dimension_numbers<[1], [0], [0], [1], [0, 0, 1, 1], [], []>} : vector<16x64xf32>, vector<64x32xf32>, vector<16x32xf32> -> vector<16x32xf32>
    %c0_83 = arith.constant 0 : index
    %c0_84 = arith.constant 0 : index
    %c0_85 = arith.constant 0 : index
    %187 = vector.load %arg20[%c0_83, %c0_84, %c0_85] : memref<2x1x32xf32, #tpu.memory_space<vmem>>, vector<1x1x32xf32>
    %188 = vector.shape_cast %187 : vector<1x1x32xf32> to vector<1x32xf32>
    %189 = vector.broadcast %188 : vector<1x32xf32> to vector<16x32xf32>
    %190 = arith.addf %186, %189 : vector<16x32xf32>
    %191 = arith.addf %174, %190 : vector<16x32xf32>
    %c0_86 = arith.constant 0 : index
    %c0_87 = arith.constant 0 : index
    %c0_88 = arith.constant 0 : index
    %192 = vector.load %arg15[%c0_86, %c0_87, %c0_88] : memref<2x1x32xf32, #tpu.memory_space<vmem>>, vector<1x1x32xf32>
    %193 = vector.shape_cast %192 : vector<1x1x32xf32> to vector<1x32xf32>
    %c0_89 = arith.constant 0 : index
    %c0_90 = arith.constant 0 : index
    %c0_91 = arith.constant 0 : index
    %194 = vector.load %arg16[%c0_89, %c0_90, %c0_91] : memref<2x1x32xf32, #tpu.memory_space<vmem>>, vector<1x1x32xf32>
    %195 = vector.shape_cast %194 : vector<1x1x32xf32> to vector<1x32xf32>
    %cst_92 = arith.constant dense<0.000000e+00> : vector<16xf32>
    %196 = vector.multi_reduction <add>, %191, %cst_92 [1] : vector<16x32xf32> to vector<16xf32>
    %197 = vector.shape_cast %196 : vector<16xf32> to vector<16x1xf32>
    %cst_93 = arith.constant 3.200000e+01 : f32
    %198 = vector.broadcast %cst_93 : f32 to vector<16x1xf32>
    %199 = arith.divf %197, %198 : vector<16x1xf32>
    %200 = vector.broadcast %199 : vector<16x1xf32> to vector<16x32xf32>
    %201 = arith.subf %191, %200 : vector<16x32xf32>
    %202 = arith.mulf %201, %201 : vector<16x32xf32>
    %cst_94 = arith.constant dense<0.000000e+00> : vector<16xf32>
    %203 = vector.multi_reduction <add>, %202, %cst_94 [1] : vector<16x32xf32> to vector<16xf32>
    %204 = vector.shape_cast %203 : vector<16xf32> to vector<16x1xf32>
    %cst_95 = arith.constant 0.0322580636 : f32
    %205 = vector.broadcast %cst_95 : f32 to vector<16x1xf32>
    %206 = arith.mulf %204, %205 : vector<16x1xf32>
    %207 = math.sqrt %206 : vector<16x1xf32>
    %cst_96 = arith.constant 9.99999997E-7 : f32
    %208 = vector.broadcast %cst_96 : f32 to vector<16x1xf32>
    %209 = arith.addf %207, %208 : vector<16x1xf32>
    %210 = tpu.reciprocal %209 {approx = true} : vector<16x1xf32> -> vector<16x1xf32>
    %211 = vector.broadcast %210 : vector<16x1xf32> to vector<16x32xf32>
    %212 = arith.mulf %201, %211 : vector<16x32xf32>
    %213 = vector.broadcast %193 : vector<1x32xf32> to vector<16x32xf32>
    %214 = arith.mulf %213, %212 : vector<16x32xf32>
    %215 = vector.broadcast %195 : vector<1x32xf32> to vector<16x32xf32>
    %216 = arith.addf %214, %215 : vector<16x32xf32>
    %c1 = arith.constant 1 : index
    %c0_97 = arith.constant 0 : index
    %c0_98 = arith.constant 0 : index
    %217 = vector.load %arg6[%c1, %c0_97, %c0_98] : memref<2x32x96xf32, #tpu.memory_space<vmem>>, vector<1x32x96xf32>
    %218 = vector.shape_cast %217 : vector<1x32x96xf32> to vector<32x96xf32>
    %cst_99 = arith.constant dense<0.000000e+00> : vector<16x96xf32>
    %219 = tpu.matmul %216, %218, %cst_99 {dimension_numbers = #tpu.dot_dimension_numbers<[1], [0], [0], [1], [0, 0, 1, 1], [], []>} : vector<16x32xf32>, vector<32x96xf32>, vector<16x96xf32> -> vector<16x96xf32>
    %220 = vector.extract_strided_slice %219 {offsets = [0, 0], sizes = [16, 32], strides = [1, 1]} : vector<16x96xf32> to vector<16x32xf32>
    %221 = vector.extract_strided_slice %219 {offsets = [0, 32], sizes = [16, 32], strides = [1, 1]} : vector<16x96xf32> to vector<16x32xf32>
    %222 = vector.extract_strided_slice %219 {offsets = [0, 64], sizes = [16, 32], strides = [1, 1]} : vector<16x96xf32> to vector<16x32xf32>
    %223 = vector.extract_strided_slice %220 {offsets = [0, 0], sizes = [16, 8], strides = [1, 1]} : vector<16x32xf32> to vector<16x8xf32>
    %224 = vector.extract_strided_slice %220 {offsets = [0, 8], sizes = [16, 8], strides = [1, 1]} : vector<16x32xf32> to vector<16x8xf32>
    %225 = vector.extract_strided_slice %220 {offsets = [0, 16], sizes = [16, 8], strides = [1, 1]} : vector<16x32xf32> to vector<16x8xf32>
    %226 = vector.extract_strided_slice %220 {offsets = [0, 24], sizes = [16, 8], strides = [1, 1]} : vector<16x32xf32> to vector<16x8xf32>
    %227 = tpu.concatenate %223, %224, %225, %226 in 0 : vector<16x8xf32>, vector<16x8xf32>, vector<16x8xf32>, vector<16x8xf32> -> vector<64x8xf32>
    %228 = vector.extract_strided_slice %221 {offsets = [0, 0], sizes = [16, 8], strides = [1, 1]} : vector<16x32xf32> to vector<16x8xf32>
    %229 = vector.extract_strided_slice %221 {offsets = [0, 8], sizes = [16, 8], strides = [1, 1]} : vector<16x32xf32> to vector<16x8xf32>
    %230 = vector.extract_strided_slice %221 {offsets = [0, 16], sizes = [16, 8], strides = [1, 1]} : vector<16x32xf32> to vector<16x8xf32>
    %231 = vector.extract_strided_slice %221 {offsets = [0, 24], sizes = [16, 8], strides = [1, 1]} : vector<16x32xf32> to vector<16x8xf32>
    %232 = tpu.concatenate %228, %229, %230, %231 in 0 : vector<16x8xf32>, vector<16x8xf32>, vector<16x8xf32>, vector<16x8xf32> -> vector<64x8xf32>
    %233 = vector.extract_strided_slice %222 {offsets = [0, 0], sizes = [16, 8], strides = [1, 1]} : vector<16x32xf32> to vector<16x8xf32>
    %234 = vector.extract_strided_slice %222 {offsets = [0, 8], sizes = [16, 8], strides = [1, 1]} : vector<16x32xf32> to vector<16x8xf32>
    %235 = vector.extract_strided_slice %222 {offsets = [0, 16], sizes = [16, 8], strides = [1, 1]} : vector<16x32xf32> to vector<16x8xf32>
    %236 = vector.extract_strided_slice %222 {offsets = [0, 24], sizes = [16, 8], strides = [1, 1]} : vector<16x32xf32> to vector<16x8xf32>
    %237 = tpu.concatenate %233, %234, %235, %236 in 0 : vector<16x8xf32>, vector<16x8xf32>, vector<16x8xf32>, vector<16x8xf32> -> vector<64x8xf32>
    %cst_100 = arith.constant dense<0.000000e+00> : vector<64x64xf32>
    %238 = tpu.matmul %227, %232, %cst_100 {dimension_numbers = #tpu.dot_dimension_numbers<[1], [1], [0], [0], [0, 0, 1, 0], [], []>} : vector<64x8xf32>, vector<64x8xf32>, vector<64x64xf32> -> vector<64x64xf32>
    %cst_101 = arith.constant 1.250000e-01 : f32
    %239 = vector.broadcast %cst_101 : f32 to vector<64x64xf32>
    %240 = arith.mulf %238, %239 : vector<64x64xf32>
    %cst_102 = arith.constant 0.000000e+00 : f32
    %241 = vector.broadcast %cst_102 : f32 to vector<64x64xf32>
    %242 = arith.cmpf oeq, %2, %241 : vector<64x64xf32>
    %cst_103 = arith.constant -1.000000e+09 : f32
    %243 = vector.broadcast %cst_103 : f32 to vector<64x64xf32>
    %244 = arith.select %242, %243, %240 : vector<64x64xi1>, vector<64x64xf32>
    %cst_104 = arith.constant dense<0xFF800000> : vector<64xf32>
    %245 = vector.multi_reduction <maximumf>, %244, %cst_104 [1] : vector<64x64xf32> to vector<64xf32>
    %246 = vector.shape_cast %245 : vector<64xf32> to vector<64x1xf32>
    %247 = vector.broadcast %246 : vector<64x1xf32> to vector<64x64xf32>
    %248 = arith.subf %244, %247 : vector<64x64xf32>
    %249 = math.exp %248 : vector<64x64xf32>
    %cst_105 = arith.constant dense<0.000000e+00> : vector<64xf32>
    %250 = vector.multi_reduction <add>, %249, %cst_105 [1] : vector<64x64xf32> to vector<64xf32>
    %251 = vector.shape_cast %250 : vector<64xf32> to vector<64x1xf32>
    %252 = tpu.reciprocal %251 {approx = true} : vector<64x1xf32> -> vector<64x1xf32>
    %253 = vector.broadcast %252 : vector<64x1xf32> to vector<64x64xf32>
    %254 = arith.mulf %249, %253 : vector<64x64xf32>
    %cst_106 = arith.constant dense<0.000000e+00> : vector<64x8xf32>
    %255 = tpu.matmul %254, %237, %cst_106 {dimension_numbers = #tpu.dot_dimension_numbers<[1], [0], [0], [1], [0, 0, 1, 1], [], []>} : vector<64x64xf32>, vector<64x8xf32>, vector<64x8xf32> -> vector<64x8xf32>
    %256 = vector.extract_strided_slice %255 {offsets = [0, 0], sizes = [16, 8], strides = [1, 1]} : vector<64x8xf32> to vector<16x8xf32>
    %257 = vector.extract_strided_slice %255 {offsets = [16, 0], sizes = [16, 8], strides = [1, 1]} : vector<64x8xf32> to vector<16x8xf32>
    %258 = vector.extract_strided_slice %255 {offsets = [32, 0], sizes = [16, 8], strides = [1, 1]} : vector<64x8xf32> to vector<16x8xf32>
    %259 = vector.extract_strided_slice %255 {offsets = [48, 0], sizes = [16, 8], strides = [1, 1]} : vector<64x8xf32> to vector<16x8xf32>
    %260 = tpu.concatenate %256, %257, %258, %259 in 1 : vector<16x8xf32>, vector<16x8xf32>, vector<16x8xf32>, vector<16x8xf32> -> vector<16x32xf32>
    %c1_107 = arith.constant 1 : index
    %c0_108 = arith.constant 0 : index
    %c0_109 = arith.constant 0 : index
    %261 = vector.load %arg7[%c1_107, %c0_108, %c0_109] : memref<2x32x32xf32, #tpu.memory_space<vmem>>, vector<1x32x32xf32>
    %262 = vector.shape_cast %261 : vector<1x32x32xf32> to vector<32x32xf32>
    %cst_110 = arith.constant dense<0.000000e+00> : vector<16x32xf32>
    %263 = tpu.matmul %260, %262, %cst_110 {dimension_numbers = #tpu.dot_dimension_numbers<[1], [0], [0], [1], [0, 0, 1, 1], [], []>} : vector<16x32xf32>, vector<32x32xf32>, vector<16x32xf32> -> vector<16x32xf32>
    %264 = arith.addf %216, %263 : vector<16x32xf32>
    %c1_111 = arith.constant 1 : index
    %c0_112 = arith.constant 0 : index
    %c0_113 = arith.constant 0 : index
    %265 = vector.load %arg11[%c1_111, %c0_112, %c0_113] : memref<2x1x32xf32, #tpu.memory_space<vmem>>, vector<1x1x32xf32>
    %266 = vector.shape_cast %265 : vector<1x1x32xf32> to vector<1x32xf32>
    %c1_114 = arith.constant 1 : index
    %c0_115 = arith.constant 0 : index
    %c0_116 = arith.constant 0 : index
    %267 = vector.load %arg12[%c1_114, %c0_115, %c0_116] : memref<2x1x32xf32, #tpu.memory_space<vmem>>, vector<1x1x32xf32>
    %268 = vector.shape_cast %267 : vector<1x1x32xf32> to vector<1x32xf32>
    %cst_117 = arith.constant dense<0.000000e+00> : vector<16xf32>
    %269 = vector.multi_reduction <add>, %264, %cst_117 [1] : vector<16x32xf32> to vector<16xf32>
    %270 = vector.shape_cast %269 : vector<16xf32> to vector<16x1xf32>
    %cst_118 = arith.constant 3.200000e+01 : f32
    %271 = vector.broadcast %cst_118 : f32 to vector<16x1xf32>
    %272 = arith.divf %270, %271 : vector<16x1xf32>
    %273 = vector.broadcast %272 : vector<16x1xf32> to vector<16x32xf32>
    %274 = arith.subf %264, %273 : vector<16x32xf32>
    %275 = arith.mulf %274, %274 : vector<16x32xf32>
    %cst_119 = arith.constant dense<0.000000e+00> : vector<16xf32>
    %276 = vector.multi_reduction <add>, %275, %cst_119 [1] : vector<16x32xf32> to vector<16xf32>
    %277 = vector.shape_cast %276 : vector<16xf32> to vector<16x1xf32>
    %cst_120 = arith.constant 0.0322580636 : f32
    %278 = vector.broadcast %cst_120 : f32 to vector<16x1xf32>
    %279 = arith.mulf %277, %278 : vector<16x1xf32>
    %280 = math.sqrt %279 : vector<16x1xf32>
    %cst_121 = arith.constant 9.99999997E-7 : f32
    %281 = vector.broadcast %cst_121 : f32 to vector<16x1xf32>
    %282 = arith.addf %280, %281 : vector<16x1xf32>
    %283 = tpu.reciprocal %282 {approx = true} : vector<16x1xf32> -> vector<16x1xf32>
    %284 = vector.broadcast %283 : vector<16x1xf32> to vector<16x32xf32>
    %285 = arith.mulf %274, %284 : vector<16x32xf32>
    %286 = vector.broadcast %266 : vector<1x32xf32> to vector<16x32xf32>
    %287 = arith.mulf %286, %285 : vector<16x32xf32>
    %288 = vector.broadcast %268 : vector<1x32xf32> to vector<16x32xf32>
    %289 = arith.addf %287, %288 : vector<16x32xf32>
    %c1_122 = arith.constant 1 : index
    %c0_123 = arith.constant 0 : index
    %c0_124 = arith.constant 0 : index
    %290 = vector.load %arg8[%c1_122, %c0_123, %c0_124] : memref<2x32x32xf32, #tpu.memory_space<vmem>>, vector<1x32x32xf32>
    %291 = vector.shape_cast %290 : vector<1x32x32xf32> to vector<32x32xf32>
    %cst_125 = arith.constant dense<0.000000e+00> : vector<16x32xf32>
    %292 = tpu.matmul %289, %291, %cst_125 {dimension_numbers = #tpu.dot_dimension_numbers<[1], [0], [0], [1], [0, 0, 1, 1], [], []>} : vector<16x32xf32>, vector<32x32xf32>, vector<16x32xf32> -> vector<16x32xf32>
    %c1_126 = arith.constant 1 : index
    %c0_127 = arith.constant 0 : index
    %c0_128 = arith.constant 0 : index
    %293 = vector.load %arg9[%c1_126, %c0_127, %c0_128] : memref<2x32x64xf32, #tpu.memory_space<vmem>>, vector<1x32x64xf32>
    %294 = vector.shape_cast %293 : vector<1x32x64xf32> to vector<32x64xf32>
    %cst_129 = arith.constant dense<0.000000e+00> : vector<16x64xf32>
    %295 = tpu.matmul %1, %294, %cst_129 {dimension_numbers = #tpu.dot_dimension_numbers<[1], [0], [0], [1], [0, 0, 1, 1], [], []>} : vector<16x32xf32>, vector<32x64xf32>, vector<16x64xf32> -> vector<16x64xf32>
    %296 = vector.extract_strided_slice %295 {offsets = [0, 0], sizes = [16, 32], strides = [1, 1]} : vector<16x64xf32> to vector<16x32xf32>
    %297 = vector.extract_strided_slice %295 {offsets = [0, 32], sizes = [16, 32], strides = [1, 1]} : vector<16x64xf32> to vector<16x32xf32>
    %298 = vector.extract_strided_slice %292 {offsets = [0, 0], sizes = [16, 8], strides = [1, 1]} : vector<16x32xf32> to vector<16x8xf32>
    %299 = vector.extract_strided_slice %292 {offsets = [0, 8], sizes = [16, 8], strides = [1, 1]} : vector<16x32xf32> to vector<16x8xf32>
    %300 = vector.extract_strided_slice %292 {offsets = [0, 16], sizes = [16, 8], strides = [1, 1]} : vector<16x32xf32> to vector<16x8xf32>
    %301 = vector.extract_strided_slice %292 {offsets = [0, 24], sizes = [16, 8], strides = [1, 1]} : vector<16x32xf32> to vector<16x8xf32>
    %302 = tpu.concatenate %298, %299, %300, %301 in 0 : vector<16x8xf32>, vector<16x8xf32>, vector<16x8xf32>, vector<16x8xf32> -> vector<64x8xf32>
    %303 = vector.extract_strided_slice %296 {offsets = [0, 0], sizes = [16, 8], strides = [1, 1]} : vector<16x32xf32> to vector<16x8xf32>
    %304 = vector.extract_strided_slice %296 {offsets = [0, 8], sizes = [16, 8], strides = [1, 1]} : vector<16x32xf32> to vector<16x8xf32>
    %305 = vector.extract_strided_slice %296 {offsets = [0, 16], sizes = [16, 8], strides = [1, 1]} : vector<16x32xf32> to vector<16x8xf32>
    %306 = vector.extract_strided_slice %296 {offsets = [0, 24], sizes = [16, 8], strides = [1, 1]} : vector<16x32xf32> to vector<16x8xf32>
    %307 = tpu.concatenate %303, %304, %305, %306 in 0 : vector<16x8xf32>, vector<16x8xf32>, vector<16x8xf32>, vector<16x8xf32> -> vector<64x8xf32>
    %308 = vector.extract_strided_slice %297 {offsets = [0, 0], sizes = [16, 8], strides = [1, 1]} : vector<16x32xf32> to vector<16x8xf32>
    %309 = vector.extract_strided_slice %297 {offsets = [0, 8], sizes = [16, 8], strides = [1, 1]} : vector<16x32xf32> to vector<16x8xf32>
    %310 = vector.extract_strided_slice %297 {offsets = [0, 16], sizes = [16, 8], strides = [1, 1]} : vector<16x32xf32> to vector<16x8xf32>
    %311 = vector.extract_strided_slice %297 {offsets = [0, 24], sizes = [16, 8], strides = [1, 1]} : vector<16x32xf32> to vector<16x8xf32>
    %312 = tpu.concatenate %308, %309, %310, %311 in 0 : vector<16x8xf32>, vector<16x8xf32>, vector<16x8xf32>, vector<16x8xf32> -> vector<64x8xf32>
    %cst_130 = arith.constant dense<0.000000e+00> : vector<64x64xf32>
    %313 = tpu.matmul %302, %307, %cst_130 {dimension_numbers = #tpu.dot_dimension_numbers<[1], [1], [0], [0], [0, 0, 1, 0], [], []>} : vector<64x8xf32>, vector<64x8xf32>, vector<64x64xf32> -> vector<64x64xf32>
    %cst_131 = arith.constant 1.250000e-01 : f32
    %314 = vector.broadcast %cst_131 : f32 to vector<64x64xf32>
    %315 = arith.mulf %313, %314 : vector<64x64xf32>
    %cst_132 = arith.constant 0.000000e+00 : f32
    %316 = vector.broadcast %cst_132 : f32 to vector<64x64xf32>
    %317 = arith.cmpf oeq, %3, %316 : vector<64x64xf32>
    %cst_133 = arith.constant -1.000000e+09 : f32
    %318 = vector.broadcast %cst_133 : f32 to vector<64x64xf32>
    %319 = arith.select %317, %318, %315 : vector<64x64xi1>, vector<64x64xf32>
    %cst_134 = arith.constant dense<0xFF800000> : vector<64xf32>
    %320 = vector.multi_reduction <maximumf>, %319, %cst_134 [1] : vector<64x64xf32> to vector<64xf32>
    %321 = vector.shape_cast %320 : vector<64xf32> to vector<64x1xf32>
    %322 = vector.broadcast %321 : vector<64x1xf32> to vector<64x64xf32>
    %323 = arith.subf %319, %322 : vector<64x64xf32>
    %324 = math.exp %323 : vector<64x64xf32>
    %cst_135 = arith.constant dense<0.000000e+00> : vector<64xf32>
    %325 = vector.multi_reduction <add>, %324, %cst_135 [1] : vector<64x64xf32> to vector<64xf32>
    %326 = vector.shape_cast %325 : vector<64xf32> to vector<64x1xf32>
    %327 = tpu.reciprocal %326 {approx = true} : vector<64x1xf32> -> vector<64x1xf32>
    %328 = vector.broadcast %327 : vector<64x1xf32> to vector<64x64xf32>
    %329 = arith.mulf %324, %328 : vector<64x64xf32>
    %cst_136 = arith.constant dense<0.000000e+00> : vector<64x8xf32>
    %330 = tpu.matmul %329, %312, %cst_136 {dimension_numbers = #tpu.dot_dimension_numbers<[1], [0], [0], [1], [0, 0, 1, 1], [], []>} : vector<64x64xf32>, vector<64x8xf32>, vector<64x8xf32> -> vector<64x8xf32>
    %331 = vector.extract_strided_slice %330 {offsets = [0, 0], sizes = [16, 8], strides = [1, 1]} : vector<64x8xf32> to vector<16x8xf32>
    %332 = vector.extract_strided_slice %330 {offsets = [16, 0], sizes = [16, 8], strides = [1, 1]} : vector<64x8xf32> to vector<16x8xf32>
    %333 = vector.extract_strided_slice %330 {offsets = [32, 0], sizes = [16, 8], strides = [1, 1]} : vector<64x8xf32> to vector<16x8xf32>
    %334 = vector.extract_strided_slice %330 {offsets = [48, 0], sizes = [16, 8], strides = [1, 1]} : vector<64x8xf32> to vector<16x8xf32>
    %335 = tpu.concatenate %331, %332, %333, %334 in 1 : vector<16x8xf32>, vector<16x8xf32>, vector<16x8xf32>, vector<16x8xf32> -> vector<16x32xf32>
    %c1_137 = arith.constant 1 : index
    %c0_138 = arith.constant 0 : index
    %c0_139 = arith.constant 0 : index
    %336 = vector.load %arg10[%c1_137, %c0_138, %c0_139] : memref<2x32x32xf32, #tpu.memory_space<vmem>>, vector<1x32x32xf32>
    %337 = vector.shape_cast %336 : vector<1x32x32xf32> to vector<32x32xf32>
    %cst_140 = arith.constant dense<0.000000e+00> : vector<16x32xf32>
    %338 = tpu.matmul %335, %337, %cst_140 {dimension_numbers = #tpu.dot_dimension_numbers<[1], [0], [0], [1], [0, 0, 1, 1], [], []>} : vector<16x32xf32>, vector<32x32xf32>, vector<16x32xf32> -> vector<16x32xf32>
    %339 = arith.addf %289, %338 : vector<16x32xf32>
    %c1_141 = arith.constant 1 : index
    %c0_142 = arith.constant 0 : index
    %c0_143 = arith.constant 0 : index
    %340 = vector.load %arg13[%c1_141, %c0_142, %c0_143] : memref<2x1x32xf32, #tpu.memory_space<vmem>>, vector<1x1x32xf32>
    %341 = vector.shape_cast %340 : vector<1x1x32xf32> to vector<1x32xf32>
    %c1_144 = arith.constant 1 : index
    %c0_145 = arith.constant 0 : index
    %c0_146 = arith.constant 0 : index
    %342 = vector.load %arg14[%c1_144, %c0_145, %c0_146] : memref<2x1x32xf32, #tpu.memory_space<vmem>>, vector<1x1x32xf32>
    %343 = vector.shape_cast %342 : vector<1x1x32xf32> to vector<1x32xf32>
    %cst_147 = arith.constant dense<0.000000e+00> : vector<16xf32>
    %344 = vector.multi_reduction <add>, %339, %cst_147 [1] : vector<16x32xf32> to vector<16xf32>
    %345 = vector.shape_cast %344 : vector<16xf32> to vector<16x1xf32>
    %cst_148 = arith.constant 3.200000e+01 : f32
    %346 = vector.broadcast %cst_148 : f32 to vector<16x1xf32>
    %347 = arith.divf %345, %346 : vector<16x1xf32>
    %348 = vector.broadcast %347 : vector<16x1xf32> to vector<16x32xf32>
    %349 = arith.subf %339, %348 : vector<16x32xf32>
    %350 = arith.mulf %349, %349 : vector<16x32xf32>
    %cst_149 = arith.constant dense<0.000000e+00> : vector<16xf32>
    %351 = vector.multi_reduction <add>, %350, %cst_149 [1] : vector<16x32xf32> to vector<16xf32>
    %352 = vector.shape_cast %351 : vector<16xf32> to vector<16x1xf32>
    %cst_150 = arith.constant 0.0322580636 : f32
    %353 = vector.broadcast %cst_150 : f32 to vector<16x1xf32>
    %354 = arith.mulf %352, %353 : vector<16x1xf32>
    %355 = math.sqrt %354 : vector<16x1xf32>
    %cst_151 = arith.constant 9.99999997E-7 : f32
    %356 = vector.broadcast %cst_151 : f32 to vector<16x1xf32>
    %357 = arith.addf %355, %356 : vector<16x1xf32>
    %358 = tpu.reciprocal %357 {approx = true} : vector<16x1xf32> -> vector<16x1xf32>
    %359 = vector.broadcast %358 : vector<16x1xf32> to vector<16x32xf32>
    %360 = arith.mulf %349, %359 : vector<16x32xf32>
    %361 = vector.broadcast %341 : vector<1x32xf32> to vector<16x32xf32>
    %362 = arith.mulf %361, %360 : vector<16x32xf32>
    %363 = vector.broadcast %343 : vector<1x32xf32> to vector<16x32xf32>
    %364 = arith.addf %362, %363 : vector<16x32xf32>
    %c1_152 = arith.constant 1 : index
    %c0_153 = arith.constant 0 : index
    %c0_154 = arith.constant 0 : index
    %365 = vector.load %arg17[%c1_152, %c0_153, %c0_154] : memref<2x32x64xf32, #tpu.memory_space<vmem>>, vector<1x32x64xf32>
    %366 = vector.shape_cast %365 : vector<1x32x64xf32> to vector<32x64xf32>
    %cst_155 = arith.constant dense<0.000000e+00> : vector<16x64xf32>
    %367 = tpu.matmul %364, %366, %cst_155 {dimension_numbers = #tpu.dot_dimension_numbers<[1], [0], [0], [1], [0, 0, 1, 1], [], []>} : vector<16x32xf32>, vector<32x64xf32>, vector<16x64xf32> -> vector<16x64xf32>
    %c1_156 = arith.constant 1 : index
    %c0_157 = arith.constant 0 : index
    %c0_158 = arith.constant 0 : index
    %368 = vector.load %arg18[%c1_156, %c0_157, %c0_158] : memref<2x1x64xf32, #tpu.memory_space<vmem>>, vector<1x1x64xf32>
    %369 = vector.shape_cast %368 : vector<1x1x64xf32> to vector<1x64xf32>
    %370 = vector.broadcast %369 : vector<1x64xf32> to vector<16x64xf32>
    %371 = arith.addf %367, %370 : vector<16x64xf32>
    %cst_159 = arith.constant 0.000000e+00 : f32
    %372 = vector.broadcast %cst_159 : f32 to vector<16x64xf32>
    %373 = arith.maximumf %371, %372 : vector<16x64xf32>
    %c1_160 = arith.constant 1 : index
    %c0_161 = arith.constant 0 : index
    %c0_162 = arith.constant 0 : index
    %374 = vector.load %arg19[%c1_160, %c0_161, %c0_162] : memref<2x64x32xf32, #tpu.memory_space<vmem>>, vector<1x64x32xf32>
    %375 = vector.shape_cast %374 : vector<1x64x32xf32> to vector<64x32xf32>
    %cst_163 = arith.constant dense<0.000000e+00> : vector<16x32xf32>
    %376 = tpu.matmul %373, %375, %cst_163 {dimension_numbers = #tpu.dot_dimension_numbers<[1], [0], [0], [1], [0, 0, 1, 1], [], []>} : vector<16x64xf32>, vector<64x32xf32>, vector<16x32xf32> -> vector<16x32xf32>
    %c1_164 = arith.constant 1 : index
    %c0_165 = arith.constant 0 : index
    %c0_166 = arith.constant 0 : index
    %377 = vector.load %arg20[%c1_164, %c0_165, %c0_166] : memref<2x1x32xf32, #tpu.memory_space<vmem>>, vector<1x1x32xf32>
    %378 = vector.shape_cast %377 : vector<1x1x32xf32> to vector<1x32xf32>
    %379 = vector.broadcast %378 : vector<1x32xf32> to vector<16x32xf32>
    %380 = arith.addf %376, %379 : vector<16x32xf32>
    %381 = arith.addf %364, %380 : vector<16x32xf32>
    %c1_167 = arith.constant 1 : index
    %c0_168 = arith.constant 0 : index
    %c0_169 = arith.constant 0 : index
    %382 = vector.load %arg15[%c1_167, %c0_168, %c0_169] : memref<2x1x32xf32, #tpu.memory_space<vmem>>, vector<1x1x32xf32>
    %383 = vector.shape_cast %382 : vector<1x1x32xf32> to vector<1x32xf32>
    %c1_170 = arith.constant 1 : index
    %c0_171 = arith.constant 0 : index
    %c0_172 = arith.constant 0 : index
    %384 = vector.load %arg16[%c1_170, %c0_171, %c0_172] : memref<2x1x32xf32, #tpu.memory_space<vmem>>, vector<1x1x32xf32>
    %385 = vector.shape_cast %384 : vector<1x1x32xf32> to vector<1x32xf32>
    %cst_173 = arith.constant dense<0.000000e+00> : vector<16xf32>
    %386 = vector.multi_reduction <add>, %381, %cst_173 [1] : vector<16x32xf32> to vector<16xf32>
    %387 = vector.shape_cast %386 : vector<16xf32> to vector<16x1xf32>
    %cst_174 = arith.constant 3.200000e+01 : f32
    %388 = vector.broadcast %cst_174 : f32 to vector<16x1xf32>
    %389 = arith.divf %387, %388 : vector<16x1xf32>
    %390 = vector.broadcast %389 : vector<16x1xf32> to vector<16x32xf32>
    %391 = arith.subf %381, %390 : vector<16x32xf32>
    %392 = arith.mulf %391, %391 : vector<16x32xf32>
    %cst_175 = arith.constant dense<0.000000e+00> : vector<16xf32>
    %393 = vector.multi_reduction <add>, %392, %cst_175 [1] : vector<16x32xf32> to vector<16xf32>
    %394 = vector.shape_cast %393 : vector<16xf32> to vector<16x1xf32>
    %cst_176 = arith.constant 0.0322580636 : f32
    %395 = vector.broadcast %cst_176 : f32 to vector<16x1xf32>
    %396 = arith.mulf %394, %395 : vector<16x1xf32>
    %397 = math.sqrt %396 : vector<16x1xf32>
    %cst_177 = arith.constant 9.99999997E-7 : f32
    %398 = vector.broadcast %cst_177 : f32 to vector<16x1xf32>
    %399 = arith.addf %397, %398 : vector<16x1xf32>
    %400 = tpu.reciprocal %399 {approx = true} : vector<16x1xf32> -> vector<16x1xf32>
    %401 = vector.broadcast %400 : vector<16x1xf32> to vector<16x32xf32>
    %402 = arith.mulf %391, %401 : vector<16x32xf32>
    %403 = vector.broadcast %383 : vector<1x32xf32> to vector<16x32xf32>
    %404 = arith.mulf %403, %402 : vector<16x32xf32>
    %405 = vector.broadcast %385 : vector<1x32xf32> to vector<16x32xf32>
    %406 = arith.addf %404, %405 : vector<16x32xf32>
    %c0_178 = arith.constant 0 : index
    %c0_179 = arith.constant 0 : index
    %407 = vector.load %arg21[%c0_178, %c0_179] : memref<32x16xf32, #tpu.memory_space<vmem>>, vector<32x16xf32>
    %cst_180 = arith.constant dense<0.000000e+00> : vector<16x16xf32>
    %408 = tpu.matmul %406, %407, %cst_180 {dimension_numbers = #tpu.dot_dimension_numbers<[1], [0], [0], [1], [0, 0, 1, 1], [], []>} : vector<16x32xf32>, vector<32x16xf32>, vector<16x16xf32> -> vector<16x16xf32>
    %c0_181 = arith.constant 0 : index
    %c0_182 = arith.constant 0 : index
    %409 = vector.load %arg22[%c0_181, %c0_182] : memref<1x16xf32, #tpu.memory_space<vmem>>, vector<1x16xf32>
    %410 = vector.broadcast %409 : vector<1x16xf32> to vector<16x16xf32>
    %411 = arith.addf %408, %410 : vector<16x16xf32>
    %c0_183 = arith.constant 0 : index
    %c0_184 = arith.constant 0 : index
    %412 = vector.load %arg23[%c0_183, %c0_184] : memref<16x16xf32, #tpu.memory_space<vmem>>, vector<16x16xf32>
    tpu.vector_store %arg23[%c0_183, %c0_184], %411 {strides = array<i32>} : memref<16x16xf32, #tpu.memory_space<vmem>>, vector<16x16xf32>,
    return
  }
}

</mosaic_0001>

<llo_original>
// kernel: tpu_custom_call.1
$region0: #{tpu_custom_call.1}
  #allocation0 [shape = 'u32[]', space=smem, size = 0x4, offset = 0x4, fixed_abs, tag = 'smem constant byte address 0x4 - core index']
  #allocation1 [shape = 'u32[72,128]{1,0:T(1,128)}', space=vmem, size = 0x9000, scoped, tag = 'internal scratch']
  %s0 = inlined_call_operand.hbm [shape: f32[16,32], index: 0, kind: input, shape index: {}]
  %s1 = inlined_call_operand.hbm [shape: f32[16,32], index: 1, kind: input, shape index: {}]
  %s2 = inlined_call_operand.vmem [shape: f32[64,64], index: 2, kind: input, shape index: {}]
  %s3 = inlined_call_operand.vmem [shape: f32[64,64], index: 3, kind: input, shape index: {}]
  %s4 = inlined_call_operand.hbm [shape: f32[1,32], index: 4, kind: input, shape index: {}]
  %s5 = inlined_call_operand.hbm [shape: f32[1,32], index: 5, kind: input, shape index: {}]
  %s6 = inlined_call_operand.vmem [shape: f32[2,32,96], index: 6, kind: input, shape index: {}]
  %s7 = inlined_call_operand.hbm [shape: f32[2,32,32], index: 7, kind: input, shape index: {}]
  %s8 = inlined_call_operand.hbm [shape: f32[2,32,32], index: 8, kind: input, shape index: {}]
  %s9 = inlined_call_operand.hbm [shape: f32[2,32,64], index: 9, kind: input, shape index: {}]
  %s10 = inlined_call_operand.hbm [shape: f32[2,32,32], index: 10, kind: input, shape index: {}]
  %s11 = inlined_call_operand.vmem [shape: f32[2,1,32], index: 11, kind: input, shape index: {}]
  %s12 = inlined_call_operand.hbm [shape: f32[2,1,32], index: 12, kind: input, shape index: {}]
  %s13 = inlined_call_operand.hbm [shape: f32[2,1,32], index: 13, kind: input, shape index: {}]
  %s14 = inlined_call_operand.hbm [shape: f32[2,1,32], index: 14, kind: input, shape index: {}]
  %s15 = inlined_call_operand.hbm [shape: f32[2,1,32], index: 15, kind: input, shape index: {}]
  %s16 = inlined_call_operand.hbm [shape: f32[2,1,32], index: 16, kind: input, shape index: {}]
  %s17 = inlined_call_operand.hbm [shape: f32[2,32,64], index: 17, kind: input, shape index: {}]
  %s18 = inlined_call_operand.hbm [shape: f32[2,1,64], index: 18, kind: input, shape index: {}]
  %s19 = inlined_call_operand.vmem [shape: f32[2,64,32], index: 19, kind: input, shape index: {}]
  %s20 = inlined_call_operand.hbm [shape: f32[2,1,32], index: 20, kind: input, shape index: {}]
  %s21 = inlined_call_operand.vmem [shape: f32[32,16], index: 21, kind: input, shape index: {}]
  %s22 = inlined_call_operand.vmem [shape: f32[1,16], index: 22, kind: input, shape index: {}]
  %s23 = inlined_call_operand.hbm [shape: f32[16,16], index: 23, kind: output, shape index: {}]
  %s24 = sld [smem:[#allocation0]]
  $region166: #{tpu_custom_call.1} parent=0
    _
  %s26 = ssub.s32 1, %s24
  %s27 = scalar_select 0, %s26, %s24
  $region1: #{tpu_custom_call.1} parent=0
    #allocation2 [shape = 'u8[8192]{0}', space=vmem, size = 0x2000, scoped, tag = 'input window, operand 0, single buffered']
    #allocation3 [shape = 's32[1]{0}', space=sflag, size = 0x4, scoped, tag = 'scoped memory for tpu_custom_call.1']
    #allocation4 [shape = 's32[1]{0}', space=sflag, size = 0x4, scoped, tag = 'scoped memory for tpu_custom_call.1']
    #allocation5 [shape = 'u8[8192]{0}', space=vmem, size = 0x2000, scoped, tag = 'input window, operand 1, single buffered']
    #allocation6 [shape = 's32[1]{0}', space=sflag, size = 0x4, scoped, tag = 'scoped memory for tpu_custom_call.1']
    #allocation7 [shape = 'u8[512]{0}', space=vmem, size = 0x400, scoped, tag = 'input window, operand 4, single buffered']
    #allocation8 [shape = 'u8[512]{0}', space=vmem, size = 0x400, scoped, tag = 'input window, operand 5, single buffered']
    #allocation9 [shape = 's32[1]{0}', space=sflag, size = 0x4, scoped, tag = 'scoped memory for tpu_custom_call.1']
    #allocation10 [shape = 'u8[32768]{0}', space=vmem, size = 0x8000, scoped, tag = 'input window, operand 7, single buffered']
    #allocation11 [shape = 'u8[32768]{0}', space=vmem, size = 0x8000, scoped, tag = 'input window, operand 8, single buffered']
    #allocation12 [shape = 's32[1]{0}', space=sflag, size = 0x4, scoped, tag = 'scoped memory for tpu_custom_call.1']
    #allocation13 [shape = 'u8[32768]{0}', space=vmem, size = 0x8000, scoped, tag = 'input window, operand 9, single buffered']
    #allocation14 [shape = 'u8[32768]{0}', space=vmem, size = 0x8000, scoped, tag = 'input window, operand 10, single buffered']
    #allocation15 [shape = 's32[1]{0}', space=sflag, size = 0x4, scoped, tag = 'scoped memory for tpu_custom_call.1']
    #allocation16 [shape = 'u8[1024]{0}', space=vmem, size = 0x400, scoped, tag = 'input window, operand 12, single buffered']
    #allocation17 [shape = 'u8[1024]{0}', space=vmem, size = 0x400, scoped, tag = 'input window, operand 13, single buffered']
    #allocation18 [shape = 's32[1]{0}', space=sflag, size = 0x4, scoped, tag = 'scoped memory for tpu_custom_call.1']
    #allocation19 [shape = 'u8[1024]{0}', space=vmem, size = 0x400, scoped, tag = 'input window, operand 14, single buffered']
    #allocation20 [shape = 'u8[1024]{0}', space=vmem, size = 0x400, scoped, tag = 'input window, operand 15, single buffered']
    #allocation21 [shape = 's32[1]{0}', space=sflag, size = 0x4, scoped, tag = 'scoped memory for tpu_custom_call.1']
    #allocation22 [shape = 'u8[1024]{0}', space=vmem, size = 0x400, scoped, tag = 'input window, operand 16, single buffered']
    #allocation23 [shape = 'u8[32768]{0}', space=vmem, size = 0x8000, scoped, tag = 'input window, operand 17, single buffered']
    #allocation24 [shape = 's32[1]{0}', space=sflag, size = 0x4, scoped, tag = 'scoped memory for tpu_custom_call.1']
    #allocation25 [shape = 'u8[1024]{0}', space=vmem, size = 0x400, scoped, tag = 'input window, operand 18, single buffered']
    #allocation26 [shape = 'u8[1024]{0}', space=vmem, size = 0x400, scoped, tag = 'input window, operand 20, single buffered']
    #allocation27 [shape = 's32[1]{0}', space=sflag, size = 0x4, scoped, tag = 'scoped memory for tpu_custom_call.1']
    #allocation28 [shape = 'u8[8192]{0}', space=vmem, size = 0x2000, scoped, tag = 'output window, operand 0, single buffered']
    %28 = vsyncpa [#allocation3], 0
    %29 = vsyncpa [#allocation6], 0
    %30 = vsyncpa [#allocation9], 0
    %31 = vsyncpa [#allocation12], 0
    %32 = vsyncpa [#allocation15], 0
    %33 = vsyncpa [#allocation18], 0
    %34 = vsyncpa [#allocation21], 0
    %35 = vsyncpa [#allocation24], 0
    %36 = vsyncpa [#allocation27], 0
    %37 = vsyncpa [#allocation4], 0
    // Predicated region
    $region2: #{tpu_custom_call.1} parent=1 // pred_check
      _
    $region3: #{tpu_custom_call.1} parent=1 // pred_check_branch
      %39 = sbr.rel (0) target = $region5
    $region4: #{tpu_custom_call.1} parent=1 // pred_region
      %41 = vsyncadd [#allocation3], 0
      %s42 = sshll.u32 %s0, 4
      %s43 = int_to_ptr.hbm [resolvable:$true] %s42
      %s44 = sshll.u32 [#allocation2], 4
      %s45 = int_to_ptr.vmem [resolvable:$true] %s44
      %50 = dma.hbm_to_vmem [thread:$0]  %s43, 256, %s45, [#allocation3], 128, 128, 8
    $region5: #{tpu_custom_call.1} parent=1 // pred_fallthru
      _
    // Predicated region
    $region6: #{tpu_custom_call.1} parent=1 // pred_check
      _
    $region7: #{tpu_custom_call.1} parent=1 // pred_check_branch
      %52 = sbr.rel (0) target = $region9
    $region8: #{tpu_custom_call.1} parent=1 // pred_region
      %54 = vsyncadd [#allocation6], 0
      %s55 = sshll.u32 %s1, 4
      %s56 = int_to_ptr.hbm [resolvable:$true] %s55
      %s57 = sshll.u32 [#allocation5], 4
      %s58 = int_to_ptr.vmem [resolvable:$true] %s57
      %63 = dma.hbm_to_vmem [thread:$0]  %s56, 256, %s58, [#allocation6], 128, 128, 8
    $region9: #{tpu_custom_call.1} parent=1 // pred_fallthru
      _
    // Predicated region
    $region10: #{tpu_custom_call.1} parent=1 // pred_check
      _
    $region11: #{tpu_custom_call.1} parent=1 // pred_check_branch
      %65 = sbr.rel (0) target = $region13
    $region12: #{tpu_custom_call.1} parent=1 // pred_region
      _
    $region13: #{tpu_custom_call.1} parent=1 // pred_fallthru
      _
    // Predicated region
    $region14: #{tpu_custom_call.1} parent=1 // pred_check
      _
    $region15: #{tpu_custom_call.1} parent=1 // pred_check_branch
      %67 = sbr.rel (0) target = $region17
    $region16: #{tpu_custom_call.1} parent=1 // pred_region
      _
    $region17: #{tpu_custom_call.1} parent=1 // pred_fallthru
      _
    // Predicated region
    $region18: #{tpu_custom_call.1} parent=1 // pred_check
      _
    $region19: #{tpu_custom_call.1} parent=1 // pred_check_branch
      %69 = sbr.rel (0) target = $region21
    $region20: #{tpu_custom_call.1} parent=1 // pred_region
      %71 = vsyncadd [#allocation6], 0
      %s73 = sshll.u32 %s4, 4
      %s74 = int_to_ptr.hbm [resolvable:$true] %s73
      %s75 = sshll.u32 [#allocation7], 4
      %s76 = int_to_ptr.vmem [resolvable:$true] %s75
      %78 = dma.hbm_to_vmem [thread:$0]  %s74, 16, %s76, [#allocation6]
    $region21: #{tpu_custom_call.1} parent=1 // pred_fallthru
      _
    // Predicated region
    $region22: #{tpu_custom_call.1} parent=1 // pred_check
      _
    $region23: #{tpu_custom_call.1} parent=1 // pred_check_branch
      %80 = sbr.rel (0) target = $region25
    $region24: #{tpu_custom_call.1} parent=1 // pred_region
      %82 = vsyncadd [#allocation9], 0
      %s84 = sshll.u32 %s5, 4
      %s85 = int_to_ptr.hbm [resolvable:$true] %s84
      %s86 = sshll.u32 [#allocation8], 4
      %s87 = int_to_ptr.vmem [resolvable:$true] %s86
      %89 = dma.hbm_to_vmem [thread:$0]  %s85, 16, %s87, [#allocation9]
    $region25: #{tpu_custom_call.1} parent=1 // pred_fallthru
      _
    // Predicated region
    $region26: #{tpu_custom_call.1} parent=1 // pred_check
      _
    $region27: #{tpu_custom_call.1} parent=1 // pred_check_branch
      %91 = sbr.rel (0) target = $region29
    $region28: #{tpu_custom_call.1} parent=1 // pred_region
      _
    $region29: #{tpu_custom_call.1} parent=1 // pred_fallthru
      _
    // Predicated region
    $region30: #{tpu_custom_call.1} parent=1 // pred_check
      _
    $region31: #{tpu_custom_call.1} parent=1 // pred_check_branch
      %93 = sbr.rel (0) target = $region33
    $region32: #{tpu_custom_call.1} parent=1 // pred_region
      %95 = vsyncadd [#allocation9], 0
      %s96 = sshll.u32 %s7, 4
      %s97 = int_to_ptr.hbm [resolvable:$true] %s96
      %s98 = sshll.u32 [#allocation10], 4
      %s99 = int_to_ptr.vmem [resolvable:$true] %s98
      %104 = dma.hbm_to_vmem [thread:$0]  %s97, 1024, %s99, [#allocation9], 128, 128, 8
    $region33: #{tpu_custom_call.1} parent=1 // pred_fallthru
      _
    // Predicated region
    $region34: #{tpu_custom_call.1} parent=1 // pred_check
      _
    $region35: #{tpu_custom_call.1} parent=1 // pred_check_branch
      %106 = sbr.rel (0) target = $region37
    $region36: #{tpu_custom_call.1} parent=1 // pred_region
      %108 = vsyncadd [#allocation12], 0
      %s109 = sshll.u32 %s8, 4
      %s110 = int_to_ptr.hbm [resolvable:$true] %s109
      %s111 = sshll.u32 [#allocation11], 4
      %s112 = int_to_ptr.vmem [resolvable:$true] %s111
      %117 = dma.hbm_to_vmem [thread:$0]  %s110, 1024, %s112, [#allocation12], 128, 128, 8
    $region37: #{tpu_custom_call.1} parent=1 // pred_fallthru
      _
    // Predicated region
    $region38: #{tpu_custom_call.1} parent=1 // pred_check
      _
    $region39: #{tpu_custom_call.1} parent=1 // pred_check_branch
      %119 = sbr.rel (0) target = $region41
    $region40: #{tpu_custom_call.1} parent=1 // pred_region
      %121 = vsyncadd [#allocation12], 0
      %s122 = sshll.u32 %s9, 4
      %s123 = int_to_ptr.hbm [resolvable:$true] %s122
      %s124 = sshll.u32 [#allocation13], 4
      %s125 = int_to_ptr.vmem [resolvable:$true] %s124
      %130 = dma.hbm_to_vmem [thread:$0]  %s123, 1024, %s125, [#allocation12], 128, 128, 8
    $region41: #{tpu_custom_call.1} parent=1 // pred_fallthru
      _
    // Predicated region
    $region42: #{tpu_custom_call.1} parent=1 // pred_check
      _
    $region43: #{tpu_custom_call.1} parent=1 // pred_check_branch
      %132 = sbr.rel (0) target = $region45
    $region44: #{tpu_custom_call.1} parent=1 // pred_region
      %134 = vsyncadd [#allocation15], 0
      %s135 = sshll.u32 %s10, 4
      %s136 = int_to_ptr.hbm [resolvable:$true] %s135
      %s137 = sshll.u32 [#allocation14], 4
      %s138 = int_to_ptr.vmem [resolvable:$true] %s137
      %143 = dma.hbm_to_vmem [thread:$0]  %s136, 1024, %s138, [#allocation15], 128, 128, 8
    $region45: #{tpu_custom_call.1} parent=1 // pred_fallthru
      _
    // Predicated region
    $region46: #{tpu_custom_call.1} parent=1 // pred_check
      _
    $region47: #{tpu_custom_call.1} parent=1 // pred_check_branch
      %145 = sbr.rel (0) target = $region49
    $region48: #{tpu_custom_call.1} parent=1 // pred_region
      _
    $region49: #{tpu_custom_call.1} parent=1 // pred_fallthru
      _
    // Predicated region
    $region50: #{tpu_custom_call.1} parent=1 // pred_check
      _
    $region51: #{tpu_custom_call.1} parent=1 // pred_check_branch
      %147 = sbr.rel (0) target = $region53
    $region52: #{tpu_custom_call.1} parent=1 // pred_region
      %149 = vsyncadd [#allocation15], 0
      %s150 = sshll.u32 %s12, 4
      %s151 = int_to_ptr.hbm [resolvable:$true] %s150
      %s152 = sshll.u32 [#allocation16], 4
      %s153 = int_to_ptr.vmem [resolvable:$true] %s152
      %158 = dma.hbm_to_vmem [thread:$0]  %s151, 32, %s153, [#allocation15], 16, 16, 1
    $region53: #{tpu_custom_call.1} parent=1 // pred_fallthru
      _
    // Predicated region
    $region54: #{tpu_custom_call.1} parent=1 // pred_check
      _
    $region55: #{tpu_custom_call.1} parent=1 // pred_check_branch
      %160 = sbr.rel (0) target = $region57
    $region56: #{tpu_custom_call.1} parent=1 // pred_region
      %162 = vsyncadd [#allocation18], 0
      %s163 = sshll.u32 %s13, 4
      %s164 = int_to_ptr.hbm [resolvable:$true] %s163
      %s165 = sshll.u32 [#allocation17], 4
      %s166 = int_to_ptr.vmem [resolvable:$true] %s165
      %171 = dma.hbm_to_vmem [thread:$0]  %s164, 32, %s166, [#allocation18], 16, 16, 1
    $region57: #{tpu_custom_call.1} parent=1 // pred_fallthru
      _
    // Predicated region
    $region58: #{tpu_custom_call.1} parent=1 // pred_check
      _
    $region59: #{tpu_custom_call.1} parent=1 // pred_check_branch
      %173 = sbr.rel (0) target = $region61
    $region60: #{tpu_custom_call.1} parent=1 // pred_region
      %175 = vsyncadd [#allocation18], 0
      %s176 = sshll.u32 %s14, 4
      %s177 = int_to_ptr.hbm [resolvable:$true] %s176
      %s178 = sshll.u32 [#allocation19], 4
      %s179 = int_to_ptr.vmem [resolvable:$true] %s178
      %184 = dma.hbm_to_vmem [thread:$0]  %s177, 32, %s179, [#allocation18], 16, 16, 1
    $region61: #{tpu_custom_call.1} parent=1 // pred_fallthru
      _
    // Predicated region
    $region62: #{tpu_custom_call.1} parent=1 // pred_check
      _
    $region63: #{tpu_custom_call.1} parent=1 // pred_check_branch
      %186 = sbr.rel (0) target = $region65
    $region64: #{tpu_custom_call.1} parent=1 // pred_region
      %188 = vsyncadd [#allocation21], 0
      %s189 = sshll.u32 %s15, 4
      %s190 = int_to_ptr.hbm [resolvable:$true] %s189
      %s191 = sshll.u32 [#allocation20], 4
      %s192 = int_to_ptr.vmem [resolvable:$true] %s191
      %197 = dma.hbm_to_vmem [thread:$0]  %s190, 32, %s192, [#allocation21], 16, 16, 1
    $region65: #{tpu_custom_call.1} parent=1 // pred_fallthru
      _
    // Predicated region
    $region66: #{tpu_custom_call.1} parent=1 // pred_check
      _
    $region67: #{tpu_custom_call.1} parent=1 // pred_check_branch
      %199 = sbr.rel (0) target = $region69
    $region68: #{tpu_custom_call.1} parent=1 // pred_region
      %201 = vsyncadd [#allocation21], 0
      %s202 = sshll.u32 %s16, 4
      %s203 = int_to_ptr.hbm [resolvable:$true] %s202
      %s204 = sshll.u32 [#allocation22], 4
      %s205 = int_to_ptr.vmem [resolvable:$true] %s204
      %210 = dma.hbm_to_vmem [thread:$0]  %s203, 32, %s205, [#allocation21], 16, 16, 1
    $region69: #{tpu_custom_call.1} parent=1 // pred_fallthru
      _
    // Predicated region
    $region70: #{tpu_custom_call.1} parent=1 // pred_check
      _
    $region71: #{tpu_custom_call.1} parent=1 // pred_check_branch
      %212 = sbr.rel (0) target = $region73
    $region72: #{tpu_custom_call.1} parent=1 // pred_region
      %214 = vsyncadd [#allocation24], 0
      %s215 = sshll.u32 %s17, 4
      %s216 = int_to_ptr.hbm [resolvable:$true] %s215
      %s217 = sshll.u32 [#allocation23], 4
      %s218 = int_to_ptr.vmem [resolvable:$true] %s217
      %223 = dma.hbm_to_vmem [thread:$0]  %s216, 1024, %s218, [#allocation24], 128, 128, 8
    $region73: #{tpu_custom_call.1} parent=1 // pred_fallthru
      _
    // Predicated region
    $region74: #{tpu_custom_call.1} parent=1 // pred_check
      _
    $region75: #{tpu_custom_call.1} parent=1 // pred_check_branch
      %225 = sbr.rel (0) target = $region77
    $region76: #{tpu_custom_call.1} parent=1 // pred_region
      %227 = vsyncadd [#allocation24], 0
      %s228 = sshll.u32 %s18, 4
      %s229 = int_to_ptr.hbm [resolvable:$true] %s228
      %s230 = sshll.u32 [#allocation25], 4
      %s231 = int_to_ptr.vmem [resolvable:$true] %s230
      %236 = dma.hbm_to_vmem [thread:$0]  %s229, 32, %s231, [#allocation24], 16, 16, 1
    $region77: #{tpu_custom_call.1} parent=1 // pred_fallthru
      _
    // Predicated region
    $region78: #{tpu_custom_call.1} parent=1 // pred_check
      _
    $region79: #{tpu_custom_call.1} parent=1 // pred_check_branch
      %238 = sbr.rel (0) target = $region81
    $region80: #{tpu_custom_call.1} parent=1 // pred_region
      _
    $region81: #{tpu_custom_call.1} parent=1 // pred_fallthru
      _
    // Predicated region
    $region82: #{tpu_custom_call.1} parent=1 // pred_check
      _
    $region83: #{tpu_custom_call.1} parent=1 // pred_check_branch
      %240 = sbr.rel (0) target = $region85
    $region84: #{tpu_custom_call.1} parent=1 // pred_region
      %242 = vsyncadd [#allocation27], 0
      %s243 = sshll.u32 %s20, 4
      %s244 = int_to_ptr.hbm [resolvable:$true] %s243
      %s245 = sshll.u32 [#allocation26], 4
      %s246 = int_to_ptr.vmem [resolvable:$true] %s245
      %251 = dma.hbm_to_vmem [thread:$0]  %s244, 32, %s246, [#allocation27], 16, 16, 1
    $region85: #{tpu_custom_call.1} parent=1 // pred_fallthru
      _
    // Predicated region
    $region86: #{tpu_custom_call.1} parent=1 // pred_check
      _
    $region87: #{tpu_custom_call.1} parent=1 // pred_check_branch
      %253 = sbr.rel (0) target = $region89
    $region88: #{tpu_custom_call.1} parent=1 // pred_region
      _
    $region89: #{tpu_custom_call.1} parent=1 // pred_fallthru
      _
    // Predicated region
    $region90: #{tpu_custom_call.1} parent=1 // pred_check
      _
    $region91: #{tpu_custom_call.1} parent=1 // pred_check_branch
      %255 = sbr.rel (0) target = $region93
    $region92: #{tpu_custom_call.1} parent=1 // pred_region
      _
    $region93: #{tpu_custom_call.1} parent=1 // pred_fallthru
      _
    // Predicated region
    $region94: #{tpu_custom_call.1} parent=1 // pred_check
      _
    $region95: #{tpu_custom_call.1} parent=1 // pred_check_branch
      %257 = sbr.rel (0) target = $region97
    $region96: #{tpu_custom_call.1} parent=1 // pred_region
      %259 = dma.done [#allocation3], 256
    $region97: #{tpu_custom_call.1} parent=1 // pred_fallthru
      _
    // Predicated region
    $region98: #{tpu_custom_call.1} parent=1 // pred_check
      _
    $region99: #{tpu_custom_call.1} parent=1 // pred_check_branch
      %261 = sbr.rel (0) target = $region101
    $region100: #{tpu_custom_call.1} parent=1 // pred_region
      %263 = dma.done [#allocation6], 256
    $region101: #{tpu_custom_call.1} parent=1 // pred_fallthru
      _
    // Predicated region
    $region102: #{tpu_custom_call.1} parent=1 // pred_check
      _
    $region103: #{tpu_custom_call.1} parent=1 // pred_check_branch
      %265 = sbr.rel (0) target = $region105
    $region104: #{tpu_custom_call.1} parent=1 // pred_region
      %267 = dma.done [#allocation6], 16
    $region105: #{tpu_custom_call.1} parent=1 // pred_fallthru
      _
    // Predicated region
    $region106: #{tpu_custom_call.1} parent=1 // pred_check
      _
    $region107: #{tpu_custom_call.1} parent=1 // pred_check_branch
      %269 = sbr.rel (0) target = $region109
    $region108: #{tpu_custom_call.1} parent=1 // pred_region
      %271 = dma.done [#allocation9], 16
    $region109: #{tpu_custom_call.1} parent=1 // pred_fallthru
      _
    // Predicated region
    $region110: #{tpu_custom_call.1} parent=1 // pred_check
      _
    $region111: #{tpu_custom_call.1} parent=1 // pred_check_branch
      %273 = sbr.rel (0) target = $region113
    $region112: #{tpu_custom_call.1} parent=1 // pred_region
      %275 = dma.done [#allocation9], 1024
    $region113: #{tpu_custom_call.1} parent=1 // pred_fallthru
      _
    // Predicated region
    $region114: #{tpu_custom_call.1} parent=1 // pred_check
      _
    $region115: #{tpu_custom_call.1} parent=1 // pred_check_branch
      %277 = sbr.rel (0) target = $region117
    $region116: #{tpu_custom_call.1} parent=1 // pred_region
      %279 = dma.done [#allocation12], 1024
    $region117: #{tpu_custom_call.1} parent=1 // pred_fallthru
      _
    // Predicated region
    $region118: #{tpu_custom_call.1} parent=1 // pred_check
      _
    $region119: #{tpu_custom_call.1} parent=1 // pred_check_branch
      %281 = sbr.rel (0) target = $region121
    $region120: #{tpu_custom_call.1} parent=1 // pred_region
      %283 = dma.done [#allocation12], 1024
    $region121: #{tpu_custom_call.1} parent=1 // pred_fallthru
      _
    // Predicated region
    $region122: #{tpu_custom_call.1} parent=1 // pred_check
      _
    $region123: #{tpu_custom_call.1} parent=1 // pred_check_branch
      %285 = sbr.rel (0) target = $region125
    $region124: #{tpu_custom_call.1} parent=1 // pred_region
      %287 = dma.done [#allocation15], 1024
    $region125: #{tpu_custom_call.1} parent=1 // pred_fallthru
      _
    // Predicated region
    $region126: #{tpu_custom_call.1} parent=1 // pred_check
      _
    $region127: #{tpu_custom_call.1} parent=1 // pred_check_branch
      %289 = sbr.rel (0) target = $region129
    $region128: #{tpu_custom_call.1} parent=1 // pred_region
      %291 = dma.done [#allocation15], 32
    $region129: #{tpu_custom_call.1} parent=1 // pred_fallthru
      _
    // Predicated region
    $region130: #{tpu_custom_call.1} parent=1 // pred_check
      _
    $region131: #{tpu_custom_call.1} parent=1 // pred_check_branch
      %293 = sbr.rel (0) target = $region133
    $region132: #{tpu_custom_call.1} parent=1 // pred_region
      %295 = dma.done [#allocation18], 32
    $region133: #{tpu_custom_call.1} parent=1 // pred_fallthru
      _
    // Predicated region
    $region134: #{tpu_custom_call.1} parent=1 // pred_check
      _
    $region135: #{tpu_custom_call.1} parent=1 // pred_check_branch
      %297 = sbr.rel (0) target = $region137
    $region136: #{tpu_custom_call.1} parent=1 // pred_region
      %299 = dma.done [#allocation18], 32
    $region137: #{tpu_custom_call.1} parent=1 // pred_fallthru
      _
    // Predicated region
    $region138: #{tpu_custom_call.1} parent=1 // pred_check
      _
    $region139: #{tpu_custom_call.1} parent=1 // pred_check_branch
      %301 = sbr.rel (0) target = $region141
    $region140: #{tpu_custom_call.1} parent=1 // pred_region
      %303 = dma.done [#allocation21], 32
    $region141: #{tpu_custom_call.1} parent=1 // pred_fallthru
      _
    // Predicated region
    $region142: #{tpu_custom_call.1} parent=1 // pred_check
      _
    $region143: #{tpu_custom_call.1} parent=1 // pred_check_branch
      %305 = sbr.rel (0) target = $region145
    $region144: #{tpu_custom_call.1} parent=1 // pred_region
      %307 = dma.done [#allocation21], 32
    $region145: #{tpu_custom_call.1} parent=1 // pred_fallthru
      _
    // Predicated region
    $region146: #{tpu_custom_call.1} parent=1 // pred_check
      _
    $region147: #{tpu_custom_call.1} parent=1 // pred_check_branch
      %309 = sbr.rel (0) target = $region149
    $region148: #{tpu_custom_call.1} parent=1 // pred_region
      %311 = dma.done [#allocation24], 1024
    $region149: #{tpu_custom_call.1} parent=1 // pred_fallthru
      _
    // Predicated region
    $region150: #{tpu_custom_call.1} parent=1 // pred_check
      _
    $region151: #{tpu_custom_call.1} parent=1 // pred_check_branch
      %313 = sbr.rel (0) target = $region153
    $region152: #{tpu_custom_call.1} parent=1 // pred_region
      %315 = dma.done [#allocation24], 32
    $region153: #{tpu_custom_call.1} parent=1 // pred_fallthru
      _
    // Predicated region
    $region154: #{tpu_custom_call.1} parent=1 // pred_check
      _
    $region155: #{tpu_custom_call.1} parent=1 // pred_check_branch
      %317 = sbr.rel (0) target = $region157
    $region156: #{tpu_custom_call.1} parent=1 // pred_region
      %319 = dma.done [#allocation27], 32
    $region157: #{tpu_custom_call.1} parent=1 // pred_fallthru
      _
    %v320 = vld [vmem:[#allocation2] sm:$0xff]
    %v321 = vld [vmem:[#allocation2 + $0x8] sm:$0xff]
    %v322 = vld [vmem:[#allocation5] sm:$0xff]
    %v323 = vld [vmem:[#allocation5 + $0x8] sm:$0xff]
    %v324 = vld [vmem:[%s2] sm:$0xff]
    %v325 = vld [vmem:[%s2 + $0x8] sm:$0xff]
    %v326 = vld [vmem:[%s2 + $0x10] sm:$0xff]
    %v327 = vld [vmem:[%s2 + $0x18] sm:$0xff]
    %v328 = vld [vmem:[%s2 + $0x20] sm:$0xff]
    %v329 = vld [vmem:[%s2 + $0x28] sm:$0xff]
    %v330 = vld [vmem:[%s2 + $0x30] sm:$0xff]
    %v331 = vld [vmem:[%s2 + $0x38] sm:$0xff]
    %v332 = vld [vmem:[%s3] sm:$0xff]
    %v333 = vld [vmem:[%s3 + $0x8] sm:$0xff]
    %v334 = vld [vmem:[%s3 + $0x10] sm:$0xff]
    %v335 = vld [vmem:[%s3 + $0x18] sm:$0xff]
    %v336 = vld [vmem:[%s3 + $0x20] sm:$0xff]
    %v337 = vld [vmem:[%s3 + $0x28] sm:$0xff]
    %v338 = vld [vmem:[%s3 + $0x30] sm:$0xff]
    %v339 = vld [vmem:[%s3 + $0x38] sm:$0xff]
    %v340 = vld [vmem:[#allocation7] sm:$0x1]
    %v341 = vld [vmem:[#allocation8] sm:$0x1]
    %vm342 = vcmask 261120
    %v343 = vsel %vm342, %v320, 0.0
    %344 = vadd.xlane.f32.xlu0 %v343
    %v345 = vpop.xlane.xlu0 %344
    %v346 = vsel %vm342, %v321, 0.0
    %347 = vadd.xlane.f32.xlu0 %v346
    %v348 = vpop.xlane.xlu0 %347
    %v349 = vrcp.pop 32.0
    %v350 = vmul.f32 32.0, %v349
    %v351 = vsub.f32 1.0, %v350
    %v352 = vmul.f32 %v349, %v351
    %v353 = vadd.f32 %v349, %v352
    %vm354 = vweird.f32 %v349
    %v355 = vsel %vm354, %v349, %v353
    %v356 = vmul.f32 %v345, %v355
    %v357 = vmul.f32 %v348, %v355
    %v358 = vsub.f32 %v320, %v356
    %v359 = vsub.f32 %v321, %v357
    %v360 = vmul.f32 %v358, %v358
    %v361 = vmul.f32 %v359, %v359
    %v362 = vsel %vm342, %v360, 0.0
    %363 = vadd.xlane.f32.xlu0 %v362
    %v364 = vpop.xlane.xlu0 %363
    %v365 = vsel %vm342, %v361, 0.0
    %366 = vadd.xlane.f32.xlu0 %v365
    %v367 = vpop.xlane.xlu0 %366
    %v368 = vmul.f32 %v364, 0.032258064
    %v369 = vmul.f32 %v367, 0.032258064
    %v370 = vrsqrt.pop %v368
    %v371 = vmul.f32 %v370, %v368
    %v372 = vmul.f32 %v371, %v370
    %v373 = vmul.f32 0.5, %v372
    %v374 = vsub.f32 1.5, %v373
    %v375 = vmul.f32 %v370, %v374
    %v376 = vmul.f32 %v368, %v375
    %vm377 = vcmp.eq.f32.partialorder %v368, inf
    %v378 = vsel %vm377, %v368, %v376
    %vm379 = vcmp.eq.f32.partialorder %v368, 0.0
    %v380 = vand.u32 %v368, 2147483648
    %v381 = vsel %vm379, %v380, %v378
    %v382 = vrsqrt.pop %v369
    %v383 = vmul.f32 %v382, %v369
    %v384 = vmul.f32 %v383, %v382
    %v385 = vmul.f32 0.5, %v384
    %v386 = vsub.f32 1.5, %v385
    %v387 = vmul.f32 %v382, %v386
    %v388 = vmul.f32 %v369, %v387
    %vm389 = vcmp.eq.f32.partialorder %v369, inf
    %v390 = vsel %vm389, %v369, %v388
    %vm391 = vcmp.eq.f32.partialorder %v369, 0.0
    %v392 = vand.u32 %v369, 2147483648
    %v393 = vsel %vm391, %v392, %v390
    %v394 = vadd.f32 %v381, 1e-06
    %v395 = vadd.f32 %v393, 1e-06
    %v396 = vrcp.pop %v394
    %v397 = vrcp.pop %v395
    %v398 = vmul.f32 %v358, %v396
    %v399 = vmul.f32 %v359, %v397
    %v401 = vperm.slane %v340, 0
    %v403 = vmul.f32 %v401, %v398
    %v404 = vmul.f32 %v401, %v399
    %v406 = vperm.slane %v341, 0
    %v408 = vadd.f32 %v403, %v406
    %v409 = vadd.f32 %v404, %v406
    %v410 = vld [vmem:[%s6] sm:$0xff]
    %v411 = vld [vmem:[%s6 + $0x8] sm:$0xff]
    %v412 = vld [vmem:[%s6 + $0x10] sm:$0xff]
    %v413 = vld [vmem:[%s6 + $0x18] sm:$0xff]
    %v415 = vsel %vm342, %v408, 0
    %v418 = vsel %vm342, %v409, 0
    %420 = vmatpush.msra.mxu0 0.0
    %421 = vmatpush.msra.mxu0 0.0
    %422 = vmatpush.msra.mxu0 0.0
    %423 = vmatpush.msra.mxu0 0.0
    %424 = vmatpush.msra.mxu0 0.0
    %425 = vmatpush.msra.mxu0 0.0
    %426 = vmatpush.msra.mxu0 0.0
    %427 = vmatpush.msra.mxu0 0.0
    %428 = vmatpush.msra.mxu0 0.0
    %429 = vmatpush.msra.mxu0 0.0
    %430 = vmatpush.msra.mxu0 0.0
    %431 = vmatpush.msra.mxu0 0.0
    %432 = vmatpush.msra.mxu0 %v413
    %433 = vmatpush.msra.mxu0 %v412
    %434 = vmatpush.msra.mxu0 %v411
    %435 = vmatpush.msra.mxu0 %v410
    %436 = vmatmul.f32.gmra.mxu0 %v415
    %v437 = vpop.f32.mrf.mxu0
    %v438 = vadd.f32 0.0, %v437
    %439 = vmatmul.f32.gmra.mxu0 %v418
    %v440 = vpop.f32.mrf.mxu0
    %v441 = vadd.f32 0.0, %v440
    %442 = vdwg.mxu0
    %445 = vrot.lane.b32.xlu0 %v438, 120
    %v446 = vpop.permute.xlu0 %445
    %447 = vrot.lane.b32.xlu0 %v441, 120
    %v448 = vpop.permute.xlu0 %447
    %449 = vrot.lane.b32.xlu0 %v438, 112
    %v450 = vpop.permute.xlu0 %449
    %451 = vrot.lane.b32.xlu0 %v441, 112
    %v452 = vpop.permute.xlu0 %451
    %453 = vrot.lane.b32.xlu0 %v438, 104
    %v454 = vpop.permute.xlu0 %453
    %455 = vrot.lane.b32.xlu0 %v441, 104
    %v456 = vpop.permute.xlu0 %455
    %457 = vrot.lane.b32.xlu0 %v438, 96
    %v458 = vpop.permute.xlu0 %457
    %459 = vrot.lane.b32.xlu0 %v441, 96
    %v460 = vpop.permute.xlu0 %459
    %461 = vrot.lane.b32.xlu0 %v446, 96
    %v462 = vpop.permute.xlu0 %461
    %463 = vrot.lane.b32.xlu0 %v448, 96
    %v464 = vpop.permute.xlu0 %463
    %465 = vrot.lane.b32.xlu0 %v450, 96
    %v466 = vpop.permute.xlu0 %465
    %467 = vrot.lane.b32.xlu0 %v452, 96
    %v468 = vpop.permute.xlu0 %467
    %469 = vrot.lane.b32.xlu0 %v454, 96
    %v470 = vpop.permute.xlu0 %469
    %471 = vrot.lane.b32.xlu0 %v456, 96
    %v472 = vpop.permute.xlu0 %471
    %vm473 = vcmask 64512
    %v474 = vsel %vm473, %v438, 0
    %v476 = vsel %vm473, %v441, 0
    %v478 = vsel %vm473, %v446, 0
    %v480 = vsel %vm473, %v448, 0
    %v482 = vsel %vm473, %v450, 0
    %v484 = vsel %vm473, %v452, 0
    %v486 = vsel %vm473, %v454, 0
    %v488 = vsel %vm473, %v456, 0
    %v490 = vsel %vm473, %v458, 0
    %v492 = vsel %vm473, %v460, 0
    %v494 = vsel %vm473, %v462, 0
    %v496 = vsel %vm473, %v464, 0
    %v498 = vsel %vm473, %v466, 0
    %v500 = vsel %vm473, %v468, 0
    %v502 = vsel %vm473, %v470, 0
    %v504 = vsel %vm473, %v472, 0
    %506 = vmatpush.xpose.msra.mxu0 0.0
    %507 = vmatpush.xpose.msra.mxu0 0.0
    %508 = vmatpush.xpose.msra.mxu0 0.0
    %509 = vmatpush.xpose.msra.mxu0 0.0
    %510 = vmatpush.xpose.msra.mxu0 0.0
    %511 = vmatpush.xpose.msra.mxu0 0.0
    %512 = vmatpush.xpose.msra.mxu0 0.0
    %513 = vmatpush.xpose.msra.mxu0 0.0
    %514 = vmatpush.xpose.msra.mxu0 %v504
    %515 = vmatpush.xpose.msra.mxu0 %v502
    %516 = vmatpush.xpose.msra.mxu0 %v500
    %517 = vmatpush.xpose.msra.mxu0 %v498
    %518 = vmatpush.xpose.msra.mxu0 %v496
    %519 = vmatpush.xpose.msra.mxu0 %v494
    %520 = vmatpush.xpose.msra.mxu0 %v492
    %521 = vmatpush.xpose.msra.mxu0 %v490
    %522 = vmatmul.f32.gmra.mxu0 %v474
    %v523 = vpop.f32.mrf.mxu0
    %v524 = vadd.f32 0.0, %v523
    %525 = vmatmul.f32.gmra.mxu0 %v476
    %v526 = vpop.f32.mrf.mxu0
    %v527 = vadd.f32 0.0, %v526
    %528 = vmatmul.f32.gmra.mxu0 %v478
    %v529 = vpop.f32.mrf.mxu0
    %v530 = vadd.f32 0.0, %v529
    %531 = vmatmul.f32.gmra.mxu0 %v480
    %v532 = vpop.f32.mrf.mxu0
    %v533 = vadd.f32 0.0, %v532
    %534 = vmatmul.f32.gmra.mxu0 %v482
    %v535 = vpop.f32.mrf.mxu0
    %v536 = vadd.f32 0.0, %v535
    %537 = vmatmul.f32.gmra.mxu0 %v484
    %v538 = vpop.f32.mrf.mxu0
    %v539 = vadd.f32 0.0, %v538
    %540 = vmatmul.f32.gmra.mxu0 %v486
    %v541 = vpop.f32.mrf.mxu0
    %v542 = vadd.f32 0.0, %v541
    %543 = vmatmul.f32.gmra.mxu0 %v488
    %v544 = vpop.f32.mrf.mxu0
    %v545 = vadd.f32 0.0, %v544
    %546 = vdwg.mxu0
    %v547 = vmul.f32 %v524, 0.125
    %v548 = vmul.f32 %v527, 0.125
    %v549 = vmul.f32 %v530, 0.125
    %v550 = vmul.f32 %v533, 0.125
    %v551 = vmul.f32 %v536, 0.125
    %v552 = vmul.f32 %v539, 0.125
    %v553 = vmul.f32 %v542, 0.125
    %v554 = vmul.f32 %v545, 0.125
    %vm555 = vcmp.eq.f32.partialorder %v324, 0.0
    %vm556 = vcmp.eq.f32.partialorder %v325, 0.0
    %vm557 = vcmp.eq.f32.partialorder %v326, 0.0
    %vm558 = vcmp.eq.f32.partialorder %v327, 0.0
    %vm559 = vcmp.eq.f32.partialorder %v328, 0.0
    %vm560 = vcmp.eq.f32.partialorder %v329, 0.0
    %vm561 = vcmp.eq.f32.partialorder %v330, 0.0
    %vm562 = vcmp.eq.f32.partialorder %v331, 0.0
    %v563 = vsel %vm555, -1e+09, %v547
    %v564 = vsel %vm556, -1e+09, %v548
    %v565 = vsel %vm557, -1e+09, %v549
    %v566 = vsel %vm558, -1e+09, %v550
    %v567 = vsel %vm559, -1e+09, %v551
    %v568 = vsel %vm560, -1e+09, %v552
    %v569 = vsel %vm561, -1e+09, %v553
    %v570 = vsel %vm562, -1e+09, %v554
    %vm571 = vcmask 523264
    %v572 = vsel %vm571, %v563, -inf
    %573 = vmax.xlane.f32.xlu0 %v572
    %v574 = vpop.xlane.xlu0 %573
    %v575 = vsel %vm571, %v564, -inf
    %576 = vmax.xlane.f32.xlu0 %v575
    %v577 = vpop.xlane.xlu0 %576
    %v578 = vsel %vm571, %v565, -inf
    %579 = vmax.xlane.f32.xlu0 %v578
    %v580 = vpop.xlane.xlu0 %579
    %v581 = vsel %vm571, %v566, -inf
    %582 = vmax.xlane.f32.xlu0 %v581
    %v583 = vpop.xlane.xlu0 %582
    %v584 = vsel %vm571, %v567, -inf
    %585 = vmax.xlane.f32.xlu0 %v584
    %v586 = vpop.xlane.xlu0 %585
    %v587 = vsel %vm571, %v568, -inf
    %588 = vmax.xlane.f32.xlu0 %v587
    %v589 = vpop.xlane.xlu0 %588
    %v590 = vsel %vm571, %v569, -inf
    %591 = vmax.xlane.f32.xlu0 %v590
    %v592 = vpop.xlane.xlu0 %591
    %v593 = vsel %vm571, %v570, -inf
    %594 = vmax.xlane.f32.xlu0 %v593
    %v595 = vpop.xlane.xlu0 %594
    %v596 = vsub.f32 %v563, %v574
    %v597 = vsub.f32 %v564, %v577
    %v598 = vsub.f32 %v565, %v580
    %v599 = vsub.f32 %v566, %v583
    %v600 = vsub.f32 %v567, %v586
    %v601 = vsub.f32 %v568, %v589
    %v602 = vsub.f32 %v569, %v592
    %v603 = vsub.f32 %v570, %v595
    %v604 = vmul.f32 %v596, 1.442695
    %v605 = vpow.pop %v604
    %v606 = vmul.f32 %v597, 1.442695
    %v607 = vpow.pop %v606
    %v608 = vmul.f32 %v598, 1.442695
    %v609 = vpow.pop %v608
    %v610 = vmul.f32 %v599, 1.442695
    %v611 = vpow.pop %v610
    %v612 = vmul.f32 %v600, 1.442695
    %v613 = vpow.pop %v612
    %v614 = vmul.f32 %v601, 1.442695
    %v615 = vpow.pop %v614
    %v616 = vmul.f32 %v602, 1.442695
    %v617 = vpow.pop %v616
    %v618 = vmul.f32 %v603, 1.442695
    %v619 = vpow.pop %v618
    %v620 = vsel %vm571, %v605, 0.0
    %621 = vadd.xlane.f32.xlu0 %v620
    %v622 = vpop.xlane.xlu0 %621
    %v623 = vsel %vm571, %v607, 0.0
    %624 = vadd.xlane.f32.xlu0 %v623
    %v625 = vpop.xlane.xlu0 %624
    %v626 = vsel %vm571, %v609, 0.0
    %627 = vadd.xlane.f32.xlu0 %v626
    %v628 = vpop.xlane.xlu0 %627
    %v629 = vsel %vm571, %v611, 0.0
    %630 = vadd.xlane.f32.xlu0 %v629
    %v631 = vpop.xlane.xlu0 %630
    %v632 = vsel %vm571, %v613, 0.0
    %633 = vadd.xlane.f32.xlu0 %v632
    %v634 = vpop.xlane.xlu0 %633
    %v635 = vsel %vm571, %v615, 0.0
    %636 = vadd.xlane.f32.xlu0 %v635
    %v637 = vpop.xlane.xlu0 %636
    %v638 = vsel %vm571, %v617, 0.0
    %639 = vadd.xlane.f32.xlu0 %v638
    %v640 = vpop.xlane.xlu0 %639
    %v641 = vsel %vm571, %v619, 0.0
    %642 = vadd.xlane.f32.xlu0 %v641
    %v643 = vpop.xlane.xlu0 %642
    %v644 = vrcp.pop %v622
    %v645 = vrcp.pop %v625
    %v646 = vrcp.pop %v628
    %v647 = vrcp.pop %v631
    %v648 = vrcp.pop %v634
    %v649 = vrcp.pop %v637
    %v650 = vrcp.pop %v640
    %v651 = vrcp.pop %v643
    %v652 = vmul.f32 %v605, %v644
    %v653 = vmul.f32 %v607, %v645
    %v654 = vmul.f32 %v609, %v646
    %v655 = vmul.f32 %v611, %v647
    %v656 = vmul.f32 %v613, %v648
    %v657 = vmul.f32 %v615, %v649
    %v658 = vmul.f32 %v617, %v650
    %v659 = vmul.f32 %v619, %v651
    %660 = vrot.lane.b32.xlu0 %v438, 64
    %v661 = vpop.permute.xlu0 %660
    %662 = vrot.lane.b32.xlu0 %v441, 64
    %v663 = vpop.permute.xlu0 %662
    %664 = vrot.lane.b32.xlu0 %v446, 64
    %v665 = vpop.permute.xlu0 %664
    %666 = vrot.lane.b32.xlu0 %v448, 64
    %v667 = vpop.permute.xlu0 %666
    %668 = vrot.lane.b32.xlu0 %v450, 64
    %v669 = vpop.permute.xlu0 %668
    %670 = vrot.lane.b32.xlu0 %v452, 64
    %v671 = vpop.permute.xlu0 %670
    %672 = vrot.lane.b32.xlu0 %v454, 64
    %v673 = vpop.permute.xlu0 %672
    %674 = vrot.lane.b32.xlu0 %v456, 64
    %v675 = vpop.permute.xlu0 %674
    %v685 = vsel %vm571, %v652, 0
    %v688 = vsel %vm571, %v653, 0
    %v691 = vsel %vm571, %v654, 0
    %v694 = vsel %vm571, %v655, 0
    %v697 = vsel %vm571, %v656, 0
    %v700 = vsel %vm571, %v657, 0
    %v703 = vsel %vm571, %v658, 0
    %v706 = vsel %vm571, %v659, 0
    %708 = vmatpush.msra.mxu0 0.0
    %709 = vmatpush.msra.mxu0 0.0
    %710 = vmatpush.msra.mxu0 0.0
    %711 = vmatpush.msra.mxu0 0.0
    %712 = vmatpush.msra.mxu0 0.0
    %713 = vmatpush.msra.mxu0 0.0
    %714 = vmatpush.msra.mxu0 0.0
    %715 = vmatpush.msra.mxu0 0.0
    %716 = vmatpush.msra.mxu0 %v675
    %717 = vmatpush.msra.mxu0 %v673
    %718 = vmatpush.msra.mxu0 %v671
    %719 = vmatpush.msra.mxu0 %v669
    %720 = vmatpush.msra.mxu0 %v667
    %721 = vmatpush.msra.mxu0 %v665
    %722 = vmatpush.msra.mxu0 %v663
    %723 = vmatpush.msra.mxu0 %v661
    %724 = vmatmul.f32.gmra.mxu0 %v685
    %v725 = vpop.f32.mrf.mxu0
    %v726 = vadd.f32 0.0, %v725
    %727 = vmatmul.f32.gmra.mxu0 %v688
    %v728 = vpop.f32.mrf.mxu0
    %v729 = vadd.f32 0.0, %v728
    %730 = vmatmul.f32.gmra.mxu0 %v691
    %v731 = vpop.f32.mrf.mxu0
    %v732 = vadd.f32 0.0, %v731
    %733 = vmatmul.f32.gmra.mxu0 %v694
    %v734 = vpop.f32.mrf.mxu0
    %v735 = vadd.f32 0.0, %v734
    %736 = vmatmul.f32.gmra.mxu0 %v697
    %v737 = vpop.f32.mrf.mxu0
    %v738 = vadd.f32 0.0, %v737
    %739 = vmatmul.f32.gmra.mxu0 %v700
    %v740 = vpop.f32.mrf.mxu0
    %v741 = vadd.f32 0.0, %v740
    %742 = vmatmul.f32.gmra.mxu0 %v703
    %v743 = vpop.f32.mrf.mxu0
    %v744 = vadd.f32 0.0, %v743
    %745 = vmatmul.f32.gmra.mxu0 %v706
    %v746 = vpop.f32.mrf.mxu0
    %v747 = vadd.f32 0.0, %v746
    %748 = vdwg.mxu0
    %751 = vrot.lane.b32.xlu0 %v732, 8
    %v752 = vpop.permute.xlu0 %751
    %753 = vrot.lane.b32.xlu0 %v735, 8
    %v754 = vpop.permute.xlu0 %753
    %759 = vrot.lane.b32.xlu0 %v738, 16
    %v760 = vpop.permute.xlu0 %759
    %761 = vrot.lane.b32.xlu0 %v741, 16
    %v762 = vpop.permute.xlu0 %761
    %767 = vrot.lane.b32.xlu0 %v744, 24
    %v768 = vpop.permute.xlu0 %767
    %769 = vrot.lane.b32.xlu0 %v747, 24
    %v770 = vpop.permute.xlu0 %769
    %v773 = vsel %vm473, %v726, %v752
    %v774 = vsel %vm473, %v729, %v754
    %vm775 = vcmask 130048
    %v776 = vsel %vm775, %v773, %v760
    %v777 = vsel %vm775, %v774, %v762
    %vm778 = vcmask 195584
    %v779 = vsel %vm778, %v776, %v768
    %v780 = vsel %vm778, %v777, %v770
    %v781 = vld [vmem:[#allocation10] sm:$0xff]
    %v782 = vld [vmem:[#allocation10 + $0x8] sm:$0xff]
    %v783 = vld [vmem:[#allocation10 + $0x10] sm:$0xff]
    %v784 = vld [vmem:[#allocation10 + $0x18] sm:$0xff]
    %v786 = vsel %vm342, %v779, 0
    %v789 = vsel %vm342, %v780, 0
    %791 = vmatpush.msra.mxu0 0.0
    %792 = vmatpush.msra.mxu0 0.0
    %793 = vmatpush.msra.mxu0 0.0
    %794 = vmatpush.msra.mxu0 0.0
    %795 = vmatpush.msra.mxu0 0.0
    %796 = vmatpush.msra.mxu0 0.0
    %797 = vmatpush.msra.mxu0 0.0
    %798 = vmatpush.msra.mxu0 0.0
    %799 = vmatpush.msra.mxu0 0.0
    %800 = vmatpush.msra.mxu0 0.0
    %801 = vmatpush.msra.mxu0 0.0
    %802 = vmatpush.msra.mxu0 0.0
    %803 = vmatpush.msra.mxu0 %v784
    %804 = vmatpush.msra.mxu0 %v783
    %805 = vmatpush.msra.mxu0 %v782
    %806 = vmatpush.msra.mxu0 %v781
    %807 = vmatmul.f32.gmra.mxu0 %v786
    %v808 = vpop.f32.mrf.mxu0
    %v809 = vadd.f32 0.0, %v808
    %810 = vmatmul.f32.gmra.mxu0 %v789
    %v811 = vpop.f32.mrf.mxu0
    %v812 = vadd.f32 0.0, %v811
    %813 = vdwg.mxu0
    %v814 = vadd.f32 %v408, %v809
    %v815 = vadd.f32 %v409, %v812
    %v816 = vld [vmem:[%s11] sm:$0x1]
    %v817 = vld [vmem:[#allocation16] sm:$0x1]
    %v818 = vsel %vm342, %v814, 0.0
    %819 = vadd.xlane.f32.xlu0 %v818
    %v820 = vpop.xlane.xlu0 %819
    %v821 = vsel %vm342, %v815, 0.0
    %822 = vadd.xlane.f32.xlu0 %v821
    %v823 = vpop.xlane.xlu0 %822
    %v824 = vmul.f32 %v820, %v355
    %v825 = vmul.f32 %v823, %v355
    %v826 = vsub.f32 %v814, %v824
    %v827 = vsub.f32 %v815, %v825
    %v828 = vmul.f32 %v826, %v826
    %v829 = vmul.f32 %v827, %v827
    %v830 = vsel %vm342, %v828, 0.0
    %831 = vadd.xlane.f32.xlu0 %v830
    %v832 = vpop.xlane.xlu0 %831
    %v833 = vsel %vm342, %v829, 0.0
    %834 = vadd.xlane.f32.xlu0 %v833
    %v835 = vpop.xlane.xlu0 %834
    %v836 = vmul.f32 %v832, 0.032258064
    %v837 = vmul.f32 %v835, 0.032258064
    %v838 = vrsqrt.pop %v836
    %v839 = vmul.f32 %v838, %v836
    %v840 = vmul.f32 %v839, %v838
    %v841 = vmul.f32 0.5, %v840
    %v842 = vsub.f32 1.5, %v841
    %v843 = vmul.f32 %v838, %v842
    %v844 = vmul.f32 %v836, %v843
    %vm845 = vcmp.eq.f32.partialorder %v836, inf
    %v846 = vsel %vm845, %v836, %v844
    %vm847 = vcmp.eq.f32.partialorder %v836, 0.0
    %v848 = vand.u32 %v836, 2147483648
    %v849 = vsel %vm847, %v848, %v846
    %v850 = vrsqrt.pop %v837
    %v851 = vmul.f32 %v850, %v837
    %v852 = vmul.f32 %v851, %v850
    %v853 = vmul.f32 0.5, %v852
    %v854 = vsub.f32 1.5, %v853
    %v855 = vmul.f32 %v850, %v854
    %v856 = vmul.f32 %v837, %v855
    %vm857 = vcmp.eq.f32.partialorder %v837, inf
    %v858 = vsel %vm857, %v837, %v856
    %vm859 = vcmp.eq.f32.partialorder %v837, 0.0
    %v860 = vand.u32 %v837, 2147483648
    %v861 = vsel %vm859, %v860, %v858
    %v862 = vadd.f32 %v849, 1e-06
    %v863 = vadd.f32 %v861, 1e-06
    %v864 = vrcp.pop %v862
    %v865 = vrcp.pop %v863
    %v866 = vmul.f32 %v826, %v864
    %v867 = vmul.f32 %v827, %v865
    %v869 = vperm.slane %v816, 0
    %v871 = vmul.f32 %v869, %v866
    %v872 = vmul.f32 %v869, %v867
    %v874 = vperm.slane %v817, 0
    %v876 = vadd.f32 %v871, %v874
    %v877 = vadd.f32 %v872, %v874
    %v878 = vld [vmem:[#allocation11] sm:$0xff]
    %v879 = vld [vmem:[#allocation11 + $0x8] sm:$0xff]
    %v880 = vld [vmem:[#allocation11 + $0x10] sm:$0xff]
    %v881 = vld [vmem:[#allocation11 + $0x18] sm:$0xff]
    %v883 = vsel %vm342, %v876, 0
    %v886 = vsel %vm342, %v877, 0
    %888 = vmatpush.msra.mxu0 0.0
    %889 = vmatpush.msra.mxu0 0.0
    %890 = vmatpush.msra.mxu0 0.0
    %891 = vmatpush.msra.mxu0 0.0
    %892 = vmatpush.msra.mxu0 0.0
    %893 = vmatpush.msra.mxu0 0.0
    %894 = vmatpush.msra.mxu0 0.0
    %895 = vmatpush.msra.mxu0 0.0
    %896 = vmatpush.msra.mxu0 0.0
    %897 = vmatpush.msra.mxu0 0.0
    %898 = vmatpush.msra.mxu0 0.0
    %899 = vmatpush.msra.mxu0 0.0
    %900 = vmatpush.msra.mxu0 %v881
    %901 = vmatpush.msra.mxu0 %v880
    %902 = vmatpush.msra.mxu0 %v879
    %903 = vmatpush.msra.mxu0 %v878
    %904 = vmatmul.f32.gmra.mxu0 %v883
    %v905 = vpop.f32.mrf.mxu0
    %v906 = vadd.f32 0.0, %v905
    %907 = vmatmul.f32.gmra.mxu0 %v886
    %v908 = vpop.f32.mrf.mxu0
    %v909 = vadd.f32 0.0, %v908
    %910 = vdwg.mxu0
    %v911 = vld [vmem:[#allocation13] sm:$0xff]
    %v912 = vld [vmem:[#allocation13 + $0x8] sm:$0xff]
    %v913 = vld [vmem:[#allocation13 + $0x10] sm:$0xff]
    %v914 = vld [vmem:[#allocation13 + $0x18] sm:$0xff]
    %v916 = vsel %vm342, %v322, 0
    %v919 = vsel %vm342, %v323, 0
    %921 = vmatpush.msra.mxu0 0.0
    %922 = vmatpush.msra.mxu0 0.0
    %923 = vmatpush.msra.mxu0 0.0
    %924 = vmatpush.msra.mxu0 0.0
    %925 = vmatpush.msra.mxu0 0.0
    %926 = vmatpush.msra.mxu0 0.0
    %927 = vmatpush.msra.mxu0 0.0
    %928 = vmatpush.msra.mxu0 0.0
    %929 = vmatpush.msra.mxu0 0.0
    %930 = vmatpush.msra.mxu0 0.0
    %931 = vmatpush.msra.mxu0 0.0
    %932 = vmatpush.msra.mxu0 0.0
    %933 = vmatpush.msra.mxu0 %v914
    %934 = vmatpush.msra.mxu0 %v913
    %935 = vmatpush.msra.mxu0 %v912
    %936 = vmatpush.msra.mxu0 %v911
    %937 = vmatmul.f32.gmra.mxu0 %v916
    %v938 = vpop.f32.mrf.mxu0
    %v939 = vadd.f32 0.0, %v938
    %940 = vmatmul.f32.gmra.mxu0 %v919
    %v941 = vpop.f32.mrf.mxu0
    %v942 = vadd.f32 0.0, %v941
    %943 = vdwg.mxu0
    %946 = vrot.lane.b32.xlu0 %v906, 120
    %v947 = vpop.permute.xlu0 %946
    %948 = vrot.lane.b32.xlu0 %v909, 120
    %v949 = vpop.permute.xlu0 %948
    %950 = vrot.lane.b32.xlu0 %v906, 112
    %v951 = vpop.permute.xlu0 %950
    %952 = vrot.lane.b32.xlu0 %v909, 112
    %v953 = vpop.permute.xlu0 %952
    %954 = vrot.lane.b32.xlu0 %v906, 104
    %v955 = vpop.permute.xlu0 %954
    %956 = vrot.lane.b32.xlu0 %v909, 104
    %v957 = vpop.permute.xlu0 %956
    %960 = vrot.lane.b32.xlu0 %v939, 120
    %v961 = vpop.permute.xlu0 %960
    %962 = vrot.lane.b32.xlu0 %v942, 120
    %v963 = vpop.permute.xlu0 %962
    %964 = vrot.lane.b32.xlu0 %v939, 112
    %v965 = vpop.permute.xlu0 %964
    %966 = vrot.lane.b32.xlu0 %v942, 112
    %v967 = vpop.permute.xlu0 %966
    %968 = vrot.lane.b32.xlu0 %v939, 104
    %v969 = vpop.permute.xlu0 %968
    %970 = vrot.lane.b32.xlu0 %v942, 104
    %v971 = vpop.permute.xlu0 %970
    %v972 = vsel %vm473, %v906, 0
    %v974 = vsel %vm473, %v909, 0
    %v976 = vsel %vm473, %v947, 0
    %v978 = vsel %vm473, %v949, 0
    %v980 = vsel %vm473, %v951, 0
    %v982 = vsel %vm473, %v953, 0
    %v984 = vsel %vm473, %v955, 0
    %v986 = vsel %vm473, %v957, 0
    %v988 = vsel %vm473, %v939, 0
    %v990 = vsel %vm473, %v942, 0
    %v992 = vsel %vm473, %v961, 0
    %v994 = vsel %vm473, %v963, 0
    %v996 = vsel %vm473, %v965, 0
    %v998 = vsel %vm473, %v967, 0
    %v1000 = vsel %vm473, %v969, 0
    %v1002 = vsel %vm473, %v971, 0
    %1004 = vmatpush.xpose.msra.mxu0 0.0
    %1005 = vmatpush.xpose.msra.mxu0 0.0
    %1006 = vmatpush.xpose.msra.mxu0 0.0
    %1007 = vmatpush.xpose.msra.mxu0 0.0
    %1008 = vmatpush.xpose.msra.mxu0 0.0
    %1009 = vmatpush.xpose.msra.mxu0 0.0
    %1010 = vmatpush.xpose.msra.mxu0 0.0
    %1011 = vmatpush.xpose.msra.mxu0 0.0
    %1012 = vmatpush.xpose.msra.mxu0 %v1002
    %1013 = vmatpush.xpose.msra.mxu0 %v1000
    %1014 = vmatpush.xpose.msra.mxu0 %v998
    %1015 = vmatpush.xpose.msra.mxu0 %v996
    %1016 = vmatpush.xpose.msra.mxu0 %v994
    %1017 = vmatpush.xpose.msra.mxu0 %v992
    %1018 = vmatpush.xpose.msra.mxu0 %v990
    %1019 = vmatpush.xpose.msra.mxu0 %v988
    %1020 = vmatmul.f32.gmra.mxu0 %v972
    %v1021 = vpop.f32.mrf.mxu0
    %v1022 = vadd.f32 0.0, %v1021
    %1023 = vmatmul.f32.gmra.mxu0 %v974
    %v1024 = vpop.f32.mrf.mxu0
    %v1025 = vadd.f32 0.0, %v1024
    %1026 = vmatmul.f32.gmra.mxu0 %v976
    %v1027 = vpop.f32.mrf.mxu0
    %v1028 = vadd.f32 0.0, %v1027
    %1029 = vmatmul.f32.gmra.mxu0 %v978
    %v1030 = vpop.f32.mrf.mxu0
    %v1031 = vadd.f32 0.0, %v1030
    %1032 = vmatmul.f32.gmra.mxu0 %v980
    %v1033 = vpop.f32.mrf.mxu0
    %v1034 = vadd.f32 0.0, %v1033
    %1035 = vmatmul.f32.gmra.mxu0 %v982
    %v1036 = vpop.f32.mrf.mxu0
    %v1037 = vadd.f32 0.0, %v1036
    %1038 = vmatmul.f32.gmra.mxu0 %v984
    %v1039 = vpop.f32.mrf.mxu0
    %v1040 = vadd.f32 0.0, %v1039
    %1041 = vmatmul.f32.gmra.mxu0 %v986
    %v1042 = vpop.f32.mrf.mxu0
    %v1043 = vadd.f32 0.0, %v1042
    %1044 = vdwg.mxu0
    %v1045 = vmul.f32 %v1022, 0.125
    %v1046 = vmul.f32 %v1025, 0.125
    %v1047 = vmul.f32 %v1028, 0.125
    %v1048 = vmul.f32 %v1031, 0.125
    %v1049 = vmul.f32 %v1034, 0.125
    %v1050 = vmul.f32 %v1037, 0.125
    %v1051 = vmul.f32 %v1040, 0.125
    %v1052 = vmul.f32 %v1043, 0.125
    %vm1053 = vcmp.eq.f32.partialorder %v332, 0.0
    %vm1054 = vcmp.eq.f32.partialorder %v333, 0.0
    %vm1055 = vcmp.eq.f32.partialorder %v334, 0.0
    %vm1056 = vcmp.eq.f32.partialorder %v335, 0.0
    %vm1057 = vcmp.eq.f32.partialorder %v336, 0.0
    %vm1058 = vcmp.eq.f32.partialorder %v337, 0.0
    %vm1059 = vcmp.eq.f32.partialorder %v338, 0.0
    %vm1060 = vcmp.eq.f32.partialorder %v339, 0.0
    %v1061 = vsel %vm1053, -1e+09, %v1045
    %v1062 = vsel %vm1054, -1e+09, %v1046
    %v1063 = vsel %vm1055, -1e+09, %v1047
    %v1064 = vsel %vm1056, -1e+09, %v1048
    %v1065 = vsel %vm1057, -1e+09, %v1049
    %v1066 = vsel %vm1058, -1e+09, %v1050
    %v1067 = vsel %vm1059, -1e+09, %v1051
    %v1068 = vsel %vm1060, -1e+09, %v1052
    %v1069 = vsel %vm571, %v1061, -inf
    %1070 = vmax.xlane.f32.xlu0 %v1069
    %v1071 = vpop.xlane.xlu0 %1070
    %v1072 = vsel %vm571, %v1062, -inf
    %1073 = vmax.xlane.f32.xlu0 %v1072
    %v1074 = vpop.xlane.xlu0 %1073
    %v1075 = vsel %vm571, %v1063, -inf
    %1076 = vmax.xlane.f32.xlu0 %v1075
    %v1077 = vpop.xlane.xlu0 %1076
    %v1078 = vsel %vm571, %v1064, -inf
    %1079 = vmax.xlane.f32.xlu0 %v1078
    %v1080 = vpop.xlane.xlu0 %1079
    %v1081 = vsel %vm571, %v1065, -inf
    %1082 = vmax.xlane.f32.xlu0 %v1081
    %v1083 = vpop.xlane.xlu0 %1082
    %v1084 = vsel %vm571, %v1066, -inf
    %1085 = vmax.xlane.f32.xlu0 %v1084
    %v1086 = vpop.xlane.xlu0 %1085
    %v1087 = vsel %vm571, %v1067, -inf
    %1088 = vmax.xlane.f32.xlu0 %v1087
    %v1089 = vpop.xlane.xlu0 %1088
    %v1090 = vsel %vm571, %v1068, -inf
    %1091 = vmax.xlane.f32.xlu0 %v1090
    %v1092 = vpop.xlane.xlu0 %1091
    %v1093 = vsub.f32 %v1061, %v1071
    %v1094 = vsub.f32 %v1062, %v1074
    %v1095 = vsub.f32 %v1063, %v1077
    %v1096 = vsub.f32 %v1064, %v1080
    %v1097 = vsub.f32 %v1065, %v1083
    %v1098 = vsub.f32 %v1066, %v1086
    %v1099 = vsub.f32 %v1067, %v1089
    %v1100 = vsub.f32 %v1068, %v1092
    %v1101 = vmul.f32 %v1093, 1.442695
    %v1102 = vpow.pop %v1101
    %v1103 = vmul.f32 %v1094, 1.442695
    %v1104 = vpow.pop %v1103
    %v1105 = vmul.f32 %v1095, 1.442695
    %v1106 = vpow.pop %v1105
    %v1107 = vmul.f32 %v1096, 1.442695
    %v1108 = vpow.pop %v1107
    %v1109 = vmul.f32 %v1097, 1.442695
    %v1110 = vpow.pop %v1109
    %v1111 = vmul.f32 %v1098, 1.442695
    %v1112 = vpow.pop %v1111
    %v1113 = vmul.f32 %v1099, 1.442695
    %v1114 = vpow.pop %v1113
    %v1115 = vmul.f32 %v1100, 1.442695
    %v1116 = vpow.pop %v1115
    %v1117 = vsel %vm571, %v1102, 0.0
    %1118 = vadd.xlane.f32.xlu0 %v1117
    %v1119 = vpop.xlane.xlu0 %1118
    %v1120 = vsel %vm571, %v1104, 0.0
    %1121 = vadd.xlane.f32.xlu0 %v1120
    %v1122 = vpop.xlane.xlu0 %1121
    %v1123 = vsel %vm571, %v1106, 0.0
    %1124 = vadd.xlane.f32.xlu0 %v1123
    %v1125 = vpop.xlane.xlu0 %1124
    %v1126 = vsel %vm571, %v1108, 0.0
    %1127 = vadd.xlane.f32.xlu0 %v1126
    %v1128 = vpop.xlane.xlu0 %1127
    %v1129 = vsel %vm571, %v1110, 0.0
    %1130 = vadd.xlane.f32.xlu0 %v1129
    %v1131 = vpop.xlane.xlu0 %1130
    %v1132 = vsel %vm571, %v1112, 0.0
    %1133 = vadd.xlane.f32.xlu0 %v1132
    %v1134 = vpop.xlane.xlu0 %1133
    %v1135 = vsel %vm571, %v1114, 0.0
    %1136 = vadd.xlane.f32.xlu0 %v1135
    %v1137 = vpop.xlane.xlu0 %1136
    %v1138 = vsel %vm571, %v1116, 0.0
    %1139 = vadd.xlane.f32.xlu0 %v1138
    %v1140 = vpop.xlane.xlu0 %1139
    %v1141 = vrcp.pop %v1119
    %v1142 = vrcp.pop %v1122
    %v1143 = vrcp.pop %v1125
    %v1144 = vrcp.pop %v1128
    %v1145 = vrcp.pop %v1131
    %v1146 = vrcp.pop %v1134
    %v1147 = vrcp.pop %v1137
    %v1148 = vrcp.pop %v1140
    %v1149 = vmul.f32 %v1102, %v1141
    %v1150 = vmul.f32 %v1104, %v1142
    %v1151 = vmul.f32 %v1106, %v1143
    %v1152 = vmul.f32 %v1108, %v1144
    %v1153 = vmul.f32 %v1110, %v1145
    %v1154 = vmul.f32 %v1112, %v1146
    %v1155 = vmul.f32 %v1114, %v1147
    %v1156 = vmul.f32 %v1116, %v1148
    %1157 = vrot.lane.b32.xlu0 %v939, 96
    %v1158 = vpop.permute.xlu0 %1157
    %1159 = vrot.lane.b32.xlu0 %v942, 96
    %v1160 = vpop.permute.xlu0 %1159
    %1161 = vrot.lane.b32.xlu0 %v961, 96
    %v1162 = vpop.permute.xlu0 %1161
    %1163 = vrot.lane.b32.xlu0 %v963, 96
    %v1164 = vpop.permute.xlu0 %1163
    %1165 = vrot.lane.b32.xlu0 %v965, 96
    %v1166 = vpop.permute.xlu0 %1165
    %1167 = vrot.lane.b32.xlu0 %v967, 96
    %v1168 = vpop.permute.xlu0 %1167
    %1169 = vrot.lane.b32.xlu0 %v969, 96
    %v1170 = vpop.permute.xlu0 %1169
    %1171 = vrot.lane.b32.xlu0 %v971, 96
    %v1172 = vpop.permute.xlu0 %1171
    %v1182 = vsel %vm571, %v1149, 0
    %v1185 = vsel %vm571, %v1150, 0
    %v1188 = vsel %vm571, %v1151, 0
    %v1191 = vsel %vm571, %v1152, 0
    %v1194 = vsel %vm571, %v1153, 0
    %v1197 = vsel %vm571, %v1154, 0
    %v1200 = vsel %vm571, %v1155, 0
    %v1203 = vsel %vm571, %v1156, 0
    %1205 = vmatpush.msra.mxu0 0.0
    %1206 = vmatpush.msra.mxu0 0.0
    %1207 = vmatpush.msra.mxu0 0.0
    %1208 = vmatpush.msra.mxu0 0.0
    %1209 = vmatpush.msra.mxu0 0.0
    %1210 = vmatpush.msra.mxu0 0.0
    %1211 = vmatpush.msra.mxu0 0.0
    %1212 = vmatpush.msra.mxu0 0.0
    %1213 = vmatpush.msra.mxu0 %v1172
    %1214 = vmatpush.msra.mxu0 %v1170
    %1215 = vmatpush.msra.mxu0 %v1168
    %1216 = vmatpush.msra.mxu0 %v1166
    %1217 = vmatpush.msra.mxu0 %v1164
    %1218 = vmatpush.msra.mxu0 %v1162
    %1219 = vmatpush.msra.mxu0 %v1160
    %1220 = vmatpush.msra.mxu0 %v1158
    %1221 = vmatmul.f32.gmra.mxu0 %v1182
    %v1222 = vpop.f32.mrf.mxu0
    %v1223 = vadd.f32 0.0, %v1222
    %1224 = vmatmul.f32.gmra.mxu0 %v1185
    %v1225 = vpop.f32.mrf.mxu0
    %v1226 = vadd.f32 0.0, %v1225
    %1227 = vmatmul.f32.gmra.mxu0 %v1188
    %v1228 = vpop.f32.mrf.mxu0
    %v1229 = vadd.f32 0.0, %v1228
    %1230 = vmatmul.f32.gmra.mxu0 %v1191
    %v1231 = vpop.f32.mrf.mxu0
    %v1232 = vadd.f32 0.0, %v1231
    %1233 = vmatmul.f32.gmra.mxu0 %v1194
    %v1234 = vpop.f32.mrf.mxu0
    %v1235 = vadd.f32 0.0, %v1234
    %1236 = vmatmul.f32.gmra.mxu0 %v1197
    %v1237 = vpop.f32.mrf.mxu0
    %v1238 = vadd.f32 0.0, %v1237
    %1239 = vmatmul.f32.gmra.mxu0 %v1200
    %v1240 = vpop.f32.mrf.mxu0
    %v1241 = vadd.f32 0.0, %v1240
    %1242 = vmatmul.f32.gmra.mxu0 %v1203
    %v1243 = vpop.f32.mrf.mxu0
    %v1244 = vadd.f32 0.0, %v1243
    %1245 = vdwg.mxu0
    %1248 = vrot.lane.b32.xlu0 %v1229, 8
    %v1249 = vpop.permute.xlu0 %1248
    %1250 = vrot.lane.b32.xlu0 %v1232, 8
    %v1251 = vpop.permute.xlu0 %1250
    %1256 = vrot.lane.b32.xlu0 %v1235, 16
    %v1257 = vpop.permute.xlu0 %1256
    %1258 = vrot.lane.b32.xlu0 %v1238, 16
    %v1259 = vpop.permute.xlu0 %1258
    %1264 = vrot.lane.b32.xlu0 %v1241, 24
    %v1265 = vpop.permute.xlu0 %1264
    %1266 = vrot.lane.b32.xlu0 %v1244, 24
    %v1267 = vpop.permute.xlu0 %1266
    %v1270 = vsel %vm473, %v1223, %v1249
    %v1271 = vsel %vm473, %v1226, %v1251
    %v1272 = vsel %vm775, %v1270, %v1257
    %v1273 = vsel %vm775, %v1271, %v1259
    %v1274 = vsel %vm778, %v1272, %v1265
    %v1275 = vsel %vm778, %v1273, %v1267
    %v1276 = vld [vmem:[#allocation14] sm:$0xff]
    %v1277 = vld [vmem:[#allocation14 + $0x8] sm:$0xff]
    %v1278 = vld [vmem:[#allocation14 + $0x10] sm:$0xff]
    %v1279 = vld [vmem:[#allocation14 + $0x18] sm:$0xff]
    %v1281 = vsel %vm342, %v1274, 0
    %v1284 = vsel %vm342, %v1275, 0
    %1286 = vmatpush.msra.mxu0 0.0
    %1287 = vmatpush.msra.mxu0 0.0
    %1288 = vmatpush.msra.mxu0 0.0
    %1289 = vmatpush.msra.mxu0 0.0
    %1290 = vmatpush.msra.mxu0 0.0
    %1291 = vmatpush.msra.mxu0 0.0
    %1292 = vmatpush.msra.mxu0 0.0
    %1293 = vmatpush.msra.mxu0 0.0
    %1294 = vmatpush.msra.mxu0 0.0
    %1295 = vmatpush.msra.mxu0 0.0
    %1296 = vmatpush.msra.mxu0 0.0
    %1297 = vmatpush.msra.mxu0 0.0
    %1298 = vmatpush.msra.mxu0 %v1279
    %1299 = vmatpush.msra.mxu0 %v1278
    %1300 = vmatpush.msra.mxu0 %v1277
    %1301 = vmatpush.msra.mxu0 %v1276
    %1302 = vmatmul.f32.gmra.mxu0 %v1281
    %v1303 = vpop.f32.mrf.mxu0
    %v1304 = vadd.f32 0.0, %v1303
    %1305 = vmatmul.f32.gmra.mxu0 %v1284
    %v1306 = vpop.f32.mrf.mxu0
    %v1307 = vadd.f32 0.0, %v1306
    %1308 = vdwg.mxu0
    %v1309 = vadd.f32 %v876, %v1304
    %v1310 = vadd.f32 %v877, %v1307
    %v1311 = vld [vmem:[#allocation17] sm:$0x1]
    %v1312 = vld [vmem:[#allocation19] sm:$0x1]
    %v1313 = vsel %vm342, %v1309, 0.0
    %1314 = vadd.xlane.f32.xlu0 %v1313
    %v1315 = vpop.xlane.xlu0 %1314
    %v1316 = vsel %vm342, %v1310, 0.0
    %1317 = vadd.xlane.f32.xlu0 %v1316
    %v1318 = vpop.xlane.xlu0 %1317
    %v1319 = vmul.f32 %v1315, %v355
    %v1320 = vmul.f32 %v1318, %v355
    %v1321 = vsub.f32 %v1309, %v1319
    %v1322 = vsub.f32 %v1310, %v1320
    %v1323 = vmul.f32 %v1321, %v1321
    %v1324 = vmul.f32 %v1322, %v1322
    %v1325 = vsel %vm342, %v1323, 0.0
    %1326 = vadd.xlane.f32.xlu0 %v1325
    %v1327 = vpop.xlane.xlu0 %1326
    %v1328 = vsel %vm342, %v1324, 0.0
    %1329 = vadd.xlane.f32.xlu0 %v1328
    %v1330 = vpop.xlane.xlu0 %1329
    %v1331 = vmul.f32 %v1327, 0.032258064
    %v1332 = vmul.f32 %v1330, 0.032258064
    %v1333 = vrsqrt.pop %v1331
    %v1334 = vmul.f32 %v1333, %v1331
    %v1335 = vmul.f32 %v1334, %v1333
    %v1336 = vmul.f32 0.5, %v1335
    %v1337 = vsub.f32 1.5, %v1336
    %v1338 = vmul.f32 %v1333, %v1337
    %v1339 = vmul.f32 %v1331, %v1338
    %vm1340 = vcmp.eq.f32.partialorder %v1331, inf
    %v1341 = vsel %vm1340, %v1331, %v1339
    %vm1342 = vcmp.eq.f32.partialorder %v1331, 0.0
    %v1343 = vand.u32 %v1331, 2147483648
    %v1344 = vsel %vm1342, %v1343, %v1341
    %v1345 = vrsqrt.pop %v1332
    %v1346 = vmul.f32 %v1345, %v1332
    %v1347 = vmul.f32 %v1346, %v1345
    %v1348 = vmul.f32 0.5, %v1347
    %v1349 = vsub.f32 1.5, %v1348
    %v1350 = vmul.f32 %v1345, %v1349
    %v1351 = vmul.f32 %v1332, %v1350
    %vm1352 = vcmp.eq.f32.partialorder %v1332, inf
    %v1353 = vsel %vm1352, %v1332, %v1351
    %vm1354 = vcmp.eq.f32.partialorder %v1332, 0.0
    %v1355 = vand.u32 %v1332, 2147483648
    %v1356 = vsel %vm1354, %v1355, %v1353
    %v1357 = vadd.f32 %v1344, 1e-06
    %v1358 = vadd.f32 %v1356, 1e-06
    %v1359 = vrcp.pop %v1357
    %v1360 = vrcp.pop %v1358
    %v1361 = vmul.f32 %v1321, %v1359
    %v1362 = vmul.f32 %v1322, %v1360
    %v1364 = vperm.slane %v1311, 0
    %v1366 = vmul.f32 %v1364, %v1361
    %v1367 = vmul.f32 %v1364, %v1362
    %v1369 = vperm.slane %v1312, 0
    %v1371 = vadd.f32 %v1366, %v1369
    %v1372 = vadd.f32 %v1367, %v1369
    %v1373 = vld [vmem:[#allocation23] sm:$0xff]
    %v1374 = vld [vmem:[#allocation23 + $0x8] sm:$0xff]
    %v1375 = vld [vmem:[#allocation23 + $0x10] sm:$0xff]
    %v1376 = vld [vmem:[#allocation23 + $0x18] sm:$0xff]
    %v1377 = vld [vmem:[#allocation25] sm:$0x1]
    %v1379 = vperm.slane %v1377, 0
    %v1382 = vsel %vm342, %v1371, 0
    %v1385 = vsel %vm342, %v1372, 0
    %1387 = vmatpush.msra.mxu0 0.0
    %1388 = vmatpush.msra.mxu0 0.0
    %1389 = vmatpush.msra.mxu0 0.0
    %1390 = vmatpush.msra.mxu0 0.0
    %1391 = vmatpush.msra.mxu0 0.0
    %1392 = vmatpush.msra.mxu0 0.0
    %1393 = vmatpush.msra.mxu0 0.0
    %1394 = vmatpush.msra.mxu0 0.0
    %1395 = vmatpush.msra.mxu0 0.0
    %1396 = vmatpush.msra.mxu0 0.0
    %1397 = vmatpush.msra.mxu0 0.0
    %1398 = vmatpush.msra.mxu0 0.0
    %1399 = vmatpush.msra.mxu0 %v1376
    %1400 = vmatpush.msra.mxu0 %v1375
    %1401 = vmatpush.msra.mxu0 %v1374
    %1402 = vmatpush.msra.mxu0 %v1373
    %1403 = vmatmul.f32.gmra.mxu0 %v1382
    %v1404 = vpop.f32.mrf.mxu0
    %v1405 = vadd.f32 %v1379, %v1404
    %1406 = vmatmul.f32.gmra.mxu0 %v1385
    %v1407 = vpop.f32.mrf.mxu0
    %v1408 = vadd.f32 %v1379, %v1407
    %1409 = vdwg.mxu0
    %v1410 = vmax.f32 %v1405, 0.0
    %v1411 = vmax.f32 %v1408, 0.0
    %v1412 = vld [vmem:[%s19] sm:$0xff]
    %v1413 = vld [vmem:[%s19 + $0x8] sm:$0xff]
    %v1414 = vld [vmem:[%s19 + $0x10] sm:$0xff]
    %v1415 = vld [vmem:[%s19 + $0x18] sm:$0xff]
    %v1416 = vld [vmem:[%s19 + $0x20] sm:$0xff]
    %v1417 = vld [vmem:[%s19 + $0x28] sm:$0xff]
    %v1418 = vld [vmem:[%s19 + $0x30] sm:$0xff]
    %v1419 = vld [vmem:[%s19 + $0x38] sm:$0xff]
    %v1420 = vld [vmem:[#allocation26] sm:$0x1]
    %v1422 = vperm.slane %v1420, 0
    %v1425 = vsel %vm571, %v1410, 0
    %v1428 = vsel %vm571, %v1411, 0
    %1430 = vmatpush.msra.mxu0 0.0
    %1431 = vmatpush.msra.mxu0 0.0
    %1432 = vmatpush.msra.mxu0 0.0
    %1433 = vmatpush.msra.mxu0 0.0
    %1434 = vmatpush.msra.mxu0 0.0
    %1435 = vmatpush.msra.mxu0 0.0
    %1436 = vmatpush.msra.mxu0 0.0
    %1437 = vmatpush.msra.mxu0 0.0
    %1438 = vmatpush.msra.mxu0 %v1419
    %1439 = vmatpush.msra.mxu0 %v1418
    %1440 = vmatpush.msra.mxu0 %v1417
    %1441 = vmatpush.msra.mxu0 %v1416
    %1442 = vmatpush.msra.mxu0 %v1415
    %1443 = vmatpush.msra.mxu0 %v1414
    %1444 = vmatpush.msra.mxu0 %v1413
    %1445 = vmatpush.msra.mxu0 %v1412
    %1446 = vmatmul.f32.gmra.mxu0 %v1425
    %v1447 = vpop.f32.mrf.mxu0
    %v1448 = vadd.f32 %v1422, %v1447
    %1449 = vmatmul.f32.gmra.mxu0 %v1428
    %v1450 = vpop.f32.mrf.mxu0
    %v1451 = vadd.f32 %v1422, %v1450
    %1452 = vdwg.mxu0
    %v1453 = vadd.f32 %v1371, %v1448
    %v1454 = vadd.f32 %v1372, %v1451
    %v1455 = vld [vmem:[#allocation20] sm:$0x1]
    %v1456 = vld [vmem:[#allocation22] sm:$0x1]
    %v1457 = vsel %vm342, %v1453, 0.0
    %1458 = vadd.xlane.f32.xlu0 %v1457
    %v1459 = vpop.xlane.xlu0 %1458
    %v1460 = vsel %vm342, %v1454, 0.0
    %1461 = vadd.xlane.f32.xlu0 %v1460
    %v1462 = vpop.xlane.xlu0 %1461
    %v1463 = vmul.f32 %v1459, %v355
    %v1464 = vmul.f32 %v1462, %v355
    %v1465 = vsub.f32 %v1453, %v1463
    %v1466 = vsub.f32 %v1454, %v1464
    %v1467 = vmul.f32 %v1465, %v1465
    %v1468 = vmul.f32 %v1466, %v1466
    %v1469 = vsel %vm342, %v1467, 0.0
    %1470 = vadd.xlane.f32.xlu0 %v1469
    %v1471 = vpop.xlane.xlu0 %1470
    %v1472 = vsel %vm342, %v1468, 0.0
    %1473 = vadd.xlane.f32.xlu0 %v1472
    %v1474 = vpop.xlane.xlu0 %1473
    %v1475 = vmul.f32 %v1471, 0.032258064
    %v1476 = vmul.f32 %v1474, 0.032258064
    %v1477 = vrsqrt.pop %v1475
    %v1478 = vmul.f32 %v1477, %v1475
    %v1479 = vmul.f32 %v1478, %v1477
    %v1480 = vmul.f32 0.5, %v1479
    %v1481 = vsub.f32 1.5, %v1480
    %v1482 = vmul.f32 %v1477, %v1481
    %v1483 = vmul.f32 %v1475, %v1482
    %vm1484 = vcmp.eq.f32.partialorder %v1475, inf
    %v1485 = vsel %vm1484, %v1475, %v1483
    %vm1486 = vcmp.eq.f32.partialorder %v1475, 0.0
    %v1487 = vand.u32 %v1475, 2147483648
    %v1488 = vsel %vm1486, %v1487, %v1485
    %v1489 = vrsqrt.pop %v1476
    %v1490 = vmul.f32 %v1489, %v1476
    %v1491 = vmul.f32 %v1490, %v1489
    %v1492 = vmul.f32 0.5, %v1491
    %v1493 = vsub.f32 1.5, %v1492
    %v1494 = vmul.f32 %v1489, %v1493
    %v1495 = vmul.f32 %v1476, %v1494
    %vm1496 = vcmp.eq.f32.partialorder %v1476, inf
    %v1497 = vsel %vm1496, %v1476, %v1495
    %vm1498 = vcmp.eq.f32.partialorder %v1476, 0.0
    %v1499 = vand.u32 %v1476, 2147483648
    %v1500 = vsel %vm1498, %v1499, %v1497
    %v1501 = vadd.f32 %v1488, 1e-06
    %v1502 = vadd.f32 %v1500, 1e-06
    %v1503 = vrcp.pop %v1501
    %v1504 = vrcp.pop %v1502
    %v1505 = vmul.f32 %v1465, %v1503
    %v1506 = vmul.f32 %v1466, %v1504
    %v1508 = vperm.slane %v1455, 0
    %v1510 = vmul.f32 %v1508, %v1505
    %v1511 = vmul.f32 %v1508, %v1506
    %v1513 = vperm.slane %v1456, 0
    %v1515 = vadd.f32 %v1510, %v1513
    %v1516 = vadd.f32 %v1511, %v1513
    %s1517 = scalar_lea.vmem %s6, 32
    %v1518 = vld [vmem:[%s1517] sm:$0xff]
    %v1519 = vld [vmem:[%s1517 + $0x8] sm:$0xff]
    %v1520 = vld [vmem:[%s1517 + $0x10] sm:$0xff]
    %v1521 = vld [vmem:[%s1517 + $0x18] sm:$0xff]
    %v1523 = vsel %vm342, %v1515, 0
    %v1526 = vsel %vm342, %v1516, 0
    %1528 = vmatpush.msra.mxu0 0.0
    %1529 = vmatpush.msra.mxu0 0.0
    %1530 = vmatpush.msra.mxu0 0.0
    %1531 = vmatpush.msra.mxu0 0.0
    %1532 = vmatpush.msra.mxu0 0.0
    %1533 = vmatpush.msra.mxu0 0.0
    %1534 = vmatpush.msra.mxu0 0.0
    %1535 = vmatpush.msra.mxu0 0.0
    %1536 = vmatpush.msra.mxu0 0.0
    %1537 = vmatpush.msra.mxu0 0.0
    %1538 = vmatpush.msra.mxu0 0.0
    %1539 = vmatpush.msra.mxu0 0.0
    %1540 = vmatpush.msra.mxu0 %v1521
    %1541 = vmatpush.msra.mxu0 %v1520
    %1542 = vmatpush.msra.mxu0 %v1519
    %1543 = vmatpush.msra.mxu0 %v1518
    %1544 = vmatmul.f32.gmra.mxu0 %v1523
    %v1545 = vpop.f32.mrf.mxu0
    %v1546 = vadd.f32 0.0, %v1545
    %1547 = vmatmul.f32.gmra.mxu0 %v1526
    %v1548 = vpop.f32.mrf.mxu0
    %v1549 = vadd.f32 0.0, %v1548
    %1550 = vdwg.mxu0
    %1553 = vrot.lane.b32.xlu0 %v1546, 120
    %v1554 = vpop.permute.xlu0 %1553
    %1555 = vrot.lane.b32.xlu0 %v1549, 120
    %v1556 = vpop.permute.xlu0 %1555
    %1557 = vrot.lane.b32.xlu0 %v1546, 112
    %v1558 = vpop.permute.xlu0 %1557
    %1559 = vrot.lane.b32.xlu0 %v1549, 112
    %v1560 = vpop.permute.xlu0 %1559
    %1561 = vrot.lane.b32.xlu0 %v1546, 104
    %v1562 = vpop.permute.xlu0 %1561
    %1563 = vrot.lane.b32.xlu0 %v1549, 104
    %v1564 = vpop.permute.xlu0 %1563
    %1565 = vrot.lane.b32.xlu0 %v1546, 96
    %v1566 = vpop.permute.xlu0 %1565
    %1567 = vrot.lane.b32.xlu0 %v1549, 96
    %v1568 = vpop.permute.xlu0 %1567
    %1569 = vrot.lane.b32.xlu0 %v1554, 96
    %v1570 = vpop.permute.xlu0 %1569
    %1571 = vrot.lane.b32.xlu0 %v1556, 96
    %v1572 = vpop.permute.xlu0 %1571
    %1573 = vrot.lane.b32.xlu0 %v1558, 96
    %v1574 = vpop.permute.xlu0 %1573
    %1575 = vrot.lane.b32.xlu0 %v1560, 96
    %v1576 = vpop.permute.xlu0 %1575
    %1577 = vrot.lane.b32.xlu0 %v1562, 96
    %v1578 = vpop.permute.xlu0 %1577
    %1579 = vrot.lane.b32.xlu0 %v1564, 96
    %v1580 = vpop.permute.xlu0 %1579
    %v1581 = vsel %vm473, %v1546, 0
    %v1583 = vsel %vm473, %v1549, 0
    %v1585 = vsel %vm473, %v1554, 0
    %v1587 = vsel %vm473, %v1556, 0
    %v1589 = vsel %vm473, %v1558, 0
    %v1591 = vsel %vm473, %v1560, 0
    %v1593 = vsel %vm473, %v1562, 0
    %v1595 = vsel %vm473, %v1564, 0
    %v1597 = vsel %vm473, %v1566, 0
    %v1599 = vsel %vm473, %v1568, 0
    %v1601 = vsel %vm473, %v1570, 0
    %v1603 = vsel %vm473, %v1572, 0
    %v1605 = vsel %vm473, %v1574, 0
    %v1607 = vsel %vm473, %v1576, 0
    %v1609 = vsel %vm473, %v1578, 0
    %v1611 = vsel %vm473, %v1580, 0
    %1613 = vmatpush.xpose.msra.mxu0 0.0
    %1614 = vmatpush.xpose.msra.mxu0 0.0
    %1615 = vmatpush.xpose.msra.mxu0 0.0
    %1616 = vmatpush.xpose.msra.mxu0 0.0
    %1617 = vmatpush.xpose.msra.mxu0 0.0
    %1618 = vmatpush.xpose.msra.mxu0 0.0
    %1619 = vmatpush.xpose.msra.mxu0 0.0
    %1620 = vmatpush.xpose.msra.mxu0 0.0
    %1621 = vmatpush.xpose.msra.mxu0 %v1611
    %1622 = vmatpush.xpose.msra.mxu0 %v1609
    %1623 = vmatpush.xpose.msra.mxu0 %v1607
    %1624 = vmatpush.xpose.msra.mxu0 %v1605
    %1625 = vmatpush.xpose.msra.mxu0 %v1603
    %1626 = vmatpush.xpose.msra.mxu0 %v1601
    %1627 = vmatpush.xpose.msra.mxu0 %v1599
    %1628 = vmatpush.xpose.msra.mxu0 %v1597
    %1629 = vmatmul.f32.gmra.mxu0 %v1581
    %v1630 = vpop.f32.mrf.mxu0
    %v1631 = vadd.f32 0.0, %v1630
    %1632 = vmatmul.f32.gmra.mxu0 %v1583
    %v1633 = vpop.f32.mrf.mxu0
    %v1634 = vadd.f32 0.0, %v1633
    %1635 = vmatmul.f32.gmra.mxu0 %v1585
    %v1636 = vpop.f32.mrf.mxu0
    %v1637 = vadd.f32 0.0, %v1636
    %1638 = vmatmul.f32.gmra.mxu0 %v1587
    %v1639 = vpop.f32.mrf.mxu0
    %v1640 = vadd.f32 0.0, %v1639
    %1641 = vmatmul.f32.gmra.mxu0 %v1589
    %v1642 = vpop.f32.mrf.mxu0
    %v1643 = vadd.f32 0.0, %v1642
    %1644 = vmatmul.f32.gmra.mxu0 %v1591
    %v1645 = vpop.f32.mrf.mxu0
    %v1646 = vadd.f32 0.0, %v1645
    %1647 = vmatmul.f32.gmra.mxu0 %v1593
    %v1648 = vpop.f32.mrf.mxu0
    %v1649 = vadd.f32 0.0, %v1648
    %1650 = vmatmul.f32.gmra.mxu0 %v1595
    %v1651 = vpop.f32.mrf.mxu0
    %v1652 = vadd.f32 0.0, %v1651
    %1653 = vdwg.mxu0
    %v1654 = vmul.f32 %v1631, 0.125
    %v1655 = vmul.f32 %v1634, 0.125
    %v1656 = vmul.f32 %v1637, 0.125
    %v1657 = vmul.f32 %v1640, 0.125
    %v1658 = vmul.f32 %v1643, 0.125
    %v1659 = vmul.f32 %v1646, 0.125
    %v1660 = vmul.f32 %v1649, 0.125
    %v1661 = vmul.f32 %v1652, 0.125
    %v1662 = vsel %vm555, -1e+09, %v1654
    %v1663 = vsel %vm556, -1e+09, %v1655
    %v1664 = vsel %vm557, -1e+09, %v1656
    %v1665 = vsel %vm558, -1e+09, %v1657
    %v1666 = vsel %vm559, -1e+09, %v1658
    %v1667 = vsel %vm560, -1e+09, %v1659
    %v1668 = vsel %vm561, -1e+09, %v1660
    %v1669 = vsel %vm562, -1e+09, %v1661
    %v1670 = vsel %vm571, %v1662, -inf
    %1671 = vmax.xlane.f32.xlu0 %v1670
    %v1672 = vpop.xlane.xlu0 %1671
    %v1673 = vsel %vm571, %v1663, -inf
    %1674 = vmax.xlane.f32.xlu0 %v1673
    %v1675 = vpop.xlane.xlu0 %1674
    %v1676 = vsel %vm571, %v1664, -inf
    %1677 = vmax.xlane.f32.xlu0 %v1676
    %v1678 = vpop.xlane.xlu0 %1677
    %v1679 = vsel %vm571, %v1665, -inf
    %1680 = vmax.xlane.f32.xlu0 %v1679
    %v1681 = vpop.xlane.xlu0 %1680
    %v1682 = vsel %vm571, %v1666, -inf
    %1683 = vmax.xlane.f32.xlu0 %v1682
    %v1684 = vpop.xlane.xlu0 %1683
    %v1685 = vsel %vm571, %v1667, -inf
    %1686 = vmax.xlane.f32.xlu0 %v1685
    %v1687 = vpop.xlane.xlu0 %1686
    %v1688 = vsel %vm571, %v1668, -inf
    %1689 = vmax.xlane.f32.xlu0 %v1688
    %v1690 = vpop.xlane.xlu0 %1689
    %v1691 = vsel %vm571, %v1669, -inf
    %1692 = vmax.xlane.f32.xlu0 %v1691
    %v1693 = vpop.xlane.xlu0 %1692
    %v1694 = vsub.f32 %v1662, %v1672
    %v1695 = vsub.f32 %v1663, %v1675
    %v1696 = vsub.f32 %v1664, %v1678
    %v1697 = vsub.f32 %v1665, %v1681
    %v1698 = vsub.f32 %v1666, %v1684
    %v1699 = vsub.f32 %v1667, %v1687
    %v1700 = vsub.f32 %v1668, %v1690
    %v1701 = vsub.f32 %v1669, %v1693
    %v1702 = vmul.f32 %v1694, 1.442695
    %v1703 = vpow.pop %v1702
    %v1704 = vmul.f32 %v1695, 1.442695
    %v1705 = vpow.pop %v1704
    %v1706 = vmul.f32 %v1696, 1.442695
    %v1707 = vpow.pop %v1706
    %v1708 = vmul.f32 %v1697, 1.442695
    %v1709 = vpow.pop %v1708
    %v1710 = vmul.f32 %v1698, 1.442695
    %v1711 = vpow.pop %v1710
    %v1712 = vmul.f32 %v1699, 1.442695
    %v1713 = vpow.pop %v1712
    %v1714 = vmul.f32 %v1700, 1.442695
    %v1715 = vpow.pop %v1714
    %v1716 = vmul.f32 %v1701, 1.442695
    %v1717 = vpow.pop %v1716
    %v1718 = vsel %vm571, %v1703, 0.0
    %1719 = vadd.xlane.f32.xlu0 %v1718
    %v1720 = vpop.xlane.xlu0 %1719
    %v1721 = vsel %vm571, %v1705, 0.0
    %1722 = vadd.xlane.f32.xlu0 %v1721
    %v1723 = vpop.xlane.xlu0 %1722
    %v1724 = vsel %vm571, %v1707, 0.0
    %1725 = vadd.xlane.f32.xlu0 %v1724
    %v1726 = vpop.xlane.xlu0 %1725
    %v1727 = vsel %vm571, %v1709, 0.0
    %1728 = vadd.xlane.f32.xlu0 %v1727
    %v1729 = vpop.xlane.xlu0 %1728
    %v1730 = vsel %vm571, %v1711, 0.0
    %1731 = vadd.xlane.f32.xlu0 %v1730
    %v1732 = vpop.xlane.xlu0 %1731
    %v1733 = vsel %vm571, %v1713, 0.0
    %1734 = vadd.xlane.f32.xlu0 %v1733
    %v1735 = vpop.xlane.xlu0 %1734
    %v1736 = vsel %vm571, %v1715, 0.0
    %1737 = vadd.xlane.f32.xlu0 %v1736
    %v1738 = vpop.xlane.xlu0 %1737
    %v1739 = vsel %vm571, %v1717, 0.0
    %1740 = vadd.xlane.f32.xlu0 %v1739
    %v1741 = vpop.xlane.xlu0 %1740
    %v1742 = vrcp.pop %v1720
    %v1743 = vrcp.pop %v1723
    %v1744 = vrcp.pop %v1726
    %v1745 = vrcp.pop %v1729
    %v1746 = vrcp.pop %v1732
    %v1747 = vrcp.pop %v1735
    %v1748 = vrcp.pop %v1738
    %v1749 = vrcp.pop %v1741
    %v1750 = vmul.f32 %v1703, %v1742
    %v1751 = vmul.f32 %v1705, %v1743
    %v1752 = vmul.f32 %v1707, %v1744
    %v1753 = vmul.f32 %v1709, %v1745
    %v1754 = vmul.f32 %v1711, %v1746
    %v1755 = vmul.f32 %v1713, %v1747
    %v1756 = vmul.f32 %v1715, %v1748
    %v1757 = vmul.f32 %v1717, %v1749
    %1758 = vrot.lane.b32.xlu0 %v1546, 64
    %v1759 = vpop.permute.xlu0 %1758
    %1760 = vrot.lane.b32.xlu0 %v1549, 64
    %v1761 = vpop.permute.xlu0 %1760
    %1762 = vrot.lane.b32.xlu0 %v1554, 64
    %v1763 = vpop.permute.xlu0 %1762
    %1764 = vrot.lane.b32.xlu0 %v1556, 64
    %v1765 = vpop.permute.xlu0 %1764
    %1766 = vrot.lane.b32.xlu0 %v1558, 64
    %v1767 = vpop.permute.xlu0 %1766
    %1768 = vrot.lane.b32.xlu0 %v1560, 64
    %v1769 = vpop.permute.xlu0 %1768
    %1770 = vrot.lane.b32.xlu0 %v1562, 64
    %v1771 = vpop.permute.xlu0 %1770
    %1772 = vrot.lane.b32.xlu0 %v1564, 64
    %v1773 = vpop.permute.xlu0 %1772
    %v1783 = vsel %vm571, %v1750, 0
    %v1786 = vsel %vm571, %v1751, 0
    %v1789 = vsel %vm571, %v1752, 0
    %v1792 = vsel %vm571, %v1753, 0
    %v1795 = vsel %vm571, %v1754, 0
    %v1798 = vsel %vm571, %v1755, 0
    %v1801 = vsel %vm571, %v1756, 0
    %v1804 = vsel %vm571, %v1757, 0
    %1806 = vmatpush.msra.mxu0 0.0
    %1807 = vmatpush.msra.mxu0 0.0
    %1808 = vmatpush.msra.mxu0 0.0
    %1809 = vmatpush.msra.mxu0 0.0
    %1810 = vmatpush.msra.mxu0 0.0
    %1811 = vmatpush.msra.mxu0 0.0
    %1812 = vmatpush.msra.mxu0 0.0
    %1813 = vmatpush.msra.mxu0 0.0
    %1814 = vmatpush.msra.mxu0 %v1773
    %1815 = vmatpush.msra.mxu0 %v1771
    %1816 = vmatpush.msra.mxu0 %v1769
    %1817 = vmatpush.msra.mxu0 %v1767
    %1818 = vmatpush.msra.mxu0 %v1765
    %1819 = vmatpush.msra.mxu0 %v1763
    %1820 = vmatpush.msra.mxu0 %v1761
    %1821 = vmatpush.msra.mxu0 %v1759
    %1822 = vmatmul.f32.gmra.mxu0 %v1783
    %v1823 = vpop.f32.mrf.mxu0
    %v1824 = vadd.f32 0.0, %v1823
    %1825 = vmatmul.f32.gmra.mxu0 %v1786
    %v1826 = vpop.f32.mrf.mxu0
    %v1827 = vadd.f32 0.0, %v1826
    %1828 = vmatmul.f32.gmra.mxu0 %v1789
    %v1829 = vpop.f32.mrf.mxu0
    %v1830 = vadd.f32 0.0, %v1829
    %1831 = vmatmul.f32.gmra.mxu0 %v1792
    %v1832 = vpop.f32.mrf.mxu0
    %v1833 = vadd.f32 0.0, %v1832
    %1834 = vmatmul.f32.gmra.mxu0 %v1795
    %v1835 = vpop.f32.mrf.mxu0
    %v1836 = vadd.f32 0.0, %v1835
    %1837 = vmatmul.f32.gmra.mxu0 %v1798
    %v1838 = vpop.f32.mrf.mxu0
    %v1839 = vadd.f32 0.0, %v1838
    %1840 = vmatmul.f32.gmra.mxu0 %v1801
    %v1841 = vpop.f32.mrf.mxu0
    %v1842 = vadd.f32 0.0, %v1841
    %1843 = vmatmul.f32.gmra.mxu0 %v1804
    %v1844 = vpop.f32.mrf.mxu0
    %v1845 = vadd.f32 0.0, %v1844
    %1846 = vdwg.mxu0
    %1849 = vrot.lane.b32.xlu0 %v1830, 8
    %v1850 = vpop.permute.xlu0 %1849
    %1851 = vrot.lane.b32.xlu0 %v1833, 8
    %v1852 = vpop.permute.xlu0 %1851
    %1857 = vrot.lane.b32.xlu0 %v1836, 16
    %v1858 = vpop.permute.xlu0 %1857
    %1859 = vrot.lane.b32.xlu0 %v1839, 16
    %v1860 = vpop.permute.xlu0 %1859
    %1865 = vrot.lane.b32.xlu0 %v1842, 24
    %v1866 = vpop.permute.xlu0 %1865
    %1867 = vrot.lane.b32.xlu0 %v1845, 24
    %v1868 = vpop.permute.xlu0 %1867
    %v1871 = vsel %vm473, %v1824, %v1850
    %v1872 = vsel %vm473, %v1827, %v1852
    %v1873 = vsel %vm775, %v1871, %v1858
    %v1874 = vsel %vm775, %v1872, %v1860
    %v1875 = vsel %vm778, %v1873, %v1866
    %v1876 = vsel %vm778, %v1874, %v1868
    %s1877 = scalar_lea.vmem [#allocation10], 32
    %v1878 = vld [vmem:[%s1877] sm:$0xff]
    %v1879 = vld [vmem:[%s1877 + $0x8] sm:$0xff]
    %v1880 = vld [vmem:[%s1877 + $0x10] sm:$0xff]
    %v1881 = vld [vmem:[%s1877 + $0x18] sm:$0xff]
    %v1883 = vsel %vm342, %v1875, 0
    %v1886 = vsel %vm342, %v1876, 0
    %1888 = vmatpush.msra.mxu0 0.0
    %1889 = vmatpush.msra.mxu0 0.0
    %1890 = vmatpush.msra.mxu0 0.0
    %1891 = vmatpush.msra.mxu0 0.0
    %1892 = vmatpush.msra.mxu0 0.0
    %1893 = vmatpush.msra.mxu0 0.0
    %1894 = vmatpush.msra.mxu0 0.0
    %1895 = vmatpush.msra.mxu0 0.0
    %1896 = vmatpush.msra.mxu0 0.0
    %1897 = vmatpush.msra.mxu0 0.0
    %1898 = vmatpush.msra.mxu0 0.0
    %1899 = vmatpush.msra.mxu0 0.0
    %1900 = vmatpush.msra.mxu0 %v1881
    %1901 = vmatpush.msra.mxu0 %v1880
    %1902 = vmatpush.msra.mxu0 %v1879
    %1903 = vmatpush.msra.mxu0 %v1878
    %1904 = vmatmul.f32.gmra.mxu0 %v1883
    %v1905 = vpop.f32.mrf.mxu0
    %v1906 = vadd.f32 0.0, %v1905
    %1907 = vmatmul.f32.gmra.mxu0 %v1886
    %v1908 = vpop.f32.mrf.mxu0
    %v1909 = vadd.f32 0.0, %v1908
    %1910 = vdwg.mxu0
    %v1911 = vadd.f32 %v1515, %v1906
    %v1912 = vadd.f32 %v1516, %v1909
    %s1913 = scalar_lea.vmem %s11, 1
    %v1914 = vld [vmem:[%s1913] sm:$0x1]
    %s1915 = scalar_lea.vmem [#allocation16], 1
    %v1916 = vld [vmem:[%s1915] sm:$0x1]
    %v1917 = vsel %vm342, %v1911, 0.0
    %1918 = vadd.xlane.f32.xlu0 %v1917
    %v1919 = vpop.xlane.xlu0 %1918
    %v1920 = vsel %vm342, %v1912, 0.0
    %1921 = vadd.xlane.f32.xlu0 %v1920
    %v1922 = vpop.xlane.xlu0 %1921
    %v1923 = vmul.f32 %v1919, %v355
    %v1924 = vmul.f32 %v1922, %v355
    %v1925 = vsub.f32 %v1911, %v1923
    %v1926 = vsub.f32 %v1912, %v1924
    %v1927 = vmul.f32 %v1925, %v1925
    %v1928 = vmul.f32 %v1926, %v1926
    %v1929 = vsel %vm342, %v1927, 0.0
    %1930 = vadd.xlane.f32.xlu0 %v1929
    %v1931 = vpop.xlane.xlu0 %1930
    %v1932 = vsel %vm342, %v1928, 0.0
    %1933 = vadd.xlane.f32.xlu0 %v1932
    %v1934 = vpop.xlane.xlu0 %1933
    %v1935 = vmul.f32 %v1931, 0.032258064
    %v1936 = vmul.f32 %v1934, 0.032258064
    %v1937 = vrsqrt.pop %v1935
    %v1938 = vmul.f32 %v1937, %v1935
    %v1939 = vmul.f32 %v1938, %v1937
    %v1940 = vmul.f32 0.5, %v1939
    %v1941 = vsub.f32 1.5, %v1940
    %v1942 = vmul.f32 %v1937, %v1941
    %v1943 = vmul.f32 %v1935, %v1942
    %vm1944 = vcmp.eq.f32.partialorder %v1935, inf
    %v1945 = vsel %vm1944, %v1935, %v1943
    %vm1946 = vcmp.eq.f32.partialorder %v1935, 0.0
    %v1947 = vand.u32 %v1935, 2147483648
    %v1948 = vsel %vm1946, %v1947, %v1945
    %v1949 = vrsqrt.pop %v1936
    %v1950 = vmul.f32 %v1949, %v1936
    %v1951 = vmul.f32 %v1950, %v1949
    %v1952 = vmul.f32 0.5, %v1951
    %v1953 = vsub.f32 1.5, %v1952
    %v1954 = vmul.f32 %v1949, %v1953
    %v1955 = vmul.f32 %v1936, %v1954
    %vm1956 = vcmp.eq.f32.partialorder %v1936, inf
    %v1957 = vsel %vm1956, %v1936, %v1955
    %vm1958 = vcmp.eq.f32.partialorder %v1936, 0.0
    %v1959 = vand.u32 %v1936, 2147483648
    %v1960 = vsel %vm1958, %v1959, %v1957
    %v1961 = vadd.f32 %v1948, 1e-06
    %v1962 = vadd.f32 %v1960, 1e-06
    %v1963 = vrcp.pop %v1961
    %v1964 = vrcp.pop %v1962
    %v1965 = vmul.f32 %v1925, %v1963
    %v1966 = vmul.f32 %v1926, %v1964
    %v1968 = vperm.slane %v1914, 0
    %v1970 = vmul.f32 %v1968, %v1965
    %v1971 = vmul.f32 %v1968, %v1966
    %v1973 = vperm.slane %v1916, 0
    %v1975 = vadd.f32 %v1970, %v1973
    %v1976 = vadd.f32 %v1971, %v1973
    %s1977 = scalar_lea.vmem [#allocation11], 32
    %v1978 = vld [vmem:[%s1977] sm:$0xff]
    %v1979 = vld [vmem:[%s1977 + $0x8] sm:$0xff]
    %v1980 = vld [vmem:[%s1977 + $0x10] sm:$0xff]
    %v1981 = vld [vmem:[%s1977 + $0x18] sm:$0xff]
    %v1983 = vsel %vm342, %v1975, 0
    %v1986 = vsel %vm342, %v1976, 0
    %1988 = vmatpush.msra.mxu0 0.0
    %1989 = vmatpush.msra.mxu0 0.0
    %1990 = vmatpush.msra.mxu0 0.0
    %1991 = vmatpush.msra.mxu0 0.0
    %1992 = vmatpush.msra.mxu0 0.0
    %1993 = vmatpush.msra.mxu0 0.0
    %1994 = vmatpush.msra.mxu0 0.0
    %1995 = vmatpush.msra.mxu0 0.0
    %1996 = vmatpush.msra.mxu0 0.0
    %1997 = vmatpush.msra.mxu0 0.0
    %1998 = vmatpush.msra.mxu0 0.0
    %1999 = vmatpush.msra.mxu0 0.0
    %2000 = vmatpush.msra.mxu0 %v1981
    %2001 = vmatpush.msra.mxu0 %v1980
    %2002 = vmatpush.msra.mxu0 %v1979
    %2003 = vmatpush.msra.mxu0 %v1978
    %2004 = vmatmul.f32.gmra.mxu0 %v1983
    %v2005 = vpop.f32.mrf.mxu0
    %v2006 = vadd.f32 0.0, %v2005
    %2007 = vmatmul.f32.gmra.mxu0 %v1986
    %v2008 = vpop.f32.mrf.mxu0
    %v2009 = vadd.f32 0.0, %v2008
    %2010 = vdwg.mxu0
    %s2011 = scalar_lea.vmem [#allocation13], 32
    %v2012 = vld [vmem:[%s2011] sm:$0xff]
    %v2013 = vld [vmem:[%s2011 + $0x8] sm:$0xff]
    %v2014 = vld [vmem:[%s2011 + $0x10] sm:$0xff]
    %v2015 = vld [vmem:[%s2011 + $0x18] sm:$0xff]
    %2016 = vmatpush.msra.mxu0 0.0
    %2017 = vmatpush.msra.mxu0 0.0
    %2018 = vmatpush.msra.mxu0 0.0
    %2019 = vmatpush.msra.mxu0 0.0
    %2020 = vmatpush.msra.mxu0 0.0
    %2021 = vmatpush.msra.mxu0 0.0
    %2022 = vmatpush.msra.mxu0 0.0
    %2023 = vmatpush.msra.mxu0 0.0
    %2024 = vmatpush.msra.mxu0 0.0
    %2025 = vmatpush.msra.mxu0 0.0
    %2026 = vmatpush.msra.mxu0 0.0
    %2027 = vmatpush.msra.mxu0 0.0
    %2028 = vmatpush.msra.mxu0 %v2015
    %2029 = vmatpush.msra.mxu0 %v2014
    %2030 = vmatpush.msra.mxu0 %v2013
    %2031 = vmatpush.msra.mxu0 %v2012
    %2032 = vmatmul.f32.gmra.mxu0 %v916
    %v2033 = vpop.f32.mrf.mxu0
    %v2034 = vadd.f32 0.0, %v2033
    %2035 = vmatmul.f32.gmra.mxu0 %v919
    %v2036 = vpop.f32.mrf.mxu0
    %v2037 = vadd.f32 0.0, %v2036
    %2038 = vdwg.mxu0
    %2041 = vrot.lane.b32.xlu0 %v2006, 120
    %v2042 = vpop.permute.xlu0 %2041
    %2043 = vrot.lane.b32.xlu0 %v2009, 120
    %v2044 = vpop.permute.xlu0 %2043
    %2045 = vrot.lane.b32.xlu0 %v2006, 112
    %v2046 = vpop.permute.xlu0 %2045
    %2047 = vrot.lane.b32.xlu0 %v2009, 112
    %v2048 = vpop.permute.xlu0 %2047
    %2049 = vrot.lane.b32.xlu0 %v2006, 104
    %v2050 = vpop.permute.xlu0 %2049
    %2051 = vrot.lane.b32.xlu0 %v2009, 104
    %v2052 = vpop.permute.xlu0 %2051
    %2055 = vrot.lane.b32.xlu0 %v2034, 120
    %v2056 = vpop.permute.xlu0 %2055
    %2057 = vrot.lane.b32.xlu0 %v2037, 120
    %v2058 = vpop.permute.xlu0 %2057
    %2059 = vrot.lane.b32.xlu0 %v2034, 112
    %v2060 = vpop.permute.xlu0 %2059
    %2061 = vrot.lane.b32.xlu0 %v2037, 112
    %v2062 = vpop.permute.xlu0 %2061
    %2063 = vrot.lane.b32.xlu0 %v2034, 104
    %v2064 = vpop.permute.xlu0 %2063
    %2065 = vrot.lane.b32.xlu0 %v2037, 104
    %v2066 = vpop.permute.xlu0 %2065
    %v2067 = vsel %vm473, %v2006, 0
    %v2069 = vsel %vm473, %v2009, 0
    %v2071 = vsel %vm473, %v2042, 0
    %v2073 = vsel %vm473, %v2044, 0
    %v2075 = vsel %vm473, %v2046, 0
    %v2077 = vsel %vm473, %v2048, 0
    %v2079 = vsel %vm473, %v2050, 0
    %v2081 = vsel %vm473, %v2052, 0
    %v2083 = vsel %vm473, %v2034, 0
    %v2085 = vsel %vm473, %v2037, 0
    %v2087 = vsel %vm473, %v2056, 0
    %v2089 = vsel %vm473, %v2058, 0
    %v2091 = vsel %vm473, %v2060, 0
    %v2093 = vsel %vm473, %v2062, 0
    %v2095 = vsel %vm473, %v2064, 0
    %v2097 = vsel %vm473, %v2066, 0
    %2099 = vmatpush.xpose.msra.mxu0 0.0
    %2100 = vmatpush.xpose.msra.mxu0 0.0
    %2101 = vmatpush.xpose.msra.mxu0 0.0
    %2102 = vmatpush.xpose.msra.mxu0 0.0
    %2103 = vmatpush.xpose.msra.mxu0 0.0
    %2104 = vmatpush.xpose.msra.mxu0 0.0
    %2105 = vmatpush.xpose.msra.mxu0 0.0
    %2106 = vmatpush.xpose.msra.mxu0 0.0
    %2107 = vmatpush.xpose.msra.mxu0 %v2097
    %2108 = vmatpush.xpose.msra.mxu0 %v2095
    %2109 = vmatpush.xpose.msra.mxu0 %v2093
    %2110 = vmatpush.xpose.msra.mxu0 %v2091
    %2111 = vmatpush.xpose.msra.mxu0 %v2089
    %2112 = vmatpush.xpose.msra.mxu0 %v2087
    %2113 = vmatpush.xpose.msra.mxu0 %v2085
    %2114 = vmatpush.xpose.msra.mxu0 %v2083
    %2115 = vmatmul.f32.gmra.mxu0 %v2067
    %v2116 = vpop.f32.mrf.mxu0
    %v2117 = vadd.f32 0.0, %v2116
    %2118 = vmatmul.f32.gmra.mxu0 %v2069
    %v2119 = vpop.f32.mrf.mxu0
    %v2120 = vadd.f32 0.0, %v2119
    %2121 = vmatmul.f32.gmra.mxu0 %v2071
    %v2122 = vpop.f32.mrf.mxu0
    %v2123 = vadd.f32 0.0, %v2122
    %2124 = vmatmul.f32.gmra.mxu0 %v2073
    %v2125 = vpop.f32.mrf.mxu0
    %v2126 = vadd.f32 0.0, %v2125
    %2127 = vmatmul.f32.gmra.mxu0 %v2075
    %v2128 = vpop.f32.mrf.mxu0
    %v2129 = vadd.f32 0.0, %v2128
    %2130 = vmatmul.f32.gmra.mxu0 %v2077
    %v2131 = vpop.f32.mrf.mxu0
    %v2132 = vadd.f32 0.0, %v2131
    %2133 = vmatmul.f32.gmra.mxu0 %v2079
    %v2134 = vpop.f32.mrf.mxu0
    %v2135 = vadd.f32 0.0, %v2134
    %2136 = vmatmul.f32.gmra.mxu0 %v2081
    %v2137 = vpop.f32.mrf.mxu0
    %v2138 = vadd.f32 0.0, %v2137
    %2139 = vdwg.mxu0
    %v2140 = vmul.f32 %v2117, 0.125
    %v2141 = vmul.f32 %v2120, 0.125
    %v2142 = vmul.f32 %v2123, 0.125
    %v2143 = vmul.f32 %v2126, 0.125
    %v2144 = vmul.f32 %v2129, 0.125
    %v2145 = vmul.f32 %v2132, 0.125
    %v2146 = vmul.f32 %v2135, 0.125
    %v2147 = vmul.f32 %v2138, 0.125
    %v2148 = vsel %vm1053, -1e+09, %v2140
    %v2149 = vsel %vm1054, -1e+09, %v2141
    %v2150 = vsel %vm1055, -1e+09, %v2142
    %v2151 = vsel %vm1056, -1e+09, %v2143
    %v2152 = vsel %vm1057, -1e+09, %v2144
    %v2153 = vsel %vm1058, -1e+09, %v2145
    %v2154 = vsel %vm1059, -1e+09, %v2146
    %v2155 = vsel %vm1060, -1e+09, %v2147
    %v2156 = vsel %vm571, %v2148, -inf
    %2157 = vmax.xlane.f32.xlu0 %v2156
    %v2158 = vpop.xlane.xlu0 %2157
    %v2159 = vsel %vm571, %v2149, -inf
    %2160 = vmax.xlane.f32.xlu0 %v2159
    %v2161 = vpop.xlane.xlu0 %2160
    %v2162 = vsel %vm571, %v2150, -inf
    %2163 = vmax.xlane.f32.xlu0 %v2162
    %v2164 = vpop.xlane.xlu0 %2163
    %v2165 = vsel %vm571, %v2151, -inf
    %2166 = vmax.xlane.f32.xlu0 %v2165
    %v2167 = vpop.xlane.xlu0 %2166
    %v2168 = vsel %vm571, %v2152, -inf
    %2169 = vmax.xlane.f32.xlu0 %v2168
    %v2170 = vpop.xlane.xlu0 %2169
    %v2171 = vsel %vm571, %v2153, -inf
    %2172 = vmax.xlane.f32.xlu0 %v2171
    %v2173 = vpop.xlane.xlu0 %2172
    %v2174 = vsel %vm571, %v2154, -inf
    %2175 = vmax.xlane.f32.xlu0 %v2174
    %v2176 = vpop.xlane.xlu0 %2175
    %v2177 = vsel %vm571, %v2155, -inf
    %2178 = vmax.xlane.f32.xlu0 %v2177
    %v2179 = vpop.xlane.xlu0 %2178
    %v2180 = vsub.f32 %v2148, %v2158
    %v2181 = vsub.f32 %v2149, %v2161
    %v2182 = vsub.f32 %v2150, %v2164
    %v2183 = vsub.f32 %v2151, %v2167
    %v2184 = vsub.f32 %v2152, %v2170
    %v2185 = vsub.f32 %v2153, %v2173
    %v2186 = vsub.f32 %v2154, %v2176
    %v2187 = vsub.f32 %v2155, %v2179
    %v2188 = vmul.f32 %v2180, 1.442695
    %v2189 = vpow.pop %v2188
    %v2190 = vmul.f32 %v2181, 1.442695
    %v2191 = vpow.pop %v2190
    %v2192 = vmul.f32 %v2182, 1.442695
    %v2193 = vpow.pop %v2192
    %v2194 = vmul.f32 %v2183, 1.442695
    %v2195 = vpow.pop %v2194
    %v2196 = vmul.f32 %v2184, 1.442695
    %v2197 = vpow.pop %v2196
    %v2198 = vmul.f32 %v2185, 1.442695
    %v2199 = vpow.pop %v2198
    %v2200 = vmul.f32 %v2186, 1.442695
    %v2201 = vpow.pop %v2200
    %v2202 = vmul.f32 %v2187, 1.442695
    %v2203 = vpow.pop %v2202
    %v2204 = vsel %vm571, %v2189, 0.0
    %2205 = vadd.xlane.f32.xlu0 %v2204
    %v2206 = vpop.xlane.xlu0 %2205
    %v2207 = vsel %vm571, %v2191, 0.0
    %2208 = vadd.xlane.f32.xlu0 %v2207
    %v2209 = vpop.xlane.xlu0 %2208
    %v2210 = vsel %vm571, %v2193, 0.0
    %2211 = vadd.xlane.f32.xlu0 %v2210
    %v2212 = vpop.xlane.xlu0 %2211
    %v2213 = vsel %vm571, %v2195, 0.0
    %2214 = vadd.xlane.f32.xlu0 %v2213
    %v2215 = vpop.xlane.xlu0 %2214
    %v2216 = vsel %vm571, %v2197, 0.0
    %2217 = vadd.xlane.f32.xlu0 %v2216
    %v2218 = vpop.xlane.xlu0 %2217
    %v2219 = vsel %vm571, %v2199, 0.0
    %2220 = vadd.xlane.f32.xlu0 %v2219
    %v2221 = vpop.xlane.xlu0 %2220
    %v2222 = vsel %vm571, %v2201, 0.0
    %2223 = vadd.xlane.f32.xlu0 %v2222
    %v2224 = vpop.xlane.xlu0 %2223
    %v2225 = vsel %vm571, %v2203, 0.0
    %2226 = vadd.xlane.f32.xlu0 %v2225
    %v2227 = vpop.xlane.xlu0 %2226
    %v2228 = vrcp.pop %v2206
    %v2229 = vrcp.pop %v2209
    %v2230 = vrcp.pop %v2212
    %v2231 = vrcp.pop %v2215
    %v2232 = vrcp.pop %v2218
    %v2233 = vrcp.pop %v2221
    %v2234 = vrcp.pop %v2224
    %v2235 = vrcp.pop %v2227
    %v2236 = vmul.f32 %v2189, %v2228
    %v2237 = vmul.f32 %v2191, %v2229
    %v2238 = vmul.f32 %v2193, %v2230
    %v2239 = vmul.f32 %v2195, %v2231
    %v2240 = vmul.f32 %v2197, %v2232
    %v2241 = vmul.f32 %v2199, %v2233
    %v2242 = vmul.f32 %v2201, %v2234
    %v2243 = vmul.f32 %v2203, %v2235
    %2244 = vrot.lane.b32.xlu0 %v2034, 96
    %v2245 = vpop.permute.xlu0 %2244
    %2246 = vrot.lane.b32.xlu0 %v2037, 96
    %v2247 = vpop.permute.xlu0 %2246
    %2248 = vrot.lane.b32.xlu0 %v2056, 96
    %v2249 = vpop.permute.xlu0 %2248
    %2250 = vrot.lane.b32.xlu0 %v2058, 96
    %v2251 = vpop.permute.xlu0 %2250
    %2252 = vrot.lane.b32.xlu0 %v2060, 96
    %v2253 = vpop.permute.xlu0 %2252
    %2254 = vrot.lane.b32.xlu0 %v2062, 96
    %v2255 = vpop.permute.xlu0 %2254
    %2256 = vrot.lane.b32.xlu0 %v2064, 96
    %v2257 = vpop.permute.xlu0 %2256
    %2258 = vrot.lane.b32.xlu0 %v2066, 96
    %v2259 = vpop.permute.xlu0 %2258
    %v2269 = vsel %vm571, %v2236, 0
    %v2272 = vsel %vm571, %v2237, 0
    %v2275 = vsel %vm571, %v2238, 0
    %v2278 = vsel %vm571, %v2239, 0
    %v2281 = vsel %vm571, %v2240, 0
    %v2284 = vsel %vm571, %v2241, 0
    %v2287 = vsel %vm571, %v2242, 0
    %v2290 = vsel %vm571, %v2243, 0
    %2292 = vmatpush.msra.mxu0 0.0
    %2293 = vmatpush.msra.mxu0 0.0
    %2294 = vmatpush.msra.mxu0 0.0
    %2295 = vmatpush.msra.mxu0 0.0
    %2296 = vmatpush.msra.mxu0 0.0
    %2297 = vmatpush.msra.mxu0 0.0
    %2298 = vmatpush.msra.mxu0 0.0
    %2299 = vmatpush.msra.mxu0 0.0
    %2300 = vmatpush.msra.mxu0 %v2259
    %2301 = vmatpush.msra.mxu0 %v2257
    %2302 = vmatpush.msra.mxu0 %v2255
    %2303 = vmatpush.msra.mxu0 %v2253
    %2304 = vmatpush.msra.mxu0 %v2251
    %2305 = vmatpush.msra.mxu0 %v2249
    %2306 = vmatpush.msra.mxu0 %v2247
    %2307 = vmatpush.msra.mxu0 %v2245
    %2308 = vmatmul.f32.gmra.mxu0 %v2269
    %v2309 = vpop.f32.mrf.mxu0
    %v2310 = vadd.f32 0.0, %v2309
    %2311 = vmatmul.f32.gmra.mxu0 %v2272
    %v2312 = vpop.f32.mrf.mxu0
    %v2313 = vadd.f32 0.0, %v2312
    %2314 = vmatmul.f32.gmra.mxu0 %v2275
    %v2315 = vpop.f32.mrf.mxu0
    %v2316 = vadd.f32 0.0, %v2315
    %2317 = vmatmul.f32.gmra.mxu0 %v2278
    %v2318 = vpop.f32.mrf.mxu0
    %v2319 = vadd.f32 0.0, %v2318
    %2320 = vmatmul.f32.gmra.mxu0 %v2281
    %v2321 = vpop.f32.mrf.mxu0
    %v2322 = vadd.f32 0.0, %v2321
    %2323 = vmatmul.f32.gmra.mxu0 %v2284
    %v2324 = vpop.f32.mrf.mxu0
    %v2325 = vadd.f32 0.0, %v2324
    %2326 = vmatmul.f32.gmra.mxu0 %v2287
    %v2327 = vpop.f32.mrf.mxu0
    %v2328 = vadd.f32 0.0, %v2327
    %2329 = vmatmul.f32.gmra.mxu0 %v2290
    %v2330 = vpop.f32.mrf.mxu0
    %v2331 = vadd.f32 0.0, %v2330
    %2332 = vdwg.mxu0
    %2335 = vrot.lane.b32.xlu0 %v2316, 8
    %v2336 = vpop.permute.xlu0 %2335
    %2337 = vrot.lane.b32.xlu0 %v2319, 8
    %v2338 = vpop.permute.xlu0 %2337
    %2343 = vrot.lane.b32.xlu0 %v2322, 16
    %v2344 = vpop.permute.xlu0 %2343
    %2345 = vrot.lane.b32.xlu0 %v2325, 16
    %v2346 = vpop.permute.xlu0 %2345
    %2351 = vrot.lane.b32.xlu0 %v2328, 24
    %v2352 = vpop.permute.xlu0 %2351
    %2353 = vrot.lane.b32.xlu0 %v2331, 24
    %v2354 = vpop.permute.xlu0 %2353
    %v2357 = vsel %vm473, %v2310, %v2336
    %v2358 = vsel %vm473, %v2313, %v2338
    %v2359 = vsel %vm775, %v2357, %v2344
    %v2360 = vsel %vm775, %v2358, %v2346
    %v2361 = vsel %vm778, %v2359, %v2352
    %v2362 = vsel %vm778, %v2360, %v2354
    %s2363 = scalar_lea.vmem [#allocation14], 32
    %v2364 = vld [vmem:[%s2363] sm:$0xff]
    %v2365 = vld [vmem:[%s2363 + $0x8] sm:$0xff]
    %v2366 = vld [vmem:[%s2363 + $0x10] sm:$0xff]
    %v2367 = vld [vmem:[%s2363 + $0x18] sm:$0xff]
    %v2369 = vsel %vm342, %v2361, 0
    %v2372 = vsel %vm342, %v2362, 0
    %2374 = vmatpush.msra.mxu0 0.0
    %2375 = vmatpush.msra.mxu0 0.0
    %2376 = vmatpush.msra.mxu0 0.0
    %2377 = vmatpush.msra.mxu0 0.0
    %2378 = vmatpush.msra.mxu0 0.0
    %2379 = vmatpush.msra.mxu0 0.0
    %2380 = vmatpush.msra.mxu0 0.0
    %2381 = vmatpush.msra.mxu0 0.0
    %2382 = vmatpush.msra.mxu0 0.0
    %2383 = vmatpush.msra.mxu0 0.0
    %2384 = vmatpush.msra.mxu0 0.0
    %2385 = vmatpush.msra.mxu0 0.0
    %2386 = vmatpush.msra.mxu0 %v2367
    %2387 = vmatpush.msra.mxu0 %v2366
    %2388 = vmatpush.msra.mxu0 %v2365
    %2389 = vmatpush.msra.mxu0 %v2364
    %2390 = vmatmul.f32.gmra.mxu0 %v2369
    %v2391 = vpop.f32.mrf.mxu0
    %v2392 = vadd.f32 0.0, %v2391
    %2393 = vmatmul.f32.gmra.mxu0 %v2372
    %v2394 = vpop.f32.mrf.mxu0
    %v2395 = vadd.f32 0.0, %v2394
    %2396 = vdwg.mxu0
    %v2397 = vadd.f32 %v1975, %v2392
    %v2398 = vadd.f32 %v1976, %v2395
    %s2399 = scalar_lea.vmem [#allocation17], 1
    %v2400 = vld [vmem:[%s2399] sm:$0x1]
    %s2401 = scalar_lea.vmem [#allocation19], 1
    %v2402 = vld [vmem:[%s2401] sm:$0x1]
    %v2403 = vsel %vm342, %v2397, 0.0
    %2404 = vadd.xlane.f32.xlu0 %v2403
    %v2405 = vpop.xlane.xlu0 %2404
    %v2406 = vsel %vm342, %v2398, 0.0
    %2407 = vadd.xlane.f32.xlu0 %v2406
    %v2408 = vpop.xlane.xlu0 %2407
    %v2409 = vmul.f32 %v2405, %v355
    %v2410 = vmul.f32 %v2408, %v355
    %v2411 = vsub.f32 %v2397, %v2409
    %v2412 = vsub.f32 %v2398, %v2410
    %v2413 = vmul.f32 %v2411, %v2411
    %v2414 = vmul.f32 %v2412, %v2412
    %v2415 = vsel %vm342, %v2413, 0.0
    %2416 = vadd.xlane.f32.xlu0 %v2415
    %v2417 = vpop.xlane.xlu0 %2416
    %v2418 = vsel %vm342, %v2414, 0.0
    %2419 = vadd.xlane.f32.xlu0 %v2418
    %v2420 = vpop.xlane.xlu0 %2419
    %v2421 = vmul.f32 %v2417, 0.032258064
    %v2422 = vmul.f32 %v2420, 0.032258064
    %v2423 = vrsqrt.pop %v2421
    %v2424 = vmul.f32 %v2423, %v2421
    %v2425 = vmul.f32 %v2424, %v2423
    %v2426 = vmul.f32 0.5, %v2425
    %v2427 = vsub.f32 1.5, %v2426
    %v2428 = vmul.f32 %v2423, %v2427
    %v2429 = vmul.f32 %v2421, %v2428
    %vm2430 = vcmp.eq.f32.partialorder %v2421, inf
    %v2431 = vsel %vm2430, %v2421, %v2429
    %vm2432 = vcmp.eq.f32.partialorder %v2421, 0.0
    %v2433 = vand.u32 %v2421, 2147483648
    %v2434 = vsel %vm2432, %v2433, %v2431
    %v2435 = vrsqrt.pop %v2422
    %v2436 = vmul.f32 %v2435, %v2422
    %v2437 = vmul.f32 %v2436, %v2435
    %v2438 = vmul.f32 0.5, %v2437
    %v2439 = vsub.f32 1.5, %v2438
    %v2440 = vmul.f32 %v2435, %v2439
    %v2441 = vmul.f32 %v2422, %v2440
    %vm2442 = vcmp.eq.f32.partialorder %v2422, inf
    %v2443 = vsel %vm2442, %v2422, %v2441
    %vm2444 = vcmp.eq.f32.partialorder %v2422, 0.0
    %v2445 = vand.u32 %v2422, 2147483648
    %v2446 = vsel %vm2444, %v2445, %v2443
    %v2447 = vadd.f32 %v2434, 1e-06
    %v2448 = vadd.f32 %v2446, 1e-06
    %v2449 = vrcp.pop %v2447
    %v2450 = vrcp.pop %v2448
    %v2451 = vmul.f32 %v2411, %v2449
    %v2452 = vmul.f32 %v2412, %v2450
    %v2454 = vperm.slane %v2400, 0
    %v2456 = vmul.f32 %v2454, %v2451
    %v2457 = vmul.f32 %v2454, %v2452
    %v2459 = vperm.slane %v2402, 0
    %v2461 = vadd.f32 %v2456, %v2459
    %v2462 = vadd.f32 %v2457, %v2459
    %s2463 = scalar_lea.vmem [#allocation23], 32
    %v2464 = vld [vmem:[%s2463] sm:$0xff]
    %v2465 = vld [vmem:[%s2463 + $0x8] sm:$0xff]
    %v2466 = vld [vmem:[%s2463 + $0x10] sm:$0xff]
    %v2467 = vld [vmem:[%s2463 + $0x18] sm:$0xff]
    %s2468 = scalar_lea.vmem [#allocation25], 1
    %v2469 = vld [vmem:[%s2468] sm:$0x1]
    %v2471 = vperm.slane %v2469, 0
    %v2474 = vsel %vm342, %v2461, 0
    %v2477 = vsel %vm342, %v2462, 0
    %2479 = vmatpush.msra.mxu0 0.0
    %2480 = vmatpush.msra.mxu0 0.0
    %2481 = vmatpush.msra.mxu0 0.0
    %2482 = vmatpush.msra.mxu0 0.0
    %2483 = vmatpush.msra.mxu0 0.0
    %2484 = vmatpush.msra.mxu0 0.0
    %2485 = vmatpush.msra.mxu0 0.0
    %2486 = vmatpush.msra.mxu0 0.0
    %2487 = vmatpush.msra.mxu0 0.0
    %2488 = vmatpush.msra.mxu0 0.0
    %2489 = vmatpush.msra.mxu0 0.0
    %2490 = vmatpush.msra.mxu0 0.0
    %2491 = vmatpush.msra.mxu0 %v2467
    %2492 = vmatpush.msra.mxu0 %v2466
    %2493 = vmatpush.msra.mxu0 %v2465
    %2494 = vmatpush.msra.mxu0 %v2464
    %2495 = vmatmul.f32.gmra.mxu0 %v2474
    %v2496 = vpop.f32.mrf.mxu0
    %v2497 = vadd.f32 %v2471, %v2496
    %2498 = vmatmul.f32.gmra.mxu0 %v2477
    %v2499 = vpop.f32.mrf.mxu0
    %v2500 = vadd.f32 %v2471, %v2499
    %2501 = vdwg.mxu0
    %v2502 = vmax.f32 %v2497, 0.0
    %v2503 = vmax.f32 %v2500, 0.0
    %s2504 = scalar_lea.vmem %s19, 64
    %v2505 = vld [vmem:[%s2504] sm:$0xff]
    %v2506 = vld [vmem:[%s2504 + $0x8] sm:$0xff]
    %v2507 = vld [vmem:[%s2504 + $0x10] sm:$0xff]
    %v2508 = vld [vmem:[%s2504 + $0x18] sm:$0xff]
    %v2509 = vld [vmem:[%s2504 + $0x20] sm:$0xff]
    %v2510 = vld [vmem:[%s2504 + $0x28] sm:$0xff]
    %v2511 = vld [vmem:[%s2504 + $0x30] sm:$0xff]
    %v2512 = vld [vmem:[%s2504 + $0x38] sm:$0xff]
    %s2513 = scalar_lea.vmem [#allocation26], 1
    %v2514 = vld [vmem:[%s2513] sm:$0x1]
    %v2516 = vperm.slane %v2514, 0
    %v2519 = vsel %vm571, %v2502, 0
    %v2522 = vsel %vm571, %v2503, 0
    %2524 = vmatpush.msra.mxu0 0.0
    %2525 = vmatpush.msra.mxu0 0.0
    %2526 = vmatpush.msra.mxu0 0.0
    %2527 = vmatpush.msra.mxu0 0.0
    %2528 = vmatpush.msra.mxu0 0.0
    %2529 = vmatpush.msra.mxu0 0.0
    %2530 = vmatpush.msra.mxu0 0.0
    %2531 = vmatpush.msra.mxu0 0.0
    %2532 = vmatpush.msra.mxu0 %v2512
    %2533 = vmatpush.msra.mxu0 %v2511
    %2534 = vmatpush.msra.mxu0 %v2510
    %2535 = vmatpush.msra.mxu0 %v2509
    %2536 = vmatpush.msra.mxu0 %v2508
    %2537 = vmatpush.msra.mxu0 %v2507
    %2538 = vmatpush.msra.mxu0 %v2506
    %2539 = vmatpush.msra.mxu0 %v2505
    %2540 = vmatmul.f32.gmra.mxu0 %v2519
    %v2541 = vpop.f32.mrf.mxu0
    %v2542 = vadd.f32 %v2516, %v2541
    %2543 = vmatmul.f32.gmra.mxu0 %v2522
    %v2544 = vpop.f32.mrf.mxu0
    %v2545 = vadd.f32 %v2516, %v2544
    %2546 = vdwg.mxu0
    %v2547 = vadd.f32 %v2461, %v2542
    %v2548 = vadd.f32 %v2462, %v2545
    %s2549 = scalar_lea.vmem [#allocation20], 1
    %v2550 = vld [vmem:[%s2549] sm:$0x1]
    %s2551 = scalar_lea.vmem [#allocation22], 1
    %v2552 = vld [vmem:[%s2551] sm:$0x1]
    %v2553 = vsel %vm342, %v2547, 0.0
    %2554 = vadd.xlane.f32.xlu0 %v2553
    %v2555 = vpop.xlane.xlu0 %2554
    %v2556 = vsel %vm342, %v2548, 0.0
    %2557 = vadd.xlane.f32.xlu0 %v2556
    %v2558 = vpop.xlane.xlu0 %2557
    %v2559 = vmul.f32 %v2555, %v355
    %v2560 = vmul.f32 %v2558, %v355
    %v2561 = vsub.f32 %v2547, %v2559
    %v2562 = vsub.f32 %v2548, %v2560
    %v2563 = vmul.f32 %v2561, %v2561
    %v2564 = vmul.f32 %v2562, %v2562
    %v2565 = vsel %vm342, %v2563, 0.0
    %2566 = vadd.xlane.f32.xlu0 %v2565
    %v2567 = vpop.xlane.xlu0 %2566
    %v2568 = vsel %vm342, %v2564, 0.0
    %2569 = vadd.xlane.f32.xlu0 %v2568
    %v2570 = vpop.xlane.xlu0 %2569
    %v2571 = vmul.f32 %v2567, 0.032258064
    %v2572 = vmul.f32 %v2570, 0.032258064
    %v2573 = vrsqrt.pop %v2571
    %v2574 = vmul.f32 %v2573, %v2571
    %v2575 = vmul.f32 %v2574, %v2573
    %v2576 = vmul.f32 0.5, %v2575
    %v2577 = vsub.f32 1.5, %v2576
    %v2578 = vmul.f32 %v2573, %v2577
    %v2579 = vmul.f32 %v2571, %v2578
    %vm2580 = vcmp.eq.f32.partialorder %v2571, inf
    %v2581 = vsel %vm2580, %v2571, %v2579
    %vm2582 = vcmp.eq.f32.partialorder %v2571, 0.0
    %v2583 = vand.u32 %v2571, 2147483648
    %v2584 = vsel %vm2582, %v2583, %v2581
    %v2585 = vrsqrt.pop %v2572
    %v2586 = vmul.f32 %v2585, %v2572
    %v2587 = vmul.f32 %v2586, %v2585
    %v2588 = vmul.f32 0.5, %v2587
    %v2589 = vsub.f32 1.5, %v2588
    %v2590 = vmul.f32 %v2585, %v2589
    %v2591 = vmul.f32 %v2572, %v2590
    %vm2592 = vcmp.eq.f32.partialorder %v2572, inf
    %v2593 = vsel %vm2592, %v2572, %v2591
    %vm2594 = vcmp.eq.f32.partialorder %v2572, 0.0
    %v2595 = vand.u32 %v2572, 2147483648
    %v2596 = vsel %vm2594, %v2595, %v2593
    %v2597 = vadd.f32 %v2584, 1e-06
    %v2598 = vadd.f32 %v2596, 1e-06
    %v2599 = vrcp.pop %v2597
    %v2600 = vrcp.pop %v2598
    %v2601 = vmul.f32 %v2561, %v2599
    %v2602 = vmul.f32 %v2562, %v2600
    %v2604 = vperm.slane %v2550, 0
    %v2606 = vmul.f32 %v2604, %v2601
    %v2607 = vmul.f32 %v2604, %v2602
    %v2609 = vperm.slane %v2552, 0
    %v2611 = vadd.f32 %v2606, %v2609
    %v2612 = vadd.f32 %v2607, %v2609
    %v2613 = vld [vmem:[%s21] sm:$0xff]
    %v2614 = vld [vmem:[%s21 + $0x8] sm:$0xff]
    %v2615 = vld [vmem:[%s21 + $0x10] sm:$0xff]
    %v2616 = vld [vmem:[%s21 + $0x18] sm:$0xff]
    %v2617 = vld [vmem:[%s22] sm:$0x1]
    %v2619 = vperm.slane %v2617, 0
    %v2622 = vsel %vm342, %v2611, 0
    %v2625 = vsel %vm342, %v2612, 0
    %2627 = vmatpush.msra.mxu0 0.0
    %2628 = vmatpush.msra.mxu0 0.0
    %2629 = vmatpush.msra.mxu0 0.0
    %2630 = vmatpush.msra.mxu0 0.0
    %2631 = vmatpush.msra.mxu0 0.0
    %2632 = vmatpush.msra.mxu0 0.0
    %2633 = vmatpush.msra.mxu0 0.0
    %2634 = vmatpush.msra.mxu0 0.0
    %2635 = vmatpush.msra.mxu0 0.0
    %2636 = vmatpush.msra.mxu0 0.0
    %2637 = vmatpush.msra.mxu0 0.0
    %2638 = vmatpush.msra.mxu0 0.0
    %2639 = vmatpush.msra.mxu0 %v2616
    %2640 = vmatpush.msra.mxu0 %v2615
    %2641 = vmatpush.msra.mxu0 %v2614
    %2642 = vmatpush.msra.mxu0 %v2613
    %2643 = vmatmul.f32.gmra.mxu0 %v2622
    %v2644 = vpop.f32.mrf.mxu0
    %v2645 = vadd.f32 %v2619, %v2644
    %2646 = vmatmul.f32.gmra.mxu0 %v2625
    %v2647 = vpop.f32.mrf.mxu0
    %v2648 = vadd.f32 %v2619, %v2647
    %2649 = vdwg.mxu0
    %2650 = vst.msk [vmem:[#allocation28] sm:$0xff] %vm775, %v2645
    %2651 = vst.msk [vmem:[#allocation28 + $0x8] sm:$0xff] %vm775, %v2648
    // Predicated region
    $region158: #{tpu_custom_call.1} parent=1 // pred_check
      _
    $region159: #{tpu_custom_call.1} parent=1 // pred_check_branch
      %2653 = sbr.rel (0) target = $region161
    $region160: #{tpu_custom_call.1} parent=1 // pred_region
      %2655 = vsyncadd [#allocation4], 0
      %s2656 = sshll.u32 [#allocation28], 4
      %s2657 = int_to_ptr.vmem [resolvable:$true] %s2656
      %s2658 = sshll.u32 %s23, 4
      %s2659 = int_to_ptr.hbm [resolvable:$true] %s2658
      %2664 = dma.vmem_to_hbm [thread:$0]  %s2657, 256, %s2659, [#allocation4], 128, 128, 8
    $region161: #{tpu_custom_call.1} parent=1 // pred_fallthru
      _
    // Predicated region
    $region162: #{tpu_custom_call.1} parent=1 // pred_check
      _
    $region163: #{tpu_custom_call.1} parent=1 // pred_check_branch
      %2666 = sbr.rel (0) target = $region165
    $region164: #{tpu_custom_call.1} parent=1 // pred_region
      %2668 = dma.done [#allocation4], 256
    $region165: #{tpu_custom_call.1} parent=1 // pred_fallthru
      _
    %2669 = vsyncpa [#allocation3], 1
    %2670 = vsyncpa [#allocation6], 1
    %2671 = vsyncpa [#allocation9], 1
    %2672 = vsyncpa [#allocation12], 1
    %2673 = vsyncpa [#allocation15], 1
    %2674 = vsyncpa [#allocation18], 1
    %2675 = vsyncpa [#allocation21], 1
    %2676 = vsyncpa [#allocation24], 1
    %2677 = vsyncpa [#allocation27], 1
    %2678 = vsyncpa [#allocation4], 1

</llo_original>
